<compile_context>
chip_gen: v7x
topology: tpu7x:2x2x1
jax: 0.10.0
libtpu: 0.0.40
codegen_flags: <defaults>
</compile_context>

<pallas_src>
import functools
import numpy as np
import jax
import jax.numpy as jnp
from jax.experimental import pallas as pl
from jax.experimental.pallas import tpu as pltpu

F32 = jnp.float32


# ---------------------------------------------------------------------------
# BlockSpec helpers
# ---------------------------------------------------------------------------
def _rep_spec(shape):
    """Full-array block, same block for every grid step (weights / tables)."""
    nd = len(shape)
    return pl.BlockSpec(tuple(shape), lambda b, _nd=nd: (0,) * _nd)


# ---------------------------------------------------------------------------
# Fused whole-model kernel
# ---------------------------------------------------------------------------
def _layernorm(y, g, b, eps):
    mu = jnp.mean(y, axis=-1, keepdims=True)
    var = jnp.mean((y - mu) ** 2, axis=-1, keepdims=True)
    return (y - mu) * jax.lax.rsqrt(var + eps) * g + b


def _model_kernel(x_ref, pos_ref, eg_ref, eb_ref,
                  wq_ref, bq_ref, wk_ref, bk_ref, wv_ref, bv_ref,
                  wo_ref, bo_ref, g1_ref, b1_ref,
                  wf1_ref, bf1_ref, wf2_ref, bf2_ref, g2_ref, b2_ref,
                  c1a_ref, c1b_ref, c1d_ref, c1bias_ref, c2w_ref, c2b_ref,
                  out_ref):
    _, npair, S, D = x_ref.shape            # one sentence pair per grid step
    L, nh, _, d_k = wq_ref.shape
    d_v = wv_ref.shape[-1]
    rows = npair * S

    # ---- PositionalEncoding + LayerNorm(1e-12): enc = LN(2*x + pos) ----
    x = x_ref[0]                                         # [2, S, D]
    y = 2.0 * x + pos_ref[...][None, :, :]
    y = y.reshape(rows, D)                               # both sentences as rows
    y = _layernorm(y, eg_ref[...], eb_ref[...], 1e-12)
    # dropout: identity at inference

    scale = 1.0 / float(d_k) ** 0.5
    for l in range(L):                                   # static unroll
        # ----- multi-head self attention (post-LN, residual) -----
        ctx = jnp.zeros((rows, D), F32)
        for h in range(nh):                              # static unroll
            q = (jnp.dot(y, wq_ref[l, h], preferred_element_type=F32)
                 + bq_ref[l, h]).reshape(npair, S, d_k)
            k = (jnp.dot(y, wk_ref[l, h], preferred_element_type=F32)
                 + bk_ref[l, h]).reshape(npair, S, d_k)
            v = (jnp.dot(y, wv_ref[l, h], preferred_element_type=F32)
                 + bv_ref[l, h]).reshape(npair, S, d_v)
            s = jnp.einsum("bqd,bkd->bqk", q, k,
                           preferred_element_type=F32) * scale
            m = jnp.max(s, axis=-1, keepdims=True)
            p = jnp.exp(s - m)
            p = p * pl.reciprocal(jnp.sum(p, axis=-1, keepdims=True),
                                  approx=True)
            o_h = jnp.einsum("bqk,bkd->bqd", p, v,
                             preferred_element_type=F32).reshape(rows, d_v)
            # concat-over-heads followed by W_o  ==  sum_h (o_h @ W_o[h])
            ctx = ctx + jnp.dot(o_h, wo_ref[l, h], preferred_element_type=F32)
        ctx = ctx + bo_ref[l]
        y = _layernorm(ctx + y, g1_ref[l], b1_ref[l], 1e-6)

        # ----- position-wise FFN (relu), residual, post-LN -----
        hdn = jnp.maximum(
            jnp.dot(y, wf1_ref[l], preferred_element_type=F32) + bf1_ref[l],
            0.0)
        f = jnp.dot(hdn, wf2_ref[l], preferred_element_type=F32) + bf2_ref[l]
        y = _layernorm(f + y, g2_ref[l], b2_ref[l], 1e-6)

    # ---- CLS tokens of the pair + classifier (fused, lane-dense output) ----
    o1 = y[0:1, :]            # CLS of sentence 1 (row 0)
    o2 = y[S:S + 1, :]        # CLS of sentence 2 (row S, sublane aligned)
    # cat([o1, o2, |o1-o2|], -1) @ W1  ==  o1 @ W1a + o2 @ W1b + |o1-o2| @ W1d
    hcls = jnp.tanh(
        jnp.dot(o1, c1a_ref[...], preferred_element_type=F32)
        + jnp.dot(o2, c1b_ref[...], preferred_element_type=F32)
        + jnp.dot(jnp.abs(o1 - o2), c1d_ref[...], preferred_element_type=F32)
        + c1bias_ref[...])
    logits = jnp.dot(hcls, c2w_ref[...], preferred_element_type=F32) \
        + c2b_ref[...]
    out_ref[0] = logits                                   # [1, 128] lane-dense


# ---------------------------------------------------------------------------
# Wrapper: one pallas_call for the whole Transformer_sentence forward
# ---------------------------------------------------------------------------
def transformer_sentence_forward(w1, w2, params, pos_table, *, num_class):
    B, S, D = w1.shape
    x = jnp.stack([w1, w2], axis=1)            # [B, 2, S, D] — shared encoder
    pos = pos_table[:S]
    cpad = params["cls2_w"].shape[1]

    args = (x, pos,
            params["enc_ln_g"], params["enc_ln_b"],
            params["wq"], params["bq"], params["wk"], params["bk"],
            params["wv"], params["bv"], params["wo"], params["bo"],
            params["ln1_g"], params["ln1_b"],
            params["wf1"], params["bf1"], params["wf2"], params["bf2"],
            params["ln2_g"], params["ln2_b"],
            params["cls1_wa"], params["cls1_wb"], params["cls1_wd"],
            params["cls1_b"], params["cls2_w"], params["cls2_b"])

    in_specs = [pl.BlockSpec((1, 2, S, D), lambda b: (b, 0, 0, 0))]
    in_specs += [_rep_spec(a.shape) for a in args[1:]]

    out = pl.pallas_call(
        _model_kernel,
        out_shape=jax.ShapeDtypeStruct((B, 1, cpad), F32),
        grid=(B,),                              # one sentence pair per step
        in_specs=in_specs,
        out_specs=pl.BlockSpec((1, 1, cpad), lambda b: (b, 0, 0)),
        compiler_params=pltpu.CompilerParams(
            dimension_semantics=("parallel",)),  # pairs shard across TCs (v7x)
    )(*args)
    return out[:, 0, :num_class]                # drop the lane padding


# ---------------------------------------------------------------------------
# Pure-JAX reference (same math, exact softmax) for a correctness check
# ---------------------------------------------------------------------------
def reference_forward(w1, w2, params, pos_table, *, num_class):
    def ln(y, g, b, eps):
        mu = jnp.mean(y, -1, keepdims=True)
        var = jnp.mean((y - mu) ** 2, -1, keepdims=True)
        return (y - mu) * jax.lax.rsqrt(var + eps) * g + b

    L, nh, _, d_k = params["wq"].shape
    scale = 1.0 / float(d_k) ** 0.5

    def encode(x):
        S = x.shape[1]
        y = 2.0 * x + pos_table[:S][None]
        y = ln(y, params["enc_ln_g"], params["enc_ln_b"], 1e-12)
        for l in range(L):
            ctx = 0.0
            for h in range(nh):
                q = jnp.einsum("bsd,de->bse", y, params["wq"][l, h]) + params["bq"][l, h]
                k = jnp.einsum("bsd,de->bse", y, params["wk"][l, h]) + params["bk"][l, h]
                v = jnp.einsum("bsd,de->bse", y, params["wv"][l, h]) + params["bv"][l, h]
                s = jnp.einsum("bqe,bke->bqk", q, k) * scale
                p = jax.nn.softmax(s, axis=-1)
                o = jnp.einsum("bqk,bke->bqe", p, v)
                ctx = ctx + jnp.einsum("bse,ed->bsd", o, params["wo"][l, h])
            ctx = ctx + params["bo"][l]
            y = ln(ctx + y, params["ln1_g"][l], params["ln1_b"][l], 1e-6)
            hdn = jax.nn.relu(jnp.einsum("bsd,df->bsf", y, params["wf1"][l])
                              + params["bf1"][l])
            f = jnp.einsum("bsf,fd->bsd", hdn, params["wf2"][l]) + params["bf2"][l]
            y = ln(f + y, params["ln2_g"][l], params["ln2_b"][l], 1e-6)
        return y

    o1 = encode(w1)[:, 0, :]
    o2 = encode(w2)[:, 0, :]
    h = jnp.tanh(o1 @ params["cls1_wa"] + o2 @ params["cls1_wb"]
                 + jnp.abs(o1 - o2) @ params["cls1_wd"] + params["cls1_b"])
    logits = h @ params["cls2_w"] + params["cls2_b"]
    return logits[:, :num_class]


# ---------------------------------------------------------------------------
# Deterministic parameter init (synthetic weights, same shapes as the module)
# ---------------------------------------------------------------------------
def sinusoid_table(n_position, d_hid):
    pos = np.arange(n_position, dtype=np.float64)[:, None]
    j = np.arange(d_hid)[None, :]
    angle = pos / np.power(10000.0, 2.0 * (j // 2) / d_hid)
    table = np.zeros_like(angle)
    table[:, 0::2] = np.sin(angle[:, 0::2])
    table[:, 1::2] = np.cos(angle[:, 1::2])
    return table.astype(np.float32)


def init_params(key, d_model, n_head, d_k, d_v, d_inner, n_layers,
                d_classifier, num_class, lane_pad=128):
    ks = jax.random.split(key, 8)
    L, nh, D = n_layers, n_head, d_model
    cpad = ((num_class + lane_pad - 1) // lane_pad) * lane_pad

    def nrm(k, shape, fan_in):
        return (jax.random.normal(k, shape, F32) / np.sqrt(fan_in)).astype(F32)

    w_cls1 = nrm(ks[6], (3 * D, d_classifier), 3 * D)
    w_cls2 = nrm(ks[7], (d_classifier, num_class), d_classifier)
    cls2_w = jnp.zeros((d_classifier, cpad), F32).at[:, :num_class].set(w_cls2)

    return {
        "enc_ln_g": jnp.ones((1, D), F32),
        "enc_ln_b": jnp.zeros((1, D), F32),
        # attention projections stacked per (layer, head)
        "wq": nrm(ks[0], (L, nh, D, d_k), D),
        "bq": jnp.zeros((L, nh, 1, d_k), F32),
        "wk": nrm(ks[1], (L, nh, D, d_k), D),
        "bk": jnp.zeros((L, nh, 1, d_k), F32),
        "wv": nrm(ks[2], (L, nh, D, d_v), D),
        "bv": jnp.zeros((L, nh, 1, d_v), F32),
        "wo": nrm(ks[3], (L, nh, d_v, D), nh * d_v),
        "bo": jnp.zeros((L, 1, D), F32),
        "ln1_g": jnp.ones((L, 1, D), F32),
        "ln1_b": jnp.zeros((L, 1, D), F32),
        "wf1": nrm(ks[4], (L, D, d_inner), D),
        "bf1": jnp.zeros((L, 1, d_inner), F32),
        "wf2": nrm(ks[5], (L, d_inner, D), d_inner),
        "bf2": jnp.zeros((L, 1, D), F32),
        "ln2_g": jnp.ones((L, 1, D), F32),
        "ln2_b": jnp.zeros((L, 1, D), F32),
        # classifier: cat([o1, o2, |o1-o2|]) @ W1  -> W1 split into 3 row-blocks
        "cls1_wa": w_cls1[:D],
        "cls1_wb": w_cls1[D:2 * D],
        "cls1_wd": w_cls1[2 * D:],
        "cls1_b": jnp.zeros((1, d_classifier), F32),
        # final Linear zero-padded to a lane-dense (128-multiple) output slab
        "cls2_w": cls2_w,
        "cls2_b": jnp.zeros((1, cpad), F32),
    }


# ---------------------------------------------------------------------------
if __name__ == "__main__":
    # Small config consistent with the module's forward (embedded=True)
    B, S = 2, 8
    d_model = 32
    n_head = 2
    d_k = d_v = 16
    d_inner = 64
    n_layers = 2
    d_classifier = 64
    num_class = 3
    n_position = 200

    key = jax.random.PRNGKey(0)
    k1, k2, kp = jax.random.split(key, 3)
    # embedded=True: inputs are already embedded token sequences [B, S, d_model]
    w1 = jax.random.normal(k1, (B, S, d_model), F32)
    w2 = jax.random.normal(k2, (B, S, d_model), F32)

    params = init_params(kp, d_model, n_head, d_k, d_v, d_inner, n_layers,
                         d_classifier, num_class)
    pos_table = jnp.asarray(sinusoid_table(n_position, d_model))

    fwd = jax.jit(functools.partial(transformer_sentence_forward,
                                    num_class=num_class))
    out = jax.block_until_ready(fwd(w1, w2, params, pos_table))
    assert out.shape == (B, num_class) and out.dtype == F32
    assert bool(jnp.all(jnp.isfinite(out)))

    # correctness check vs pure-JAX reference (loose tol: approx reciprocal)
    ref = reference_forward(w1, w2, params, pos_table, num_class=num_class)
    max_err = float(jnp.max(jnp.abs(out - ref)))
    assert max_err < 5e-2, f"kernel/reference mismatch: max_err={max_err}"

    print("KERNEL_OK")
</pallas_src>

<mosaic_0001>
module attributes {stable_mosaic.version = 11 : i64} {
  func.func @_model_kernel(%arg0: i32, %arg1: memref<1x2x8x32xf32, #tpu.memory_space<vmem>>, %arg2: memref<8x32xf32, #tpu.memory_space<vmem>>, %arg3: memref<1x32xf32, #tpu.memory_space<vmem>>, %arg4: memref<1x32xf32, #tpu.memory_space<vmem>>, %arg5: memref<2x2x32x16xf32, #tpu.memory_space<vmem>>, %arg6: memref<2x2x1x16xf32, #tpu.memory_space<vmem>>, %arg7: memref<2x2x32x16xf32, #tpu.memory_space<vmem>>, %arg8: memref<2x2x1x16xf32, #tpu.memory_space<vmem>>, %arg9: memref<2x2x32x16xf32, #tpu.memory_space<vmem>>, %arg10: memref<2x2x1x16xf32, #tpu.memory_space<vmem>>, %arg11: memref<2x2x16x32xf32, #tpu.memory_space<vmem>>, %arg12: memref<2x1x32xf32, #tpu.memory_space<vmem>>, %arg13: memref<2x1x32xf32, #tpu.memory_space<vmem>>, %arg14: memref<2x1x32xf32, #tpu.memory_space<vmem>>, %arg15: memref<2x32x64xf32, #tpu.memory_space<vmem>>, %arg16: memref<2x1x64xf32, #tpu.memory_space<vmem>>, %arg17: memref<2x64x32xf32, #tpu.memory_space<vmem>>, %arg18: memref<2x1x32xf32, #tpu.memory_space<vmem>>, %arg19: memref<2x1x32xf32, #tpu.memory_space<vmem>>, %arg20: memref<2x1x32xf32, #tpu.memory_space<vmem>>, %arg21: memref<32x64xf32, #tpu.memory_space<vmem>>, %arg22: memref<32x64xf32, #tpu.memory_space<vmem>>, %arg23: memref<32x64xf32, #tpu.memory_space<vmem>>, %arg24: memref<1x64xf32, #tpu.memory_space<vmem>>, %arg25: memref<64x128xf32, #tpu.memory_space<vmem>>, %arg26: memref<1x128xf32, #tpu.memory_space<vmem>>, %arg27: memref<1x1x128xf32, #tpu.memory_space<vmem>>) attributes {dimension_semantics = [#tpu.dimension_semantics<parallel>], iteration_bounds = array<i64: 2>, scalar_prefetch = 0 : i64, scratch_operands = 0 : i64, tpu.core_type = #tpu.core_type<tc>, window_params = [{transform_indices = @transform_0, window_bounds = array<i64: 1, 2, 8, 32>}, {pipeline_mode = #tpu.pipeline_mode<synchronous>, transform_indices = @transform_1, window_bounds = array<i64: 8, 32>}, {pipeline_mode = #tpu.pipeline_mode<synchronous>, transform_indices = @transform_2, window_bounds = array<i64: 1, 32>}, {pipeline_mode = #tpu.pipeline_mode<synchronous>, transform_indices = @transform_3, window_bounds = array<i64: 1, 32>}, {pipeline_mode = #tpu.pipeline_mode<synchronous>, transform_indices = @transform_4, window_bounds = array<i64: 2, 2, 32, 16>}, {pipeline_mode = #tpu.pipeline_mode<synchronous>, transform_indices = @transform_5, window_bounds = array<i64: 2, 2, 1, 16>}, {pipeline_mode = #tpu.pipeline_mode<synchronous>, transform_indices = @transform_6, window_bounds = array<i64: 2, 2, 32, 16>}, {pipeline_mode = #tpu.pipeline_mode<synchronous>, transform_indices = @transform_7, window_bounds = array<i64: 2, 2, 1, 16>}, {pipeline_mode = #tpu.pipeline_mode<synchronous>, transform_indices = @transform_8, window_bounds = array<i64: 2, 2, 32, 16>}, {pipeline_mode = #tpu.pipeline_mode<synchronous>, transform_indices = @transform_9, window_bounds = array<i64: 2, 2, 1, 16>}, {pipeline_mode = #tpu.pipeline_mode<synchronous>, transform_indices = @transform_10, window_bounds = array<i64: 2, 2, 16, 32>}, {pipeline_mode = #tpu.pipeline_mode<synchronous>, transform_indices = @transform_11, window_bounds = array<i64: 2, 1, 32>}, {pipeline_mode = #tpu.pipeline_mode<synchronous>, transform_indices = @transform_12, window_bounds = array<i64: 2, 1, 32>}, {pipeline_mode = #tpu.pipeline_mode<synchronous>, transform_indices = @transform_13, window_bounds = array<i64: 2, 1, 32>}, {pipeline_mode = #tpu.pipeline_mode<synchronous>, transform_indices = @transform_14, window_bounds = array<i64: 2, 32, 64>}, {pipeline_mode = #tpu.pipeline_mode<synchronous>, transform_indices = @transform_15, window_bounds = array<i64: 2, 1, 64>}, {pipeline_mode = #tpu.pipeline_mode<synchronous>, transform_indices = @transform_16, window_bounds = array<i64: 2, 64, 32>}, {pipeline_mode = #tpu.pipeline_mode<synchronous>, transform_indices = @transform_17, window_bounds = array<i64: 2, 1, 32>}, {pipeline_mode = #tpu.pipeline_mode<synchronous>, transform_indices = @transform_18, window_bounds = array<i64: 2, 1, 32>}, {pipeline_mode = #tpu.pipeline_mode<synchronous>, transform_indices = @transform_19, window_bounds = array<i64: 2, 1, 32>}, {pipeline_mode = #tpu.pipeline_mode<synchronous>, transform_indices = @transform_20, window_bounds = array<i64: 32, 64>}, {pipeline_mode = #tpu.pipeline_mode<synchronous>, transform_indices = @transform_21, window_bounds = array<i64: 32, 64>}, {pipeline_mode = #tpu.pipeline_mode<synchronous>, transform_indices = @transform_22, window_bounds = array<i64: 32, 64>}, {pipeline_mode = #tpu.pipeline_mode<synchronous>, transform_indices = @transform_23, window_bounds = array<i64: 1, 64>}, {pipeline_mode = #tpu.pipeline_mode<synchronous>, transform_indices = @transform_24, window_bounds = array<i64: 64, 128>}, {pipeline_mode = #tpu.pipeline_mode<synchronous>, transform_indices = @transform_25, window_bounds = array<i64: 1, 128>}, {transform_indices = @transform_26, window_bounds = array<i64: 1, 1, 128>}]} {
    %c0 = arith.constant 0 : index
    %c0_0 = arith.constant 0 : index
    %c0_1 = arith.constant 0 : index
    %c0_2 = arith.constant 0 : index
    %0 = vector.load %arg1[%c0, %c0_0, %c0_1, %c0_2] : memref<1x2x8x32xf32, #tpu.memory_space<vmem>>, vector<1x2x8x32xf32>
    %1 = vector.shape_cast %0 : vector<1x2x8x32xf32> to vector<2x8x32xf32>
    %cst = arith.constant 2.000000e+00 : f32
    %2 = vector.broadcast %cst : f32 to vector<2x8x32xf32>
    %3 = arith.mulf %2, %1 : vector<2x8x32xf32>
    %c0_3 = arith.constant 0 : index
    %c0_4 = arith.constant 0 : index
    %4 = vector.load %arg2[%c0_3, %c0_4] : memref<8x32xf32, #tpu.memory_space<vmem>>, vector<8x32xf32>
    %5 = vector.shape_cast %4 : vector<8x32xf32> to vector<1x8x32xf32>
    %6 = vector.broadcast %5 : vector<1x8x32xf32> to vector<2x8x32xf32>
    %7 = arith.addf %3, %6 : vector<2x8x32xf32>
    %8 = vector.shape_cast %7 : vector<2x8x32xf32> to vector<16x32xf32>
    %c0_5 = arith.constant 0 : index
    %c0_6 = arith.constant 0 : index
    %9 = vector.load %arg3[%c0_5, %c0_6] : memref<1x32xf32, #tpu.memory_space<vmem>>, vector<1x32xf32>
    %c0_7 = arith.constant 0 : index
    %c0_8 = arith.constant 0 : index
    %10 = vector.load %arg4[%c0_7, %c0_8] : memref<1x32xf32, #tpu.memory_space<vmem>>, vector<1x32xf32>
    %cst_9 = arith.constant dense<0.000000e+00> : vector<16xf32>
    %11 = vector.multi_reduction <add>, %8, %cst_9 [1] : vector<16x32xf32> to vector<16xf32>
    %12 = vector.shape_cast %11 : vector<16xf32> to vector<16x1xf32>
    %cst_10 = arith.constant 3.200000e+01 : f32
    %13 = vector.broadcast %cst_10 : f32 to vector<16x1xf32>
    %14 = arith.divf %12, %13 : vector<16x1xf32>
    %15 = vector.broadcast %14 : vector<16x1xf32> to vector<16x32xf32>
    %16 = arith.subf %8, %15 : vector<16x32xf32>
    %17 = arith.mulf %16, %16 : vector<16x32xf32>
    %cst_11 = arith.constant dense<0.000000e+00> : vector<16xf32>
    %18 = vector.multi_reduction <add>, %17, %cst_11 [1] : vector<16x32xf32> to vector<16xf32>
    %19 = vector.shape_cast %18 : vector<16xf32> to vector<16x1xf32>
    %cst_12 = arith.constant 3.200000e+01 : f32
    %20 = vector.broadcast %cst_12 : f32 to vector<16x1xf32>
    %21 = arith.divf %19, %20 : vector<16x1xf32>
    %22 = vector.broadcast %14 : vector<16x1xf32> to vector<16x32xf32>
    %23 = arith.subf %8, %22 : vector<16x32xf32>
    %cst_13 = arith.constant 9.99999996E-13 : f32
    %24 = vector.broadcast %cst_13 : f32 to vector<16x1xf32>
    %25 = arith.addf %21, %24 : vector<16x1xf32>
    %26 = math.rsqrt %25 : vector<16x1xf32>
    %27 = vector.broadcast %26 : vector<16x1xf32> to vector<16x32xf32>
    %28 = arith.mulf %23, %27 : vector<16x32xf32>
    %29 = vector.broadcast %9 : vector<1x32xf32> to vector<16x32xf32>
    %30 = arith.mulf %28, %29 : vector<16x32xf32>
    %31 = vector.broadcast %10 : vector<1x32xf32> to vector<16x32xf32>
    %32 = arith.addf %30, %31 : vector<16x32xf32>
    %cst_14 = arith.constant 0.000000e+00 : f32
    %33 = vector.broadcast %cst_14 : f32 to vector<16x32xf32>
    %c0_15 = arith.constant 0 : index
    %c0_16 = arith.constant 0 : index
    %c0_17 = arith.constant 0 : index
    %c0_18 = arith.constant 0 : index
    %34 = vector.load %arg5[%c0_15, %c0_16, %c0_17, %c0_18] : memref<2x2x32x16xf32, #tpu.memory_space<vmem>>, vector<1x1x32x16xf32>
    %35 = vector.shape_cast %34 : vector<1x1x32x16xf32> to vector<32x16xf32>
    %cst_19 = arith.constant dense<0.000000e+00> : vector<16x16xf32>
    %36 = tpu.matmul %32, %35, %cst_19 {dimension_numbers = #tpu.dot_dimension_numbers<[1], [0], [0], [1], [0, 0, 1, 1], [], []>} : vector<16x32xf32>, vector<32x16xf32>, vector<16x16xf32> -> vector<16x16xf32>
    %c0_20 = arith.constant 0 : index
    %c0_21 = arith.constant 0 : index
    %c0_22 = arith.constant 0 : index
    %c0_23 = arith.constant 0 : index
    %37 = vector.load %arg6[%c0_20, %c0_21, %c0_22, %c0_23] : memref<2x2x1x16xf32, #tpu.memory_space<vmem>>, vector<1x1x1x16xf32>
    %38 = vector.shape_cast %37 : vector<1x1x1x16xf32> to vector<1x16xf32>
    %39 = vector.broadcast %38 : vector<1x16xf32> to vector<16x16xf32>
    %40 = arith.addf %36, %39 : vector<16x16xf32>
    %41 = vector.shape_cast %40 : vector<16x16xf32> to vector<2x8x16xf32>
    %c0_24 = arith.constant 0 : index
    %c0_25 = arith.constant 0 : index
    %c0_26 = arith.constant 0 : index
    %c0_27 = arith.constant 0 : index
    %42 = vector.load %arg7[%c0_24, %c0_25, %c0_26, %c0_27] : memref<2x2x32x16xf32, #tpu.memory_space<vmem>>, vector<1x1x32x16xf32>
    %43 = vector.shape_cast %42 : vector<1x1x32x16xf32> to vector<32x16xf32>
    %cst_28 = arith.constant dense<0.000000e+00> : vector<16x16xf32>
    %44 = tpu.matmul %32, %43, %cst_28 {dimension_numbers = #tpu.dot_dimension_numbers<[1], [0], [0], [1], [0, 0, 1, 1], [], []>} : vector<16x32xf32>, vector<32x16xf32>, vector<16x16xf32> -> vector<16x16xf32>
    %c0_29 = arith.constant 0 : index
    %c0_30 = arith.constant 0 : index
    %c0_31 = arith.constant 0 : index
    %c0_32 = arith.constant 0 : index
    %45 = vector.load %arg8[%c0_29, %c0_30, %c0_31, %c0_32] : memref<2x2x1x16xf32, #tpu.memory_space<vmem>>, vector<1x1x1x16xf32>
    %46 = vector.shape_cast %45 : vector<1x1x1x16xf32> to vector<1x16xf32>
    %47 = vector.broadcast %46 : vector<1x16xf32> to vector<16x16xf32>
    %48 = arith.addf %44, %47 : vector<16x16xf32>
    %49 = vector.shape_cast %48 : vector<16x16xf32> to vector<2x8x16xf32>
    %c0_33 = arith.constant 0 : index
    %c0_34 = arith.constant 0 : index
    %c0_35 = arith.constant 0 : index
    %c0_36 = arith.constant 0 : index
    %50 = vector.load %arg9[%c0_33, %c0_34, %c0_35, %c0_36] : memref<2x2x32x16xf32, #tpu.memory_space<vmem>>, vector<1x1x32x16xf32>
    %51 = vector.shape_cast %50 : vector<1x1x32x16xf32> to vector<32x16xf32>
    %cst_37 = arith.constant dense<0.000000e+00> : vector<16x16xf32>
    %52 = tpu.matmul %32, %51, %cst_37 {dimension_numbers = #tpu.dot_dimension_numbers<[1], [0], [0], [1], [0, 0, 1, 1], [], []>} : vector<16x32xf32>, vector<32x16xf32>, vector<16x16xf32> -> vector<16x16xf32>
    %c0_38 = arith.constant 0 : index
    %c0_39 = arith.constant 0 : index
    %c0_40 = arith.constant 0 : index
    %c0_41 = arith.constant 0 : index
    %53 = vector.load %arg10[%c0_38, %c0_39, %c0_40, %c0_41] : memref<2x2x1x16xf32, #tpu.memory_space<vmem>>, vector<1x1x1x16xf32>
    %54 = vector.shape_cast %53 : vector<1x1x1x16xf32> to vector<1x16xf32>
    %55 = vector.broadcast %54 : vector<1x16xf32> to vector<16x16xf32>
    %56 = arith.addf %52, %55 : vector<16x16xf32>
    %57 = vector.shape_cast %56 : vector<16x16xf32> to vector<2x8x16xf32>
    "tpu.trace_start"() <{level = 10 : i32, message = "bqd,bkd->bqk"}> : () -> ()
    %cst_42 = arith.constant dense<0.000000e+00> : vector<2x8x8xf32>
    %58 = tpu.matmul %41, %49, %cst_42 {dimension_numbers = #tpu.dot_dimension_numbers<[2], [2], [1], [1], [0, 0, 0, 1, 1, 1], [0], [0]>} : vector<2x8x16xf32>, vector<2x8x16xf32>, vector<2x8x8xf32> -> vector<2x8x8xf32>
    "tpu.trace_stop"() : () -> ()
    %cst_43 = arith.constant 2.500000e-01 : f32
    %59 = vector.broadcast %cst_43 : f32 to vector<2x8x8xf32>
    %60 = arith.mulf %58, %59 : vector<2x8x8xf32>
    %cst_44 = arith.constant dense<0xFF800000> : vector<2x8xf32>
    %61 = vector.multi_reduction <maximumf>, %60, %cst_44 [2] : vector<2x8x8xf32> to vector<2x8xf32>
    %62 = vector.shape_cast %61 : vector<2x8xf32> to vector<2x8x1xf32>
    %63 = vector.broadcast %62 : vector<2x8x1xf32> to vector<2x8x8xf32>
    %64 = arith.subf %60, %63 : vector<2x8x8xf32>
    %65 = math.exp %64 : vector<2x8x8xf32>
    %cst_45 = arith.constant dense<0.000000e+00> : vector<2x8xf32>
    %66 = vector.multi_reduction <add>, %65, %cst_45 [2] : vector<2x8x8xf32> to vector<2x8xf32>
    %67 = vector.shape_cast %66 : vector<2x8xf32> to vector<2x8x1xf32>
    %68 = tpu.reciprocal %67 {approx = true} : vector<2x8x1xf32> -> vector<2x8x1xf32>
    %69 = vector.broadcast %68 : vector<2x8x1xf32> to vector<2x8x8xf32>
    %70 = arith.mulf %65, %69 : vector<2x8x8xf32>
    "tpu.trace_start"() <{level = 10 : i32, message = "bqk,bkd->bqd"}> : () -> ()
    %cst_46 = arith.constant dense<0.000000e+00> : vector<2x8x16xf32>
    %71 = tpu.matmul %70, %57, %cst_46 {dimension_numbers = #tpu.dot_dimension_numbers<[2], [1], [1], [2], [0, 0, 0, 1, 1, 2], [0], [0]>} : vector<2x8x8xf32>, vector<2x8x16xf32>, vector<2x8x16xf32> -> vector<2x8x16xf32>
    "tpu.trace_stop"() : () -> ()
    %72 = vector.shape_cast %71 : vector<2x8x16xf32> to vector<16x16xf32>
    %c0_47 = arith.constant 0 : index
    %c0_48 = arith.constant 0 : index
    %c0_49 = arith.constant 0 : index
    %c0_50 = arith.constant 0 : index
    %73 = vector.load %arg11[%c0_47, %c0_48, %c0_49, %c0_50] : memref<2x2x16x32xf32, #tpu.memory_space<vmem>>, vector<1x1x16x32xf32>
    %74 = vector.shape_cast %73 : vector<1x1x16x32xf32> to vector<16x32xf32>
    %cst_51 = arith.constant dense<0.000000e+00> : vector<16x32xf32>
    %75 = tpu.matmul %72, %74, %cst_51 {dimension_numbers = #tpu.dot_dimension_numbers<[1], [0], [0], [1], [0, 0, 1, 1], [], []>} : vector<16x16xf32>, vector<16x32xf32>, vector<16x32xf32> -> vector<16x32xf32>
    %76 = arith.addf %33, %75 : vector<16x32xf32>
    %c0_52 = arith.constant 0 : index
    %c1 = arith.constant 1 : index
    %c0_53 = arith.constant 0 : index
    %c0_54 = arith.constant 0 : index
    %77 = vector.load %arg5[%c0_52, %c1, %c0_53, %c0_54] : memref<2x2x32x16xf32, #tpu.memory_space<vmem>>, vector<1x1x32x16xf32>
    %78 = vector.shape_cast %77 : vector<1x1x32x16xf32> to vector<32x16xf32>
    %cst_55 = arith.constant dense<0.000000e+00> : vector<16x16xf32>
    %79 = tpu.matmul %32, %78, %cst_55 {dimension_numbers = #tpu.dot_dimension_numbers<[1], [0], [0], [1], [0, 0, 1, 1], [], []>} : vector<16x32xf32>, vector<32x16xf32>, vector<16x16xf32> -> vector<16x16xf32>
    %c0_56 = arith.constant 0 : index
    %c1_57 = arith.constant 1 : index
    %c0_58 = arith.constant 0 : index
    %c0_59 = arith.constant 0 : index
    %80 = vector.load %arg6[%c0_56, %c1_57, %c0_58, %c0_59] : memref<2x2x1x16xf32, #tpu.memory_space<vmem>>, vector<1x1x1x16xf32>
    %81 = vector.shape_cast %80 : vector<1x1x1x16xf32> to vector<1x16xf32>
    %82 = vector.broadcast %81 : vector<1x16xf32> to vector<16x16xf32>
    %83 = arith.addf %79, %82 : vector<16x16xf32>
    %84 = vector.shape_cast %83 : vector<16x16xf32> to vector<2x8x16xf32>
    %c0_60 = arith.constant 0 : index
    %c1_61 = arith.constant 1 : index
    %c0_62 = arith.constant 0 : index
    %c0_63 = arith.constant 0 : index
    %85 = vector.load %arg7[%c0_60, %c1_61, %c0_62, %c0_63] : memref<2x2x32x16xf32, #tpu.memory_space<vmem>>, vector<1x1x32x16xf32>
    %86 = vector.shape_cast %85 : vector<1x1x32x16xf32> to vector<32x16xf32>
    %cst_64 = arith.constant dense<0.000000e+00> : vector<16x16xf32>
    %87 = tpu.matmul %32, %86, %cst_64 {dimension_numbers = #tpu.dot_dimension_numbers<[1], [0], [0], [1], [0, 0, 1, 1], [], []>} : vector<16x32xf32>, vector<32x16xf32>, vector<16x16xf32> -> vector<16x16xf32>
    %c0_65 = arith.constant 0 : index
    %c1_66 = arith.constant 1 : index
    %c0_67 = arith.constant 0 : index
    %c0_68 = arith.constant 0 : index
    %88 = vector.load %arg8[%c0_65, %c1_66, %c0_67, %c0_68] : memref<2x2x1x16xf32, #tpu.memory_space<vmem>>, vector<1x1x1x16xf32>
    %89 = vector.shape_cast %88 : vector<1x1x1x16xf32> to vector<1x16xf32>
    %90 = vector.broadcast %89 : vector<1x16xf32> to vector<16x16xf32>
    %91 = arith.addf %87, %90 : vector<16x16xf32>
    %92 = vector.shape_cast %91 : vector<16x16xf32> to vector<2x8x16xf32>
    %c0_69 = arith.constant 0 : index
    %c1_70 = arith.constant 1 : index
    %c0_71 = arith.constant 0 : index
    %c0_72 = arith.constant 0 : index
    %93 = vector.load %arg9[%c0_69, %c1_70, %c0_71, %c0_72] : memref<2x2x32x16xf32, #tpu.memory_space<vmem>>, vector<1x1x32x16xf32>
    %94 = vector.shape_cast %93 : vector<1x1x32x16xf32> to vector<32x16xf32>
    %cst_73 = arith.constant dense<0.000000e+00> : vector<16x16xf32>
    %95 = tpu.matmul %32, %94, %cst_73 {dimension_numbers = #tpu.dot_dimension_numbers<[1], [0], [0], [1], [0, 0, 1, 1], [], []>} : vector<16x32xf32>, vector<32x16xf32>, vector<16x16xf32> -> vector<16x16xf32>
    %c0_74 = arith.constant 0 : index
    %c1_75 = arith.constant 1 : index
    %c0_76 = arith.constant 0 : index
    %c0_77 = arith.constant 0 : index
    %96 = vector.load %arg10[%c0_74, %c1_75, %c0_76, %c0_77] : memref<2x2x1x16xf32, #tpu.memory_space<vmem>>, vector<1x1x1x16xf32>
    %97 = vector.shape_cast %96 : vector<1x1x1x16xf32> to vector<1x16xf32>
    %98 = vector.broadcast %97 : vector<1x16xf32> to vector<16x16xf32>
    %99 = arith.addf %95, %98 : vector<16x16xf32>
    %100 = vector.shape_cast %99 : vector<16x16xf32> to vector<2x8x16xf32>
    "tpu.trace_start"() <{level = 10 : i32, message = "bqd,bkd->bqk"}> : () -> ()
    %cst_78 = arith.constant dense<0.000000e+00> : vector<2x8x8xf32>
    %101 = tpu.matmul %84, %92, %cst_78 {dimension_numbers = #tpu.dot_dimension_numbers<[2], [2], [1], [1], [0, 0, 0, 1, 1, 1], [0], [0]>} : vector<2x8x16xf32>, vector<2x8x16xf32>, vector<2x8x8xf32> -> vector<2x8x8xf32>
    "tpu.trace_stop"() : () -> ()
    %cst_79 = arith.constant 2.500000e-01 : f32
    %102 = vector.broadcast %cst_79 : f32 to vector<2x8x8xf32>
    %103 = arith.mulf %101, %102 : vector<2x8x8xf32>
    %cst_80 = arith.constant dense<0xFF800000> : vector<2x8xf32>
    %104 = vector.multi_reduction <maximumf>, %103, %cst_80 [2] : vector<2x8x8xf32> to vector<2x8xf32>
    %105 = vector.shape_cast %104 : vector<2x8xf32> to vector<2x8x1xf32>
    %106 = vector.broadcast %105 : vector<2x8x1xf32> to vector<2x8x8xf32>
    %107 = arith.subf %103, %106 : vector<2x8x8xf32>
    %108 = math.exp %107 : vector<2x8x8xf32>
    %cst_81 = arith.constant dense<0.000000e+00> : vector<2x8xf32>
    %109 = vector.multi_reduction <add>, %108, %cst_81 [2] : vector<2x8x8xf32> to vector<2x8xf32>
    %110 = vector.shape_cast %109 : vector<2x8xf32> to vector<2x8x1xf32>
    %111 = tpu.reciprocal %110 {approx = true} : vector<2x8x1xf32> -> vector<2x8x1xf32>
    %112 = vector.broadcast %111 : vector<2x8x1xf32> to vector<2x8x8xf32>
    %113 = arith.mulf %108, %112 : vector<2x8x8xf32>
    "tpu.trace_start"() <{level = 10 : i32, message = "bqk,bkd->bqd"}> : () -> ()
    %cst_82 = arith.constant dense<0.000000e+00> : vector<2x8x16xf32>
    %114 = tpu.matmul %113, %100, %cst_82 {dimension_numbers = #tpu.dot_dimension_numbers<[2], [1], [1], [2], [0, 0, 0, 1, 1, 2], [0], [0]>} : vector<2x8x8xf32>, vector<2x8x16xf32>, vector<2x8x16xf32> -> vector<2x8x16xf32>
    "tpu.trace_stop"() : () -> ()
    %115 = vector.shape_cast %114 : vector<2x8x16xf32> to vector<16x16xf32>
    %c0_83 = arith.constant 0 : index
    %c1_84 = arith.constant 1 : index
    %c0_85 = arith.constant 0 : index
    %c0_86 = arith.constant 0 : index
    %116 = vector.load %arg11[%c0_83, %c1_84, %c0_85, %c0_86] : memref<2x2x16x32xf32, #tpu.memory_space<vmem>>, vector<1x1x16x32xf32>
    %117 = vector.shape_cast %116 : vector<1x1x16x32xf32> to vector<16x32xf32>
    %cst_87 = arith.constant dense<0.000000e+00> : vector<16x32xf32>
    %118 = tpu.matmul %115, %117, %cst_87 {dimension_numbers = #tpu.dot_dimension_numbers<[1], [0], [0], [1], [0, 0, 1, 1], [], []>} : vector<16x16xf32>, vector<16x32xf32>, vector<16x32xf32> -> vector<16x32xf32>
    %119 = arith.addf %76, %118 : vector<16x32xf32>
    %c0_88 = arith.constant 0 : index
    %c0_89 = arith.constant 0 : index
    %c0_90 = arith.constant 0 : index
    %120 = vector.load %arg12[%c0_88, %c0_89, %c0_90] : memref<2x1x32xf32, #tpu.memory_space<vmem>>, vector<1x1x32xf32>
    %121 = vector.shape_cast %120 : vector<1x1x32xf32> to vector<1x32xf32>
    %122 = vector.broadcast %121 : vector<1x32xf32> to vector<16x32xf32>
    %123 = arith.addf %119, %122 : vector<16x32xf32>
    %124 = arith.addf %123, %32 : vector<16x32xf32>
    %c0_91 = arith.constant 0 : index
    %c0_92 = arith.constant 0 : index
    %c0_93 = arith.constant 0 : index
    %125 = vector.load %arg13[%c0_91, %c0_92, %c0_93] : memref<2x1x32xf32, #tpu.memory_space<vmem>>, vector<1x1x32xf32>
    %126 = vector.shape_cast %125 : vector<1x1x32xf32> to vector<1x32xf32>
    %c0_94 = arith.constant 0 : index
    %c0_95 = arith.constant 0 : index
    %c0_96 = arith.constant 0 : index
    %127 = vector.load %arg14[%c0_94, %c0_95, %c0_96] : memref<2x1x32xf32, #tpu.memory_space<vmem>>, vector<1x1x32xf32>
    %128 = vector.shape_cast %127 : vector<1x1x32xf32> to vector<1x32xf32>
    %cst_97 = arith.constant dense<0.000000e+00> : vector<16xf32>
    %129 = vector.multi_reduction <add>, %124, %cst_97 [1] : vector<16x32xf32> to vector<16xf32>
    %130 = vector.shape_cast %129 : vector<16xf32> to vector<16x1xf32>
    %cst_98 = arith.constant 3.200000e+01 : f32
    %131 = vector.broadcast %cst_98 : f32 to vector<16x1xf32>
    %132 = arith.divf %130, %131 : vector<16x1xf32>
    %133 = vector.broadcast %132 : vector<16x1xf32> to vector<16x32xf32>
    %134 = arith.subf %124, %133 : vector<16x32xf32>
    %135 = arith.mulf %134, %134 : vector<16x32xf32>
    %cst_99 = arith.constant dense<0.000000e+00> : vector<16xf32>
    %136 = vector.multi_reduction <add>, %135, %cst_99 [1] : vector<16x32xf32> to vector<16xf32>
    %137 = vector.shape_cast %136 : vector<16xf32> to vector<16x1xf32>
    %cst_100 = arith.constant 3.200000e+01 : f32
    %138 = vector.broadcast %cst_100 : f32 to vector<16x1xf32>
    %139 = arith.divf %137, %138 : vector<16x1xf32>
    %140 = vector.broadcast %132 : vector<16x1xf32> to vector<16x32xf32>
    %141 = arith.subf %124, %140 : vector<16x32xf32>
    %cst_101 = arith.constant 9.99999997E-7 : f32
    %142 = vector.broadcast %cst_101 : f32 to vector<16x1xf32>
    %143 = arith.addf %139, %142 : vector<16x1xf32>
    %144 = math.rsqrt %143 : vector<16x1xf32>
    %145 = vector.broadcast %144 : vector<16x1xf32> to vector<16x32xf32>
    %146 = arith.mulf %141, %145 : vector<16x32xf32>
    %147 = vector.broadcast %126 : vector<1x32xf32> to vector<16x32xf32>
    %148 = arith.mulf %146, %147 : vector<16x32xf32>
    %149 = vector.broadcast %128 : vector<1x32xf32> to vector<16x32xf32>
    %150 = arith.addf %148, %149 : vector<16x32xf32>
    %c0_102 = arith.constant 0 : index
    %c0_103 = arith.constant 0 : index
    %c0_104 = arith.constant 0 : index
    %151 = vector.load %arg15[%c0_102, %c0_103, %c0_104] : memref<2x32x64xf32, #tpu.memory_space<vmem>>, vector<1x32x64xf32>
    %152 = vector.shape_cast %151 : vector<1x32x64xf32> to vector<32x64xf32>
    %cst_105 = arith.constant dense<0.000000e+00> : vector<16x64xf32>
    %153 = tpu.matmul %150, %152, %cst_105 {dimension_numbers = #tpu.dot_dimension_numbers<[1], [0], [0], [1], [0, 0, 1, 1], [], []>} : vector<16x32xf32>, vector<32x64xf32>, vector<16x64xf32> -> vector<16x64xf32>
    %c0_106 = arith.constant 0 : index
    %c0_107 = arith.constant 0 : index
    %c0_108 = arith.constant 0 : index
    %154 = vector.load %arg16[%c0_106, %c0_107, %c0_108] : memref<2x1x64xf32, #tpu.memory_space<vmem>>, vector<1x1x64xf32>
    %155 = vector.shape_cast %154 : vector<1x1x64xf32> to vector<1x64xf32>
    %156 = vector.broadcast %155 : vector<1x64xf32> to vector<16x64xf32>
    %157 = arith.addf %153, %156 : vector<16x64xf32>
    %cst_109 = arith.constant 0.000000e+00 : f32
    %158 = vector.broadcast %cst_109 : f32 to vector<16x64xf32>
    %159 = arith.maximumf %157, %158 : vector<16x64xf32>
    %c0_110 = arith.constant 0 : index
    %c0_111 = arith.constant 0 : index
    %c0_112 = arith.constant 0 : index
    %160 = vector.load %arg17[%c0_110, %c0_111, %c0_112] : memref<2x64x32xf32, #tpu.memory_space<vmem>>, vector<1x64x32xf32>
    %161 = vector.shape_cast %160 : vector<1x64x32xf32> to vector<64x32xf32>
    %cst_113 = arith.constant dense<0.000000e+00> : vector<16x32xf32>
    %162 = tpu.matmul %159, %161, %cst_113 {dimension_numbers = #tpu.dot_dimension_numbers<[1], [0], [0], [1], [0, 0, 1, 1], [], []>} : vector<16x64xf32>, vector<64x32xf32>, vector<16x32xf32> -> vector<16x32xf32>
    %c0_114 = arith.constant 0 : index
    %c0_115 = arith.constant 0 : index
    %c0_116 = arith.constant 0 : index
    %163 = vector.load %arg18[%c0_114, %c0_115, %c0_116] : memref<2x1x32xf32, #tpu.memory_space<vmem>>, vector<1x1x32xf32>
    %164 = vector.shape_cast %163 : vector<1x1x32xf32> to vector<1x32xf32>
    %165 = vector.broadcast %164 : vector<1x32xf32> to vector<16x32xf32>
    %166 = arith.addf %162, %165 : vector<16x32xf32>
    %167 = arith.addf %166, %150 : vector<16x32xf32>
    %c0_117 = arith.constant 0 : index
    %c0_118 = arith.constant 0 : index
    %c0_119 = arith.constant 0 : index
    %168 = vector.load %arg19[%c0_117, %c0_118, %c0_119] : memref<2x1x32xf32, #tpu.memory_space<vmem>>, vector<1x1x32xf32>
    %169 = vector.shape_cast %168 : vector<1x1x32xf32> to vector<1x32xf32>
    %c0_120 = arith.constant 0 : index
    %c0_121 = arith.constant 0 : index
    %c0_122 = arith.constant 0 : index
    %170 = vector.load %arg20[%c0_120, %c0_121, %c0_122] : memref<2x1x32xf32, #tpu.memory_space<vmem>>, vector<1x1x32xf32>
    %171 = vector.shape_cast %170 : vector<1x1x32xf32> to vector<1x32xf32>
    %cst_123 = arith.constant dense<0.000000e+00> : vector<16xf32>
    %172 = vector.multi_reduction <add>, %167, %cst_123 [1] : vector<16x32xf32> to vector<16xf32>
    %173 = vector.shape_cast %172 : vector<16xf32> to vector<16x1xf32>
    %cst_124 = arith.constant 3.200000e+01 : f32
    %174 = vector.broadcast %cst_124 : f32 to vector<16x1xf32>
    %175 = arith.divf %173, %174 : vector<16x1xf32>
    %176 = vector.broadcast %175 : vector<16x1xf32> to vector<16x32xf32>
    %177 = arith.subf %167, %176 : vector<16x32xf32>
    %178 = arith.mulf %177, %177 : vector<16x32xf32>
    %cst_125 = arith.constant dense<0.000000e+00> : vector<16xf32>
    %179 = vector.multi_reduction <add>, %178, %cst_125 [1] : vector<16x32xf32> to vector<16xf32>
    %180 = vector.shape_cast %179 : vector<16xf32> to vector<16x1xf32>
    %cst_126 = arith.constant 3.200000e+01 : f32
    %181 = vector.broadcast %cst_126 : f32 to vector<16x1xf32>
    %182 = arith.divf %180, %181 : vector<16x1xf32>
    %183 = vector.broadcast %175 : vector<16x1xf32> to vector<16x32xf32>
    %184 = arith.subf %167, %183 : vector<16x32xf32>
    %cst_127 = arith.constant 9.99999997E-7 : f32
    %185 = vector.broadcast %cst_127 : f32 to vector<16x1xf32>
    %186 = arith.addf %182, %185 : vector<16x1xf32>
    %187 = math.rsqrt %186 : vector<16x1xf32>
    %188 = vector.broadcast %187 : vector<16x1xf32> to vector<16x32xf32>
    %189 = arith.mulf %184, %188 : vector<16x32xf32>
    %190 = vector.broadcast %169 : vector<1x32xf32> to vector<16x32xf32>
    %191 = arith.mulf %189, %190 : vector<16x32xf32>
    %192 = vector.broadcast %171 : vector<1x32xf32> to vector<16x32xf32>
    %193 = arith.addf %191, %192 : vector<16x32xf32>
    %cst_128 = arith.constant 0.000000e+00 : f32
    %194 = vector.broadcast %cst_128 : f32 to vector<16x32xf32>
    %c1_129 = arith.constant 1 : index
    %c0_130 = arith.constant 0 : index
    %c0_131 = arith.constant 0 : index
    %c0_132 = arith.constant 0 : index
    %195 = vector.load %arg5[%c1_129, %c0_130, %c0_131, %c0_132] : memref<2x2x32x16xf32, #tpu.memory_space<vmem>>, vector<1x1x32x16xf32>
    %196 = vector.shape_cast %195 : vector<1x1x32x16xf32> to vector<32x16xf32>
    %cst_133 = arith.constant dense<0.000000e+00> : vector<16x16xf32>
    %197 = tpu.matmul %193, %196, %cst_133 {dimension_numbers = #tpu.dot_dimension_numbers<[1], [0], [0], [1], [0, 0, 1, 1], [], []>} : vector<16x32xf32>, vector<32x16xf32>, vector<16x16xf32> -> vector<16x16xf32>
    %c1_134 = arith.constant 1 : index
    %c0_135 = arith.constant 0 : index
    %c0_136 = arith.constant 0 : index
    %c0_137 = arith.constant 0 : index
    %198 = vector.load %arg6[%c1_134, %c0_135, %c0_136, %c0_137] : memref<2x2x1x16xf32, #tpu.memory_space<vmem>>, vector<1x1x1x16xf32>
    %199 = vector.shape_cast %198 : vector<1x1x1x16xf32> to vector<1x16xf32>
    %200 = vector.broadcast %199 : vector<1x16xf32> to vector<16x16xf32>
    %201 = arith.addf %197, %200 : vector<16x16xf32>
    %202 = vector.shape_cast %201 : vector<16x16xf32> to vector<2x8x16xf32>
    %c1_138 = arith.constant 1 : index
    %c0_139 = arith.constant 0 : index
    %c0_140 = arith.constant 0 : index
    %c0_141 = arith.constant 0 : index
    %203 = vector.load %arg7[%c1_138, %c0_139, %c0_140, %c0_141] : memref<2x2x32x16xf32, #tpu.memory_space<vmem>>, vector<1x1x32x16xf32>
    %204 = vector.shape_cast %203 : vector<1x1x32x16xf32> to vector<32x16xf32>
    %cst_142 = arith.constant dense<0.000000e+00> : vector<16x16xf32>
    %205 = tpu.matmul %193, %204, %cst_142 {dimension_numbers = #tpu.dot_dimension_numbers<[1], [0], [0], [1], [0, 0, 1, 1], [], []>} : vector<16x32xf32>, vector<32x16xf32>, vector<16x16xf32> -> vector<16x16xf32>
    %c1_143 = arith.constant 1 : index
    %c0_144 = arith.constant 0 : index
    %c0_145 = arith.constant 0 : index
    %c0_146 = arith.constant 0 : index
    %206 = vector.load %arg8[%c1_143, %c0_144, %c0_145, %c0_146] : memref<2x2x1x16xf32, #tpu.memory_space<vmem>>, vector<1x1x1x16xf32>
    %207 = vector.shape_cast %206 : vector<1x1x1x16xf32> to vector<1x16xf32>
    %208 = vector.broadcast %207 : vector<1x16xf32> to vector<16x16xf32>
    %209 = arith.addf %205, %208 : vector<16x16xf32>
    %210 = vector.shape_cast %209 : vector<16x16xf32> to vector<2x8x16xf32>
    %c1_147 = arith.constant 1 : index
    %c0_148 = arith.constant 0 : index
    %c0_149 = arith.constant 0 : index
    %c0_150 = arith.constant 0 : index
    %211 = vector.load %arg9[%c1_147, %c0_148, %c0_149, %c0_150] : memref<2x2x32x16xf32, #tpu.memory_space<vmem>>, vector<1x1x32x16xf32>
    %212 = vector.shape_cast %211 : vector<1x1x32x16xf32> to vector<32x16xf32>
    %cst_151 = arith.constant dense<0.000000e+00> : vector<16x16xf32>
    %213 = tpu.matmul %193, %212, %cst_151 {dimension_numbers = #tpu.dot_dimension_numbers<[1], [0], [0], [1], [0, 0, 1, 1], [], []>} : vector<16x32xf32>, vector<32x16xf32>, vector<16x16xf32> -> vector<16x16xf32>
    %c1_152 = arith.constant 1 : index
    %c0_153 = arith.constant 0 : index
    %c0_154 = arith.constant 0 : index
    %c0_155 = arith.constant 0 : index
    %214 = vector.load %arg10[%c1_152, %c0_153, %c0_154, %c0_155] : memref<2x2x1x16xf32, #tpu.memory_space<vmem>>, vector<1x1x1x16xf32>
    %215 = vector.shape_cast %214 : vector<1x1x1x16xf32> to vector<1x16xf32>
    %216 = vector.broadcast %215 : vector<1x16xf32> to vector<16x16xf32>
    %217 = arith.addf %213, %216 : vector<16x16xf32>
    %218 = vector.shape_cast %217 : vector<16x16xf32> to vector<2x8x16xf32>
    "tpu.trace_start"() <{level = 10 : i32, message = "bqd,bkd->bqk"}> : () -> ()
    %cst_156 = arith.constant dense<0.000000e+00> : vector<2x8x8xf32>
    %219 = tpu.matmul %202, %210, %cst_156 {dimension_numbers = #tpu.dot_dimension_numbers<[2], [2], [1], [1], [0, 0, 0, 1, 1, 1], [0], [0]>} : vector<2x8x16xf32>, vector<2x8x16xf32>, vector<2x8x8xf32> -> vector<2x8x8xf32>
    "tpu.trace_stop"() : () -> ()
    %cst_157 = arith.constant 2.500000e-01 : f32
    %220 = vector.broadcast %cst_157 : f32 to vector<2x8x8xf32>
    %221 = arith.mulf %219, %220 : vector<2x8x8xf32>
    %cst_158 = arith.constant dense<0xFF800000> : vector<2x8xf32>
    %222 = vector.multi_reduction <maximumf>, %221, %cst_158 [2] : vector<2x8x8xf32> to vector<2x8xf32>
    %223 = vector.shape_cast %222 : vector<2x8xf32> to vector<2x8x1xf32>
    %224 = vector.broadcast %223 : vector<2x8x1xf32> to vector<2x8x8xf32>
    %225 = arith.subf %221, %224 : vector<2x8x8xf32>
    %226 = math.exp %225 : vector<2x8x8xf32>
    %cst_159 = arith.constant dense<0.000000e+00> : vector<2x8xf32>
    %227 = vector.multi_reduction <add>, %226, %cst_159 [2] : vector<2x8x8xf32> to vector<2x8xf32>
    %228 = vector.shape_cast %227 : vector<2x8xf32> to vector<2x8x1xf32>
    %229 = tpu.reciprocal %228 {approx = true} : vector<2x8x1xf32> -> vector<2x8x1xf32>
    %230 = vector.broadcast %229 : vector<2x8x1xf32> to vector<2x8x8xf32>
    %231 = arith.mulf %226, %230 : vector<2x8x8xf32>
    "tpu.trace_start"() <{level = 10 : i32, message = "bqk,bkd->bqd"}> : () -> ()
    %cst_160 = arith.constant dense<0.000000e+00> : vector<2x8x16xf32>
    %232 = tpu.matmul %231, %218, %cst_160 {dimension_numbers = #tpu.dot_dimension_numbers<[2], [1], [1], [2], [0, 0, 0, 1, 1, 2], [0], [0]>} : vector<2x8x8xf32>, vector<2x8x16xf32>, vector<2x8x16xf32> -> vector<2x8x16xf32>
    "tpu.trace_stop"() : () -> ()
    %233 = vector.shape_cast %232 : vector<2x8x16xf32> to vector<16x16xf32>
    %c1_161 = arith.constant 1 : index
    %c0_162 = arith.constant 0 : index
    %c0_163 = arith.constant 0 : index
    %c0_164 = arith.constant 0 : index
    %234 = vector.load %arg11[%c1_161, %c0_162, %c0_163, %c0_164] : memref<2x2x16x32xf32, #tpu.memory_space<vmem>>, vector<1x1x16x32xf32>
    %235 = vector.shape_cast %234 : vector<1x1x16x32xf32> to vector<16x32xf32>
    %cst_165 = arith.constant dense<0.000000e+00> : vector<16x32xf32>
    %236 = tpu.matmul %233, %235, %cst_165 {dimension_numbers = #tpu.dot_dimension_numbers<[1], [0], [0], [1], [0, 0, 1, 1], [], []>} : vector<16x16xf32>, vector<16x32xf32>, vector<16x32xf32> -> vector<16x32xf32>
    %237 = arith.addf %194, %236 : vector<16x32xf32>
    %c1_166 = arith.constant 1 : index
    %c1_167 = arith.constant 1 : index
    %c0_168 = arith.constant 0 : index
    %c0_169 = arith.constant 0 : index
    %238 = vector.load %arg5[%c1_166, %c1_167, %c0_168, %c0_169] : memref<2x2x32x16xf32, #tpu.memory_space<vmem>>, vector<1x1x32x16xf32>
    %239 = vector.shape_cast %238 : vector<1x1x32x16xf32> to vector<32x16xf32>
    %cst_170 = arith.constant dense<0.000000e+00> : vector<16x16xf32>
    %240 = tpu.matmul %193, %239, %cst_170 {dimension_numbers = #tpu.dot_dimension_numbers<[1], [0], [0], [1], [0, 0, 1, 1], [], []>} : vector<16x32xf32>, vector<32x16xf32>, vector<16x16xf32> -> vector<16x16xf32>
    %c1_171 = arith.constant 1 : index
    %c1_172 = arith.constant 1 : index
    %c0_173 = arith.constant 0 : index
    %c0_174 = arith.constant 0 : index
    %241 = vector.load %arg6[%c1_171, %c1_172, %c0_173, %c0_174] : memref<2x2x1x16xf32, #tpu.memory_space<vmem>>, vector<1x1x1x16xf32>
    %242 = vector.shape_cast %241 : vector<1x1x1x16xf32> to vector<1x16xf32>
    %243 = vector.broadcast %242 : vector<1x16xf32> to vector<16x16xf32>
    %244 = arith.addf %240, %243 : vector<16x16xf32>
    %245 = vector.shape_cast %244 : vector<16x16xf32> to vector<2x8x16xf32>
    %c1_175 = arith.constant 1 : index
    %c1_176 = arith.constant 1 : index
    %c0_177 = arith.constant 0 : index
    %c0_178 = arith.constant 0 : index
    %246 = vector.load %arg7[%c1_175, %c1_176, %c0_177, %c0_178] : memref<2x2x32x16xf32, #tpu.memory_space<vmem>>, vector<1x1x32x16xf32>
    %247 = vector.shape_cast %246 : vector<1x1x32x16xf32> to vector<32x16xf32>
    %cst_179 = arith.constant dense<0.000000e+00> : vector<16x16xf32>
    %248 = tpu.matmul %193, %247, %cst_179 {dimension_numbers = #tpu.dot_dimension_numbers<[1], [0], [0], [1], [0, 0, 1, 1], [], []>} : vector<16x32xf32>, vector<32x16xf32>, vector<16x16xf32> -> vector<16x16xf32>
    %c1_180 = arith.constant 1 : index
    %c1_181 = arith.constant 1 : index
    %c0_182 = arith.constant 0 : index
    %c0_183 = arith.constant 0 : index
    %249 = vector.load %arg8[%c1_180, %c1_181, %c0_182, %c0_183] : memref<2x2x1x16xf32, #tpu.memory_space<vmem>>, vector<1x1x1x16xf32>
    %250 = vector.shape_cast %249 : vector<1x1x1x16xf32> to vector<1x16xf32>
    %251 = vector.broadcast %250 : vector<1x16xf32> to vector<16x16xf32>
    %252 = arith.addf %248, %251 : vector<16x16xf32>
    %253 = vector.shape_cast %252 : vector<16x16xf32> to vector<2x8x16xf32>
    %c1_184 = arith.constant 1 : index
    %c1_185 = arith.constant 1 : index
    %c0_186 = arith.constant 0 : index
    %c0_187 = arith.constant 0 : index
    %254 = vector.load %arg9[%c1_184, %c1_185, %c0_186, %c0_187] : memref<2x2x32x16xf32, #tpu.memory_space<vmem>>, vector<1x1x32x16xf32>
    %255 = vector.shape_cast %254 : vector<1x1x32x16xf32> to vector<32x16xf32>
    %cst_188 = arith.constant dense<0.000000e+00> : vector<16x16xf32>
    %256 = tpu.matmul %193, %255, %cst_188 {dimension_numbers = #tpu.dot_dimension_numbers<[1], [0], [0], [1], [0, 0, 1, 1], [], []>} : vector<16x32xf32>, vector<32x16xf32>, vector<16x16xf32> -> vector<16x16xf32>
    %c1_189 = arith.constant 1 : index
    %c1_190 = arith.constant 1 : index
    %c0_191 = arith.constant 0 : index
    %c0_192 = arith.constant 0 : index
    %257 = vector.load %arg10[%c1_189, %c1_190, %c0_191, %c0_192] : memref<2x2x1x16xf32, #tpu.memory_space<vmem>>, vector<1x1x1x16xf32>
    %258 = vector.shape_cast %257 : vector<1x1x1x16xf32> to vector<1x16xf32>
    %259 = vector.broadcast %258 : vector<1x16xf32> to vector<16x16xf32>
    %260 = arith.addf %256, %259 : vector<16x16xf32>
    %261 = vector.shape_cast %260 : vector<16x16xf32> to vector<2x8x16xf32>
    "tpu.trace_start"() <{level = 10 : i32, message = "bqd,bkd->bqk"}> : () -> ()
    %cst_193 = arith.constant dense<0.000000e+00> : vector<2x8x8xf32>
    %262 = tpu.matmul %245, %253, %cst_193 {dimension_numbers = #tpu.dot_dimension_numbers<[2], [2], [1], [1], [0, 0, 0, 1, 1, 1], [0], [0]>} : vector<2x8x16xf32>, vector<2x8x16xf32>, vector<2x8x8xf32> -> vector<2x8x8xf32>
    "tpu.trace_stop"() : () -> ()
    %cst_194 = arith.constant 2.500000e-01 : f32
    %263 = vector.broadcast %cst_194 : f32 to vector<2x8x8xf32>
    %264 = arith.mulf %262, %263 : vector<2x8x8xf32>
    %cst_195 = arith.constant dense<0xFF800000> : vector<2x8xf32>
    %265 = vector.multi_reduction <maximumf>, %264, %cst_195 [2] : vector<2x8x8xf32> to vector<2x8xf32>
    %266 = vector.shape_cast %265 : vector<2x8xf32> to vector<2x8x1xf32>
    %267 = vector.broadcast %266 : vector<2x8x1xf32> to vector<2x8x8xf32>
    %268 = arith.subf %264, %267 : vector<2x8x8xf32>
    %269 = math.exp %268 : vector<2x8x8xf32>
    %cst_196 = arith.constant dense<0.000000e+00> : vector<2x8xf32>
    %270 = vector.multi_reduction <add>, %269, %cst_196 [2] : vector<2x8x8xf32> to vector<2x8xf32>
    %271 = vector.shape_cast %270 : vector<2x8xf32> to vector<2x8x1xf32>
    %272 = tpu.reciprocal %271 {approx = true} : vector<2x8x1xf32> -> vector<2x8x1xf32>
    %273 = vector.broadcast %272 : vector<2x8x1xf32> to vector<2x8x8xf32>
    %274 = arith.mulf %269, %273 : vector<2x8x8xf32>
    "tpu.trace_start"() <{level = 10 : i32, message = "bqk,bkd->bqd"}> : () -> ()
    %cst_197 = arith.constant dense<0.000000e+00> : vector<2x8x16xf32>
    %275 = tpu.matmul %274, %261, %cst_197 {dimension_numbers = #tpu.dot_dimension_numbers<[2], [1], [1], [2], [0, 0, 0, 1, 1, 2], [0], [0]>} : vector<2x8x8xf32>, vector<2x8x16xf32>, vector<2x8x16xf32> -> vector<2x8x16xf32>
    "tpu.trace_stop"() : () -> ()
    %276 = vector.shape_cast %275 : vector<2x8x16xf32> to vector<16x16xf32>
    %c1_198 = arith.constant 1 : index
    %c1_199 = arith.constant 1 : index
    %c0_200 = arith.constant 0 : index
    %c0_201 = arith.constant 0 : index
    %277 = vector.load %arg11[%c1_198, %c1_199, %c0_200, %c0_201] : memref<2x2x16x32xf32, #tpu.memory_space<vmem>>, vector<1x1x16x32xf32>
    %278 = vector.shape_cast %277 : vector<1x1x16x32xf32> to vector<16x32xf32>
    %cst_202 = arith.constant dense<0.000000e+00> : vector<16x32xf32>
    %279 = tpu.matmul %276, %278, %cst_202 {dimension_numbers = #tpu.dot_dimension_numbers<[1], [0], [0], [1], [0, 0, 1, 1], [], []>} : vector<16x16xf32>, vector<16x32xf32>, vector<16x32xf32> -> vector<16x32xf32>
    %280 = arith.addf %237, %279 : vector<16x32xf32>
    %c1_203 = arith.constant 1 : index
    %c0_204 = arith.constant 0 : index
    %c0_205 = arith.constant 0 : index
    %281 = vector.load %arg12[%c1_203, %c0_204, %c0_205] : memref<2x1x32xf32, #tpu.memory_space<vmem>>, vector<1x1x32xf32>
    %282 = vector.shape_cast %281 : vector<1x1x32xf32> to vector<1x32xf32>
    %283 = vector.broadcast %282 : vector<1x32xf32> to vector<16x32xf32>
    %284 = arith.addf %280, %283 : vector<16x32xf32>
    %285 = arith.addf %284, %193 : vector<16x32xf32>
    %c1_206 = arith.constant 1 : index
    %c0_207 = arith.constant 0 : index
    %c0_208 = arith.constant 0 : index
    %286 = vector.load %arg13[%c1_206, %c0_207, %c0_208] : memref<2x1x32xf32, #tpu.memory_space<vmem>>, vector<1x1x32xf32>
    %287 = vector.shape_cast %286 : vector<1x1x32xf32> to vector<1x32xf32>
    %c1_209 = arith.constant 1 : index
    %c0_210 = arith.constant 0 : index
    %c0_211 = arith.constant 0 : index
    %288 = vector.load %arg14[%c1_209, %c0_210, %c0_211] : memref<2x1x32xf32, #tpu.memory_space<vmem>>, vector<1x1x32xf32>
    %289 = vector.shape_cast %288 : vector<1x1x32xf32> to vector<1x32xf32>
    %cst_212 = arith.constant dense<0.000000e+00> : vector<16xf32>
    %290 = vector.multi_reduction <add>, %285, %cst_212 [1] : vector<16x32xf32> to vector<16xf32>
    %291 = vector.shape_cast %290 : vector<16xf32> to vector<16x1xf32>
    %cst_213 = arith.constant 3.200000e+01 : f32
    %292 = vector.broadcast %cst_213 : f32 to vector<16x1xf32>
    %293 = arith.divf %291, %292 : vector<16x1xf32>
    %294 = vector.broadcast %293 : vector<16x1xf32> to vector<16x32xf32>
    %295 = arith.subf %285, %294 : vector<16x32xf32>
    %296 = arith.mulf %295, %295 : vector<16x32xf32>
    %cst_214 = arith.constant dense<0.000000e+00> : vector<16xf32>
    %297 = vector.multi_reduction <add>, %296, %cst_214 [1] : vector<16x32xf32> to vector<16xf32>
    %298 = vector.shape_cast %297 : vector<16xf32> to vector<16x1xf32>
    %cst_215 = arith.constant 3.200000e+01 : f32
    %299 = vector.broadcast %cst_215 : f32 to vector<16x1xf32>
    %300 = arith.divf %298, %299 : vector<16x1xf32>
    %301 = vector.broadcast %293 : vector<16x1xf32> to vector<16x32xf32>
    %302 = arith.subf %285, %301 : vector<16x32xf32>
    %cst_216 = arith.constant 9.99999997E-7 : f32
    %303 = vector.broadcast %cst_216 : f32 to vector<16x1xf32>
    %304 = arith.addf %300, %303 : vector<16x1xf32>
    %305 = math.rsqrt %304 : vector<16x1xf32>
    %306 = vector.broadcast %305 : vector<16x1xf32> to vector<16x32xf32>
    %307 = arith.mulf %302, %306 : vector<16x32xf32>
    %308 = vector.broadcast %287 : vector<1x32xf32> to vector<16x32xf32>
    %309 = arith.mulf %307, %308 : vector<16x32xf32>
    %310 = vector.broadcast %289 : vector<1x32xf32> to vector<16x32xf32>
    %311 = arith.addf %309, %310 : vector<16x32xf32>
    %c1_217 = arith.constant 1 : index
    %c0_218 = arith.constant 0 : index
    %c0_219 = arith.constant 0 : index
    %312 = vector.load %arg15[%c1_217, %c0_218, %c0_219] : memref<2x32x64xf32, #tpu.memory_space<vmem>>, vector<1x32x64xf32>
    %313 = vector.shape_cast %312 : vector<1x32x64xf32> to vector<32x64xf32>
    %cst_220 = arith.constant dense<0.000000e+00> : vector<16x64xf32>
    %314 = tpu.matmul %311, %313, %cst_220 {dimension_numbers = #tpu.dot_dimension_numbers<[1], [0], [0], [1], [0, 0, 1, 1], [], []>} : vector<16x32xf32>, vector<32x64xf32>, vector<16x64xf32> -> vector<16x64xf32>
    %c1_221 = arith.constant 1 : index
    %c0_222 = arith.constant 0 : index
    %c0_223 = arith.constant 0 : index
    %315 = vector.load %arg16[%c1_221, %c0_222, %c0_223] : memref<2x1x64xf32, #tpu.memory_space<vmem>>, vector<1x1x64xf32>
    %316 = vector.shape_cast %315 : vector<1x1x64xf32> to vector<1x64xf32>
    %317 = vector.broadcast %316 : vector<1x64xf32> to vector<16x64xf32>
    %318 = arith.addf %314, %317 : vector<16x64xf32>
    %cst_224 = arith.constant 0.000000e+00 : f32
    %319 = vector.broadcast %cst_224 : f32 to vector<16x64xf32>
    %320 = arith.maximumf %318, %319 : vector<16x64xf32>
    %c1_225 = arith.constant 1 : index
    %c0_226 = arith.constant 0 : index
    %c0_227 = arith.constant 0 : index
    %321 = vector.load %arg17[%c1_225, %c0_226, %c0_227] : memref<2x64x32xf32, #tpu.memory_space<vmem>>, vector<1x64x32xf32>
    %322 = vector.shape_cast %321 : vector<1x64x32xf32> to vector<64x32xf32>
    %cst_228 = arith.constant dense<0.000000e+00> : vector<16x32xf32>
    %323 = tpu.matmul %320, %322, %cst_228 {dimension_numbers = #tpu.dot_dimension_numbers<[1], [0], [0], [1], [0, 0, 1, 1], [], []>} : vector<16x64xf32>, vector<64x32xf32>, vector<16x32xf32> -> vector<16x32xf32>
    %c1_229 = arith.constant 1 : index
    %c0_230 = arith.constant 0 : index
    %c0_231 = arith.constant 0 : index
    %324 = vector.load %arg18[%c1_229, %c0_230, %c0_231] : memref<2x1x32xf32, #tpu.memory_space<vmem>>, vector<1x1x32xf32>
    %325 = vector.shape_cast %324 : vector<1x1x32xf32> to vector<1x32xf32>
    %326 = vector.broadcast %325 : vector<1x32xf32> to vector<16x32xf32>
    %327 = arith.addf %323, %326 : vector<16x32xf32>
    %328 = arith.addf %327, %311 : vector<16x32xf32>
    %c1_232 = arith.constant 1 : index
    %c0_233 = arith.constant 0 : index
    %c0_234 = arith.constant 0 : index
    %329 = vector.load %arg19[%c1_232, %c0_233, %c0_234] : memref<2x1x32xf32, #tpu.memory_space<vmem>>, vector<1x1x32xf32>
    %330 = vector.shape_cast %329 : vector<1x1x32xf32> to vector<1x32xf32>
    %c1_235 = arith.constant 1 : index
    %c0_236 = arith.constant 0 : index
    %c0_237 = arith.constant 0 : index
    %331 = vector.load %arg20[%c1_235, %c0_236, %c0_237] : memref<2x1x32xf32, #tpu.memory_space<vmem>>, vector<1x1x32xf32>
    %332 = vector.shape_cast %331 : vector<1x1x32xf32> to vector<1x32xf32>
    %cst_238 = arith.constant dense<0.000000e+00> : vector<16xf32>
    %333 = vector.multi_reduction <add>, %328, %cst_238 [1] : vector<16x32xf32> to vector<16xf32>
    %334 = vector.shape_cast %333 : vector<16xf32> to vector<16x1xf32>
    %cst_239 = arith.constant 3.200000e+01 : f32
    %335 = vector.broadcast %cst_239 : f32 to vector<16x1xf32>
    %336 = arith.divf %334, %335 : vector<16x1xf32>
    %337 = vector.broadcast %336 : vector<16x1xf32> to vector<16x32xf32>
    %338 = arith.subf %328, %337 : vector<16x32xf32>
    %339 = arith.mulf %338, %338 : vector<16x32xf32>
    %cst_240 = arith.constant dense<0.000000e+00> : vector<16xf32>
    %340 = vector.multi_reduction <add>, %339, %cst_240 [1] : vector<16x32xf32> to vector<16xf32>
    %341 = vector.shape_cast %340 : vector<16xf32> to vector<16x1xf32>
    %cst_241 = arith.constant 3.200000e+01 : f32
    %342 = vector.broadcast %cst_241 : f32 to vector<16x1xf32>
    %343 = arith.divf %341, %342 : vector<16x1xf32>
    %344 = vector.broadcast %336 : vector<16x1xf32> to vector<16x32xf32>
    %345 = arith.subf %328, %344 : vector<16x32xf32>
    %cst_242 = arith.constant 9.99999997E-7 : f32
    %346 = vector.broadcast %cst_242 : f32 to vector<16x1xf32>
    %347 = arith.addf %343, %346 : vector<16x1xf32>
    %348 = math.rsqrt %347 : vector<16x1xf32>
    %349 = vector.broadcast %348 : vector<16x1xf32> to vector<16x32xf32>
    %350 = arith.mulf %345, %349 : vector<16x32xf32>
    %351 = vector.broadcast %330 : vector<1x32xf32> to vector<16x32xf32>
    %352 = arith.mulf %350, %351 : vector<16x32xf32>
    %353 = vector.broadcast %332 : vector<1x32xf32> to vector<16x32xf32>
    %354 = arith.addf %352, %353 : vector<16x32xf32>
    %355 = vector.extract_strided_slice %354 {offsets = [0, 0], sizes = [1, 32], strides = [1, 1]} : vector<16x32xf32> to vector<1x32xf32>
    %356 = vector.extract_strided_slice %354 {offsets = [8, 0], sizes = [1, 32], strides = [1, 1]} : vector<16x32xf32> to vector<1x32xf32>
    %c0_243 = arith.constant 0 : index
    %c0_244 = arith.constant 0 : index
    %357 = vector.load %arg21[%c0_243, %c0_244] : memref<32x64xf32, #tpu.memory_space<vmem>>, vector<32x64xf32>
    %cst_245 = arith.constant dense<0.000000e+00> : vector<1x64xf32>
    %358 = tpu.matmul %355, %357, %cst_245 {dimension_numbers = #tpu.dot_dimension_numbers<[1], [0], [0], [1], [0, 0, 1, 1], [], []>} : vector<1x32xf32>, vector<32x64xf32>, vector<1x64xf32> -> vector<1x64xf32>
    %c0_246 = arith.constant 0 : index
    %c0_247 = arith.constant 0 : index
    %359 = vector.load %arg22[%c0_246, %c0_247] : memref<32x64xf32, #tpu.memory_space<vmem>>, vector<32x64xf32>
    %cst_248 = arith.constant dense<0.000000e+00> : vector<1x64xf32>
    %360 = tpu.matmul %356, %359, %cst_248 {dimension_numbers = #tpu.dot_dimension_numbers<[1], [0], [0], [1], [0, 0, 1, 1], [], []>} : vector<1x32xf32>, vector<32x64xf32>, vector<1x64xf32> -> vector<1x64xf32>
    %361 = arith.addf %358, %360 : vector<1x64xf32>
    %362 = arith.subf %355, %356 : vector<1x32xf32>
    %363 = math.absf %362 : vector<1x32xf32>
    %c0_249 = arith.constant 0 : index
    %c0_250 = arith.constant 0 : index
    %364 = vector.load %arg23[%c0_249, %c0_250] : memref<32x64xf32, #tpu.memory_space<vmem>>, vector<32x64xf32>
    %cst_251 = arith.constant dense<0.000000e+00> : vector<1x64xf32>
    %365 = tpu.matmul %363, %364, %cst_251 {dimension_numbers = #tpu.dot_dimension_numbers<[1], [0], [0], [1], [0, 0, 1, 1], [], []>} : vector<1x32xf32>, vector<32x64xf32>, vector<1x64xf32> -> vector<1x64xf32>
    %366 = arith.addf %361, %365 : vector<1x64xf32>
    %c0_252 = arith.constant 0 : index
    %c0_253 = arith.constant 0 : index
    %367 = vector.load %arg24[%c0_252, %c0_253] : memref<1x64xf32, #tpu.memory_space<vmem>>, vector<1x64xf32>
    %368 = arith.addf %366, %367 : vector<1x64xf32>
    %369 = math.tanh %368 : vector<1x64xf32>
    %c0_254 = arith.constant 0 : index
    %c0_255 = arith.constant 0 : index
    %370 = vector.load %arg25[%c0_254, %c0_255] : memref<64x128xf32, #tpu.memory_space<vmem>>, vector<64x128xf32>
    %cst_256 = arith.constant dense<0.000000e+00> : vector<1x128xf32>
    %371 = tpu.matmul %369, %370, %cst_256 {dimension_numbers = #tpu.dot_dimension_numbers<[1], [0], [0], [1], [0, 0, 1, 1], [], []>} : vector<1x64xf32>, vector<64x128xf32>, vector<1x128xf32> -> vector<1x128xf32>
    %c0_257 = arith.constant 0 : index
    %c0_258 = arith.constant 0 : index
    %372 = vector.load %arg26[%c0_257, %c0_258] : memref<1x128xf32, #tpu.memory_space<vmem>>, vector<1x128xf32>
    %373 = arith.addf %371, %372 : vector<1x128xf32>
    %c0_259 = arith.constant 0 : index
    %c0_260 = arith.constant 0 : index
    %c0_261 = arith.constant 0 : index
    %374 = vector.load %arg27[%c0_259, %c0_260, %c0_261] : memref<1x1x128xf32, #tpu.memory_space<vmem>>, vector<1x1x128xf32>
    %375 = vector.shape_cast %374 : vector<1x1x128xf32> to vector<1x128xf32>
    %376 = vector.shape_cast %373 : vector<1x128xf32> to vector<1x1x128xf32>
    tpu.vector_store %arg27[%c0_259, %c0_260, %c0_261], %376 {strides = array<i32>} : memref<1x1x128xf32, #tpu.memory_space<vmem>>, vector<1x1x128xf32>,
    return
  }
  func.func @transform_0(%arg0: i32) -> (i32, i32, i32, i32) {
    %c0_i32 = arith.constant 0 : i32
    %c0_i32_0 = arith.constant 0 : i32
    %c0_i32_1 = arith.constant 0 : i32
    %c0_i32_2 = arith.constant 0 : i32
    return %arg0, %c0_i32, %c0_i32_0, %c0_i32_1 : i32, i32, i32, i32
  }
  func.func @transform_1(%arg0: i32) -> (i32, i32) {
    %c0_i32 = arith.constant 0 : i32
    %c0_i32_0 = arith.constant 0 : i32
    %c0_i32_1 = arith.constant 0 : i32
    return %c0_i32, %c0_i32_0 : i32, i32
  }
  func.func @transform_2(%arg0: i32) -> (i32, i32) {
    %c0_i32 = arith.constant 0 : i32
    %c0_i32_0 = arith.constant 0 : i32
    %c0_i32_1 = arith.constant 0 : i32
    return %c0_i32, %c0_i32_0 : i32, i32
  }
  func.func @transform_3(%arg0: i32) -> (i32, i32) {
    %c0_i32 = arith.constant 0 : i32
    %c0_i32_0 = arith.constant 0 : i32
    %c0_i32_1 = arith.constant 0 : i32
    return %c0_i32, %c0_i32_0 : i32, i32
  }
  func.func @transform_4(%arg0: i32) -> (i32, i32, i32, i32) {
    %c0_i32 = arith.constant 0 : i32
    %c0_i32_0 = arith.constant 0 : i32
    %c0_i32_1 = arith.constant 0 : i32
    %c0_i32_2 = arith.constant 0 : i32
    %c0_i32_3 = arith.constant 0 : i32
    return %c0_i32, %c0_i32_0, %c0_i32_1, %c0_i32_2 : i32, i32, i32, i32
  }
  func.func @transform_5(%arg0: i32) -> (i32, i32, i32, i32) {
    %c0_i32 = arith.constant 0 : i32
    %c0_i32_0 = arith.constant 0 : i32
    %c0_i32_1 = arith.constant 0 : i32
    %c0_i32_2 = arith.constant 0 : i32
    %c0_i32_3 = arith.constant 0 : i32
    return %c0_i32, %c0_i32_0, %c0_i32_1, %c0_i32_2 : i32, i32, i32, i32
  }
  func.func @transform_6(%arg0: i32) -> (i32, i32, i32, i32) {
    %c0_i32 = arith.constant 0 : i32
    %c0_i32_0 = arith.constant 0 : i32
    %c0_i32_1 = arith.constant 0 : i32
    %c0_i32_2 = arith.constant 0 : i32
    %c0_i32_3 = arith.constant 0 : i32
    return %c0_i32, %c0_i32_0, %c0_i32_1, %c0_i32_2 : i32, i32, i32, i32
  }
  func.func @transform_7(%arg0: i32) -> (i32, i32, i32, i32) {
    %c0_i32 = arith.constant 0 : i32
    %c0_i32_0 = arith.constant 0 : i32
    %c0_i32_1 = arith.constant 0 : i32
    %c0_i32_2 = arith.constant 0 : i32
    %c0_i32_3 = arith.constant 0 : i32
    return %c0_i32, %c0_i32_0, %c0_i32_1, %c0_i32_2 : i32, i32, i32, i32
  }
  func.func @transform_8(%arg0: i32) -> (i32, i32, i32, i32) {
    %c0_i32 = arith.constant 0 : i32
    %c0_i32_0 = arith.constant 0 : i32
    %c0_i32_1 = arith.constant 0 : i32
    %c0_i32_2 = arith.constant 0 : i32
    %c0_i32_3 = arith.constant 0 : i32
    return %c0_i32, %c0_i32_0, %c0_i32_1, %c0_i32_2 : i32, i32, i32, i32
  }
  func.func @transform_9(%arg0: i32) -> (i32, i32, i32, i32) {
    %c0_i32 = arith.constant 0 : i32
    %c0_i32_0 = arith.constant 0 : i32
    %c0_i32_1 = arith.constant 0 : i32
    %c0_i32_2 = arith.constant 0 : i32
    %c0_i32_3 = arith.constant 0 : i32
    return %c0_i32, %c0_i32_0, %c0_i32_1, %c0_i32_2 : i32, i32, i32, i32
  }
  func.func @transform_10(%arg0: i32) -> (i32, i32, i32, i32) {
    %c0_i32 = arith.constant 0 : i32
    %c0_i32_0 = arith.constant 0 : i32
    %c0_i32_1 = arith.constant 0 : i32
    %c0_i32_2 = arith.constant 0 : i32
    %c0_i32_3 = arith.constant 0 : i32
    return %c0_i32, %c0_i32_0, %c0_i32_1, %c0_i32_2 : i32, i32, i32, i32
  }
  func.func @transform_11(%arg0: i32) -> (i32, i32, i32) {
    %c0_i32 = arith.constant 0 : i32
    %c0_i32_0 = arith.constant 0 : i32
    %c0_i32_1 = arith.constant 0 : i32
    %c0_i32_2 = arith.constant 0 : i32
    return %c0_i32, %c0_i32_0, %c0_i32_1 : i32, i32, i32
  }
  func.func @transform_12(%arg0: i32) -> (i32, i32, i32) {
    %c0_i32 = arith.constant 0 : i32
    %c0_i32_0 = arith.constant 0 : i32
    %c0_i32_1 = arith.constant 0 : i32
    %c0_i32_2 = arith.constant 0 : i32
    return %c0_i32, %c0_i32_0, %c0_i32_1 : i32, i32, i32
  }
  func.func @transform_13(%arg0: i32) -> (i32, i32, i32) {
    %c0_i32 = arith.constant 0 : i32
    %c0_i32_0 = arith.constant 0 : i32
    %c0_i32_1 = arith.constant 0 : i32
    %c0_i32_2 = arith.constant 0 : i32
    return %c0_i32, %c0_i32_0, %c0_i32_1 : i32, i32, i32
  }
  func.func @transform_14(%arg0: i32) -> (i32, i32, i32) {
    %c0_i32 = arith.constant 0 : i32
    %c0_i32_0 = arith.constant 0 : i32
    %c0_i32_1 = arith.constant 0 : i32
    %c0_i32_2 = arith.constant 0 : i32
    return %c0_i32, %c0_i32_0, %c0_i32_1 : i32, i32, i32
  }
  func.func @transform_15(%arg0: i32) -> (i32, i32, i32) {
    %c0_i32 = arith.constant 0 : i32
    %c0_i32_0 = arith.constant 0 : i32
    %c0_i32_1 = arith.constant 0 : i32
    %c0_i32_2 = arith.constant 0 : i32
    return %c0_i32, %c0_i32_0, %c0_i32_1 : i32, i32, i32
  }
  func.func @transform_16(%arg0: i32) -> (i32, i32, i32) {
    %c0_i32 = arith.constant 0 : i32
    %c0_i32_0 = arith.constant 0 : i32
    %c0_i32_1 = arith.constant 0 : i32
    %c0_i32_2 = arith.constant 0 : i32
    return %c0_i32, %c0_i32_0, %c0_i32_1 : i32, i32, i32
  }
  func.func @transform_17(%arg0: i32) -> (i32, i32, i32) {
    %c0_i32 = arith.constant 0 : i32
    %c0_i32_0 = arith.constant 0 : i32
    %c0_i32_1 = arith.constant 0 : i32
    %c0_i32_2 = arith.constant 0 : i32
    return %c0_i32, %c0_i32_0, %c0_i32_1 : i32, i32, i32
  }
  func.func @transform_18(%arg0: i32) -> (i32, i32, i32) {
    %c0_i32 = arith.constant 0 : i32
    %c0_i32_0 = arith.constant 0 : i32
    %c0_i32_1 = arith.constant 0 : i32
    %c0_i32_2 = arith.constant 0 : i32
    return %c0_i32, %c0_i32_0, %c0_i32_1 : i32, i32, i32
  }
  func.func @transform_19(%arg0: i32) -> (i32, i32, i32) {
    %c0_i32 = arith.constant 0 : i32
    %c0_i32_0 = arith.constant 0 : i32
    %c0_i32_1 = arith.constant 0 : i32
    %c0_i32_2 = arith.constant 0 : i32
    return %c0_i32, %c0_i32_0, %c0_i32_1 : i32, i32, i32
  }
  func.func @transform_20(%arg0: i32) -> (i32, i32) {
    %c0_i32 = arith.constant 0 : i32
    %c0_i32_0 = arith.constant 0 : i32
    %c0_i32_1 = arith.constant 0 : i32
    return %c0_i32, %c0_i32_0 : i32, i32
  }
  func.func @transform_21(%arg0: i32) -> (i32, i32) {
    %c0_i32 = arith.constant 0 : i32
    %c0_i32_0 = arith.constant 0 : i32
    %c0_i32_1 = arith.constant 0 : i32
    return %c0_i32, %c0_i32_0 : i32, i32
  }
  func.func @transform_22(%arg0: i32) -> (i32, i32) {
    %c0_i32 = arith.constant 0 : i32
    %c0_i32_0 = arith.constant 0 : i32
    %c0_i32_1 = arith.constant 0 : i32
    return %c0_i32, %c0_i32_0 : i32, i32
  }
  func.func @transform_23(%arg0: i32) -> (i32, i32) {
    %c0_i32 = arith.constant 0 : i32
    %c0_i32_0 = arith.constant 0 : i32
    %c0_i32_1 = arith.constant 0 : i32
    return %c0_i32, %c0_i32_0 : i32, i32
  }
  func.func @transform_24(%arg0: i32) -> (i32, i32) {
    %c0_i32 = arith.constant 0 : i32
    %c0_i32_0 = arith.constant 0 : i32
    %c0_i32_1 = arith.constant 0 : i32
    return %c0_i32, %c0_i32_0 : i32, i32
  }
  func.func @transform_25(%arg0: i32) -> (i32, i32) {
    %c0_i32 = arith.constant 0 : i32
    %c0_i32_0 = arith.constant 0 : i32
    %c0_i32_1 = arith.constant 0 : i32
    return %c0_i32, %c0_i32_0 : i32, i32
  }
  func.func @transform_26(%arg0: i32) -> (i32, i32, i32) {
    %c0_i32 = arith.constant 0 : i32
    %c0_i32_0 = arith.constant 0 : i32
    %c0_i32_1 = arith.constant 0 : i32
    return %arg0, %c0_i32, %c0_i32_0 : i32, i32, i32
  }
}

</mosaic_0001>

<llo_original>
// kernel: transformer_sentence_forward.1
$region0: #{transformer_sentence_forward.1}
  #allocation0 [shape = 'u32[]', space=smem, size = 0x4, offset = 0x4, fixed_abs, tag = 'smem constant byte address 0x4 - core index']
  #allocation1 [shape = 'u32[144,128]{1,0:T(1,128)}', space=vmem, size = 0x12000, scoped, tag = 'internal scratch']
  %s0 = inlined_call_operand.vmem [shape: f32[2,2,8,32], index: 0, kind: input, shape index: {}]
  %s1 = inlined_call_operand.vmem [shape: f32[8,32], index: 1, kind: input, shape index: {}]
  %s2 = inlined_call_operand.vmem [shape: f32[1,32], index: 2, kind: input, shape index: {}]
  %s3 = inlined_call_operand.vmem [shape: f32[1,32], index: 3, kind: input, shape index: {}]
  %s4 = inlined_call_operand.vmem [shape: f32[2,2,32,16], index: 4, kind: input, shape index: {}]
  %s5 = inlined_call_operand.vmem [shape: f32[2,2,1,16], index: 5, kind: input, shape index: {}]
  %s6 = inlined_call_operand.vmem [shape: f32[2,2,32,16], index: 6, kind: input, shape index: {}]
  %s7 = inlined_call_operand.vmem [shape: f32[2,2,1,16], index: 7, kind: input, shape index: {}]
  %s8 = inlined_call_operand.vmem [shape: f32[2,2,32,16], index: 8, kind: input, shape index: {}]
  %s9 = inlined_call_operand.vmem [shape: f32[2,2,1,16], index: 9, kind: input, shape index: {}]
  %s10 = inlined_call_operand.vmem [shape: f32[2,2,16,32], index: 10, kind: input, shape index: {}]
  %s11 = inlined_call_operand.vmem [shape: f32[2,1,32], index: 11, kind: input, shape index: {}]
  %s12 = inlined_call_operand.vmem [shape: f32[2,1,32], index: 12, kind: input, shape index: {}]
  %s13 = inlined_call_operand.vmem [shape: f32[2,1,32], index: 13, kind: input, shape index: {}]
  %s14 = inlined_call_operand.vmem [shape: f32[2,32,64], index: 14, kind: input, shape index: {}]
  %s15 = inlined_call_operand.vmem [shape: f32[2,1,64], index: 15, kind: input, shape index: {}]
  %s16 = inlined_call_operand.vmem [shape: f32[2,64,32], index: 16, kind: input, shape index: {}]
  %s17 = inlined_call_operand.vmem [shape: f32[2,1,32], index: 17, kind: input, shape index: {}]
  %s18 = inlined_call_operand.vmem [shape: f32[2,1,32], index: 18, kind: input, shape index: {}]
  %s19 = inlined_call_operand.vmem [shape: f32[2,1,32], index: 19, kind: input, shape index: {}]
  %s20 = inlined_call_operand.vmem [shape: f32[32,64], index: 20, kind: input, shape index: {}]
  %s21 = inlined_call_operand.vmem [shape: f32[32,64], index: 21, kind: input, shape index: {}]
  %s22 = inlined_call_operand.vmem [shape: f32[32,64], index: 22, kind: input, shape index: {}]
  %s23 = inlined_call_operand.vmem [shape: f32[1,64], index: 23, kind: input, shape index: {}]
  %s24 = inlined_call_operand.vmem [shape: f32[64,128], index: 24, kind: input, shape index: {}]
  %s25 = inlined_call_operand.vmem [shape: f32[1,128], index: 25, kind: input, shape index: {}]
  %s26 = inlined_call_operand.hbm [shape: f32[2,1,128], index: 26, kind: output, shape index: {}]
  %s27 = sld [smem:[#allocation0]]
  $region137: #{transformer_sentence_forward.1} parent=0
    _
  %s29 = ssub.s32 1, %s27
  %s30 = scalar_select 0, %s29, %s27
  $region1: #{transformer_sentence_forward.1} parent=0
    #allocation2 [shape = 'u8[1024]{0}', space=vmem, size = 0x400, scoped, tag = 'output window, operand 0']
    #allocation3 [shape = 's32[2]{0}', space=sflag, size = 0x8, scoped, tag = 'scoped memory for transformer_sentence_forward.1']
    %31 = vsyncpa [#allocation3], 0
    %s32 = scalar_lea.sflag [#allocation3], 1
    %33 = vsyncpa %s32, 0
    loop: start=0, step=1, limit=4
    $region2: #{transformer_sentence_forward.1} parent=1 // loop_pre_header
      _
    $region3: #{transformer_sentence_forward.1} parent=1 // loop_header
      %s35 = sphi 0, %s39
      %p36 = scmp.ge.s32.totalorder %s35, 4
      %s45 = sphi 0, %s47
      %s48 = sphi 0, %s45
      %s49 = sphi 0, %s48
      %s65 = sphi 0, %s49
      %s69 = sphi 0, %s69
      %s71 = sphi 0, %s69
      %s72 = sphi 0, %s71
      %s86 = sphi 0, %s72
      %s90 = sphi 0, %s90
      %s92 = sphi 0, %s90
      %s93 = sphi 0, %s92
      %s107 = sphi 0, %s93
      %s111 = sphi 0, %s111
      %s113 = sphi 0, %s111
      %s114 = sphi 0, %s113
      %s128 = sphi 0, %s114
      %s132 = sphi 0, %s132
      %s134 = sphi 0, %s132
      %s135 = sphi 0, %s134
      %s149 = sphi 0, %s135
      %s153 = sphi 0, %s153
      %s155 = sphi 0, %s153
      %s156 = sphi 0, %s155
      %s170 = sphi 0, %s156
      %s174 = sphi 0, %s174
      %s176 = sphi 0, %s174
      %s177 = sphi 0, %s176
      %s191 = sphi 0, %s177
      %s195 = sphi 0, %s195
      %s197 = sphi 0, %s195
      %s198 = sphi 0, %s197
      %s212 = sphi 0, %s198
      %s216 = sphi 0, %s216
      %s218 = sphi 0, %s216
      %s219 = sphi 0, %s218
      %s233 = sphi 0, %s219
      %s237 = sphi 0, %s237
      %s239 = sphi 0, %s237
      %s240 = sphi 0, %s239
      %s254 = sphi 0, %s240
      %s258 = sphi 0, %s258
      %s260 = sphi 0, %s258
      %s261 = sphi 0, %s260
      %s275 = sphi 0, %s261
      %s279 = sphi 0, %s279
      %s281 = sphi 0, %s279
      %s282 = sphi 0, %s281
      %s296 = sphi 0, %s282
      %s300 = sphi 0, %s300
      %s302 = sphi 0, %s300
      %s303 = sphi 0, %s302
      %s317 = sphi 0, %s303
      %s321 = sphi 0, %s321
      %s323 = sphi 0, %s321
      %s324 = sphi 0, %s323
      %s338 = sphi 0, %s324
      %s342 = sphi 0, %s342
      %s344 = sphi 0, %s342
      %s345 = sphi 0, %s344
      %s359 = sphi 0, %s345
      %s363 = sphi 0, %s363
      %s365 = sphi 0, %s363
      %s366 = sphi 0, %s365
      %s380 = sphi 0, %s366
      %s384 = sphi 0, %s384
      %s386 = sphi 0, %s384
      %s387 = sphi 0, %s386
      %s401 = sphi 0, %s387
      %s405 = sphi 0, %s405
      %s407 = sphi 0, %s405
      %s408 = sphi 0, %s407
      %s422 = sphi 0, %s408
      %s426 = sphi 0, %s426
      %s428 = sphi 0, %s426
      %s429 = sphi 0, %s428
      %s443 = sphi 0, %s429
      %s447 = sphi 0, %s447
      %s449 = sphi 0, %s447
      %s450 = sphi 0, %s449
      %s464 = sphi 0, %s450
      %s468 = sphi 0, %s468
      %s470 = sphi 0, %s468
      %s471 = sphi 0, %s470
      %s485 = sphi 0, %s471
      %s489 = sphi 0, %s489
      %s491 = sphi 0, %s489
      %s492 = sphi 0, %s491
      %s506 = sphi 0, %s492
      %s510 = sphi 0, %s510
      %s512 = sphi 0, %s510
      %s513 = sphi 0, %s512
      %s527 = sphi 0, %s513
      %s531 = sphi 0, %s531
      %s533 = sphi 0, %s531
      %s534 = sphi 0, %s533
      %s548 = sphi 0, %s534
      %s552 = sphi 0, %s552
      %s554 = sphi 0, %s552
      %s555 = sphi 0, %s554
      %s569 = sphi 0, %s555
      %s573 = sphi 0, %s573
      %s575 = sphi 0, %s573
      %s576 = sphi 0, %s575
      %s590 = sphi 0, %s576
      %s596 = sphi 0, %s598
      %s599 = sphi 0, %s596
      %s600 = sphi 0, %s599
      %s616 = sphi 0, %s600
    $region4: #{transformer_sentence_forward.1} parent=1 // loop_header_branch
      %38 = sbr.rel (%p36) target = $region8
    $region5: #{transformer_sentence_forward.1} parent=1 // loop_body
      %s40 = ssub.s32 %s35, 1
      %s41 = ssub.s32 %s35, 2
      %s42 = sadd.s32 %s35, 1
      %s43 = ssub.s32 %s35, %s42
      %p44 = scmp.eq.s32.totalorder %s43, 0
      %s46 = sadd.s32 %s45, 1
      %s47 = scalar_select %p44, %s45, %s46
      %p50 = pneg %p44
      %p51 = scmp.eq.s32.totalorder %s35, 1
      %p52 = por %p50, %p51
      %p53 = scmp.ne.s32.totalorder %s45, %s48
      %p54 = scmp.eq.s32.totalorder %s35, 0
      %p55 = por %p53, %p54
      %p56 = scmp.ne.s32.totalorder %s45, %s48
      %p57 = scmp.eq.s32.totalorder %s40, 1
      %p58 = por %p56, %p57
      %p59 = scmp.ne.s32.totalorder %s48, %s49
      %p60 = scmp.eq.s32.totalorder %s40, 0
      %p61 = por %p59, %p60
      %p62 = scmp.ne.s32.totalorder %s48, %s49
      %p63 = scmp.eq.s32.totalorder %s41, 1
      %p64 = por %p62, %p63
      %p66 = scmp.ne.s32.totalorder %s49, %s65
      %p67 = scmp.eq.s32.totalorder %s41, 0
      %p68 = por %p66, %p67
      %s70 = sadd.s32 %s69, 1
      %p73 = scmp.eq.s32.totalorder %s35, 1
      %p74 = scmp.ne.s32.totalorder %s69, %s71
      %p75 = scmp.eq.s32.totalorder %s35, 0
      %p76 = por %p74, %p75
      %p77 = scmp.ne.s32.totalorder %s69, %s71
      %p78 = scmp.eq.s32.totalorder %s40, 1
      %p79 = por %p77, %p78
      %p80 = scmp.ne.s32.totalorder %s71, %s72
      %p81 = scmp.eq.s32.totalorder %s40, 0
      %p82 = por %p80, %p81
      %p83 = scmp.ne.s32.totalorder %s71, %s72
      %p84 = scmp.eq.s32.totalorder %s41, 1
      %p85 = por %p83, %p84
      %p87 = scmp.ne.s32.totalorder %s72, %s86
      %p88 = scmp.eq.s32.totalorder %s41, 0
      %p89 = por %p87, %p88
      %s91 = sadd.s32 %s90, 1
      %p94 = scmp.eq.s32.totalorder %s35, 1
      %p95 = scmp.ne.s32.totalorder %s90, %s92
      %p96 = scmp.eq.s32.totalorder %s35, 0
      %p97 = por %p95, %p96
      %p98 = scmp.ne.s32.totalorder %s90, %s92
      %p99 = scmp.eq.s32.totalorder %s40, 1
      %p100 = por %p98, %p99
      %p101 = scmp.ne.s32.totalorder %s92, %s93
      %p102 = scmp.eq.s32.totalorder %s40, 0
      %p103 = por %p101, %p102
      %p104 = scmp.ne.s32.totalorder %s92, %s93
      %p105 = scmp.eq.s32.totalorder %s41, 1
      %p106 = por %p104, %p105
      %p108 = scmp.ne.s32.totalorder %s93, %s107
      %p109 = scmp.eq.s32.totalorder %s41, 0
      %p110 = por %p108, %p109
      %s112 = sadd.s32 %s111, 1
      %p115 = scmp.eq.s32.totalorder %s35, 1
      %p116 = scmp.ne.s32.totalorder %s111, %s113
      %p117 = scmp.eq.s32.totalorder %s35, 0
      %p118 = por %p116, %p117
      %p119 = scmp.ne.s32.totalorder %s111, %s113
      %p120 = scmp.eq.s32.totalorder %s40, 1
      %p121 = por %p119, %p120
      %p122 = scmp.ne.s32.totalorder %s113, %s114
      %p123 = scmp.eq.s32.totalorder %s40, 0
      %p124 = por %p122, %p123
      %p125 = scmp.ne.s32.totalorder %s113, %s114
      %p126 = scmp.eq.s32.totalorder %s41, 1
      %p127 = por %p125, %p126
      %p129 = scmp.ne.s32.totalorder %s114, %s128
      %p130 = scmp.eq.s32.totalorder %s41, 0
      %p131 = por %p129, %p130
      %s133 = sadd.s32 %s132, 1
      %p136 = scmp.eq.s32.totalorder %s35, 1
      %p137 = scmp.ne.s32.totalorder %s132, %s134
      %p138 = scmp.eq.s32.totalorder %s35, 0
      %p139 = por %p137, %p138
      %p140 = scmp.ne.s32.totalorder %s132, %s134
      %p141 = scmp.eq.s32.totalorder %s40, 1
      %p142 = por %p140, %p141
      %p143 = scmp.ne.s32.totalorder %s134, %s135
      %p144 = scmp.eq.s32.totalorder %s40, 0
      %p145 = por %p143, %p144
      %p146 = scmp.ne.s32.totalorder %s134, %s135
      %p147 = scmp.eq.s32.totalorder %s41, 1
      %p148 = por %p146, %p147
      %p150 = scmp.ne.s32.totalorder %s135, %s149
      %p151 = scmp.eq.s32.totalorder %s41, 0
      %p152 = por %p150, %p151
      %s154 = sadd.s32 %s153, 1
      %p157 = scmp.eq.s32.totalorder %s35, 1
      %p158 = scmp.ne.s32.totalorder %s153, %s155
      %p159 = scmp.eq.s32.totalorder %s35, 0
      %p160 = por %p158, %p159
      %p161 = scmp.ne.s32.totalorder %s153, %s155
      %p162 = scmp.eq.s32.totalorder %s40, 1
      %p163 = por %p161, %p162
      %p164 = scmp.ne.s32.totalorder %s155, %s156
      %p165 = scmp.eq.s32.totalorder %s40, 0
      %p166 = por %p164, %p165
      %p167 = scmp.ne.s32.totalorder %s155, %s156
      %p168 = scmp.eq.s32.totalorder %s41, 1
      %p169 = por %p167, %p168
      %p171 = scmp.ne.s32.totalorder %s156, %s170
      %p172 = scmp.eq.s32.totalorder %s41, 0
      %p173 = por %p171, %p172
      %s175 = sadd.s32 %s174, 1
      %p178 = scmp.eq.s32.totalorder %s35, 1
      %p179 = scmp.ne.s32.totalorder %s174, %s176
      %p180 = scmp.eq.s32.totalorder %s35, 0
      %p181 = por %p179, %p180
      %p182 = scmp.ne.s32.totalorder %s174, %s176
      %p183 = scmp.eq.s32.totalorder %s40, 1
      %p184 = por %p182, %p183
      %p185 = scmp.ne.s32.totalorder %s176, %s177
      %p186 = scmp.eq.s32.totalorder %s40, 0
      %p187 = por %p185, %p186
      %p188 = scmp.ne.s32.totalorder %s176, %s177
      %p189 = scmp.eq.s32.totalorder %s41, 1
      %p190 = por %p188, %p189
      %p192 = scmp.ne.s32.totalorder %s177, %s191
      %p193 = scmp.eq.s32.totalorder %s41, 0
      %p194 = por %p192, %p193
      %s196 = sadd.s32 %s195, 1
      %p199 = scmp.eq.s32.totalorder %s35, 1
      %p200 = scmp.ne.s32.totalorder %s195, %s197
      %p201 = scmp.eq.s32.totalorder %s35, 0
      %p202 = por %p200, %p201
      %p203 = scmp.ne.s32.totalorder %s195, %s197
      %p204 = scmp.eq.s32.totalorder %s40, 1
      %p205 = por %p203, %p204
      %p206 = scmp.ne.s32.totalorder %s197, %s198
      %p207 = scmp.eq.s32.totalorder %s40, 0
      %p208 = por %p206, %p207
      %p209 = scmp.ne.s32.totalorder %s197, %s198
      %p210 = scmp.eq.s32.totalorder %s41, 1
      %p211 = por %p209, %p210
      %p213 = scmp.ne.s32.totalorder %s198, %s212
      %p214 = scmp.eq.s32.totalorder %s41, 0
      %p215 = por %p213, %p214
      %s217 = sadd.s32 %s216, 1
      %p220 = scmp.eq.s32.totalorder %s35, 1
      %p221 = scmp.ne.s32.totalorder %s216, %s218
      %p222 = scmp.eq.s32.totalorder %s35, 0
      %p223 = por %p221, %p222
      %p224 = scmp.ne.s32.totalorder %s216, %s218
      %p225 = scmp.eq.s32.totalorder %s40, 1
      %p226 = por %p224, %p225
      %p227 = scmp.ne.s32.totalorder %s218, %s219
      %p228 = scmp.eq.s32.totalorder %s40, 0
      %p229 = por %p227, %p228
      %p230 = scmp.ne.s32.totalorder %s218, %s219
      %p231 = scmp.eq.s32.totalorder %s41, 1
      %p232 = por %p230, %p231
      %p234 = scmp.ne.s32.totalorder %s219, %s233
      %p235 = scmp.eq.s32.totalorder %s41, 0
      %p236 = por %p234, %p235
      %s238 = sadd.s32 %s237, 1
      %p241 = scmp.eq.s32.totalorder %s35, 1
      %p242 = scmp.ne.s32.totalorder %s237, %s239
      %p243 = scmp.eq.s32.totalorder %s35, 0
      %p244 = por %p242, %p243
      %p245 = scmp.ne.s32.totalorder %s237, %s239
      %p246 = scmp.eq.s32.totalorder %s40, 1
      %p247 = por %p245, %p246
      %p248 = scmp.ne.s32.totalorder %s239, %s240
      %p249 = scmp.eq.s32.totalorder %s40, 0
      %p250 = por %p248, %p249
      %p251 = scmp.ne.s32.totalorder %s239, %s240
      %p252 = scmp.eq.s32.totalorder %s41, 1
      %p253 = por %p251, %p252
      %p255 = scmp.ne.s32.totalorder %s240, %s254
      %p256 = scmp.eq.s32.totalorder %s41, 0
      %p257 = por %p255, %p256
      %s259 = sadd.s32 %s258, 1
      %p262 = scmp.eq.s32.totalorder %s35, 1
      %p263 = scmp.ne.s32.totalorder %s258, %s260
      %p264 = scmp.eq.s32.totalorder %s35, 0
      %p265 = por %p263, %p264
      %p266 = scmp.ne.s32.totalorder %s258, %s260
      %p267 = scmp.eq.s32.totalorder %s40, 1
      %p268 = por %p266, %p267
      %p269 = scmp.ne.s32.totalorder %s260, %s261
      %p270 = scmp.eq.s32.totalorder %s40, 0
      %p271 = por %p269, %p270
      %p272 = scmp.ne.s32.totalorder %s260, %s261
      %p273 = scmp.eq.s32.totalorder %s41, 1
      %p274 = por %p272, %p273
      %p276 = scmp.ne.s32.totalorder %s261, %s275
      %p277 = scmp.eq.s32.totalorder %s41, 0
      %p278 = por %p276, %p277
      %s280 = sadd.s32 %s279, 1
      %p283 = scmp.eq.s32.totalorder %s35, 1
      %p284 = scmp.ne.s32.totalorder %s279, %s281
      %p285 = scmp.eq.s32.totalorder %s35, 0
      %p286 = por %p284, %p285
      %p287 = scmp.ne.s32.totalorder %s279, %s281
      %p288 = scmp.eq.s32.totalorder %s40, 1
      %p289 = por %p287, %p288
      %p290 = scmp.ne.s32.totalorder %s281, %s282
      %p291 = scmp.eq.s32.totalorder %s40, 0
      %p292 = por %p290, %p291
      %p293 = scmp.ne.s32.totalorder %s281, %s282
      %p294 = scmp.eq.s32.totalorder %s41, 1
      %p295 = por %p293, %p294
      %p297 = scmp.ne.s32.totalorder %s282, %s296
      %p298 = scmp.eq.s32.totalorder %s41, 0
      %p299 = por %p297, %p298
      %s301 = sadd.s32 %s300, 1
      %p304 = scmp.eq.s32.totalorder %s35, 1
      %p305 = scmp.ne.s32.totalorder %s300, %s302
      %p306 = scmp.eq.s32.totalorder %s35, 0
      %p307 = por %p305, %p306
      %p308 = scmp.ne.s32.totalorder %s300, %s302
      %p309 = scmp.eq.s32.totalorder %s40, 1
      %p310 = por %p308, %p309
      %p311 = scmp.ne.s32.totalorder %s302, %s303
      %p312 = scmp.eq.s32.totalorder %s40, 0
      %p313 = por %p311, %p312
      %p314 = scmp.ne.s32.totalorder %s302, %s303
      %p315 = scmp.eq.s32.totalorder %s41, 1
      %p316 = por %p314, %p315
      %p318 = scmp.ne.s32.totalorder %s303, %s317
      %p319 = scmp.eq.s32.totalorder %s41, 0
      %p320 = por %p318, %p319
      %s322 = sadd.s32 %s321, 1
      %p325 = scmp.eq.s32.totalorder %s35, 1
      %p326 = scmp.ne.s32.totalorder %s321, %s323
      %p327 = scmp.eq.s32.totalorder %s35, 0
      %p328 = por %p326, %p327
      %p329 = scmp.ne.s32.totalorder %s321, %s323
      %p330 = scmp.eq.s32.totalorder %s40, 1
      %p331 = por %p329, %p330
      %p332 = scmp.ne.s32.totalorder %s323, %s324
      %p333 = scmp.eq.s32.totalorder %s40, 0
      %p334 = por %p332, %p333
      %p335 = scmp.ne.s32.totalorder %s323, %s324
      %p336 = scmp.eq.s32.totalorder %s41, 1
      %p337 = por %p335, %p336
      %p339 = scmp.ne.s32.totalorder %s324, %s338
      %p340 = scmp.eq.s32.totalorder %s41, 0
      %p341 = por %p339, %p340
      %s343 = sadd.s32 %s342, 1
      %p346 = scmp.eq.s32.totalorder %s35, 1
      %p347 = scmp.ne.s32.totalorder %s342, %s344
      %p348 = scmp.eq.s32.totalorder %s35, 0
      %p349 = por %p347, %p348
      %p350 = scmp.ne.s32.totalorder %s342, %s344
      %p351 = scmp.eq.s32.totalorder %s40, 1
      %p352 = por %p350, %p351
      %p353 = scmp.ne.s32.totalorder %s344, %s345
      %p354 = scmp.eq.s32.totalorder %s40, 0
      %p355 = por %p353, %p354
      %p356 = scmp.ne.s32.totalorder %s344, %s345
      %p357 = scmp.eq.s32.totalorder %s41, 1
      %p358 = por %p356, %p357
      %p360 = scmp.ne.s32.totalorder %s345, %s359
      %p361 = scmp.eq.s32.totalorder %s41, 0
      %p362 = por %p360, %p361
      %s364 = sadd.s32 %s363, 1
      %p367 = scmp.eq.s32.totalorder %s35, 1
      %p368 = scmp.ne.s32.totalorder %s363, %s365
      %p369 = scmp.eq.s32.totalorder %s35, 0
      %p370 = por %p368, %p369
      %p371 = scmp.ne.s32.totalorder %s363, %s365
      %p372 = scmp.eq.s32.totalorder %s40, 1
      %p373 = por %p371, %p372
      %p374 = scmp.ne.s32.totalorder %s365, %s366
      %p375 = scmp.eq.s32.totalorder %s40, 0
      %p376 = por %p374, %p375
      %p377 = scmp.ne.s32.totalorder %s365, %s366
      %p378 = scmp.eq.s32.totalorder %s41, 1
      %p379 = por %p377, %p378
      %p381 = scmp.ne.s32.totalorder %s366, %s380
      %p382 = scmp.eq.s32.totalorder %s41, 0
      %p383 = por %p381, %p382
      %s385 = sadd.s32 %s384, 1
      %p388 = scmp.eq.s32.totalorder %s35, 1
      %p389 = scmp.ne.s32.totalorder %s384, %s386
      %p390 = scmp.eq.s32.totalorder %s35, 0
      %p391 = por %p389, %p390
      %p392 = scmp.ne.s32.totalorder %s384, %s386
      %p393 = scmp.eq.s32.totalorder %s40, 1
      %p394 = por %p392, %p393
      %p395 = scmp.ne.s32.totalorder %s386, %s387
      %p396 = scmp.eq.s32.totalorder %s40, 0
      %p397 = por %p395, %p396
      %p398 = scmp.ne.s32.totalorder %s386, %s387
      %p399 = scmp.eq.s32.totalorder %s41, 1
      %p400 = por %p398, %p399
      %p402 = scmp.ne.s32.totalorder %s387, %s401
      %p403 = scmp.eq.s32.totalorder %s41, 0
      %p404 = por %p402, %p403
      %s406 = sadd.s32 %s405, 1
      %p409 = scmp.eq.s32.totalorder %s35, 1
      %p410 = scmp.ne.s32.totalorder %s405, %s407
      %p411 = scmp.eq.s32.totalorder %s35, 0
      %p412 = por %p410, %p411
      %p413 = scmp.ne.s32.totalorder %s405, %s407
      %p414 = scmp.eq.s32.totalorder %s40, 1
      %p415 = por %p413, %p414
      %p416 = scmp.ne.s32.totalorder %s407, %s408
      %p417 = scmp.eq.s32.totalorder %s40, 0
      %p418 = por %p416, %p417
      %p419 = scmp.ne.s32.totalorder %s407, %s408
      %p420 = scmp.eq.s32.totalorder %s41, 1
      %p421 = por %p419, %p420
      %p423 = scmp.ne.s32.totalorder %s408, %s422
      %p424 = scmp.eq.s32.totalorder %s41, 0
      %p425 = por %p423, %p424
      %s427 = sadd.s32 %s426, 1
      %p430 = scmp.eq.s32.totalorder %s35, 1
      %p431 = scmp.ne.s32.totalorder %s426, %s428
      %p432 = scmp.eq.s32.totalorder %s35, 0
      %p433 = por %p431, %p432
      %p434 = scmp.ne.s32.totalorder %s426, %s428
      %p435 = scmp.eq.s32.totalorder %s40, 1
      %p436 = por %p434, %p435
      %p437 = scmp.ne.s32.totalorder %s428, %s429
      %p438 = scmp.eq.s32.totalorder %s40, 0
      %p439 = por %p437, %p438
      %p440 = scmp.ne.s32.totalorder %s428, %s429
      %p441 = scmp.eq.s32.totalorder %s41, 1
      %p442 = por %p440, %p441
      %p444 = scmp.ne.s32.totalorder %s429, %s443
      %p445 = scmp.eq.s32.totalorder %s41, 0
      %p446 = por %p444, %p445
      %s448 = sadd.s32 %s447, 1
      %p451 = scmp.eq.s32.totalorder %s35, 1
      %p452 = scmp.ne.s32.totalorder %s447, %s449
      %p453 = scmp.eq.s32.totalorder %s35, 0
      %p454 = por %p452, %p453
      %p455 = scmp.ne.s32.totalorder %s447, %s449
      %p456 = scmp.eq.s32.totalorder %s40, 1
      %p457 = por %p455, %p456
      %p458 = scmp.ne.s32.totalorder %s449, %s450
      %p459 = scmp.eq.s32.totalorder %s40, 0
      %p460 = por %p458, %p459
      %p461 = scmp.ne.s32.totalorder %s449, %s450
      %p462 = scmp.eq.s32.totalorder %s41, 1
      %p463 = por %p461, %p462
      %p465 = scmp.ne.s32.totalorder %s450, %s464
      %p466 = scmp.eq.s32.totalorder %s41, 0
      %p467 = por %p465, %p466
      %s469 = sadd.s32 %s468, 1
      %p472 = scmp.eq.s32.totalorder %s35, 1
      %p473 = scmp.ne.s32.totalorder %s468, %s470
      %p474 = scmp.eq.s32.totalorder %s35, 0
      %p475 = por %p473, %p474
      %p476 = scmp.ne.s32.totalorder %s468, %s470
      %p477 = scmp.eq.s32.totalorder %s40, 1
      %p478 = por %p476, %p477
      %p479 = scmp.ne.s32.totalorder %s470, %s471
      %p480 = scmp.eq.s32.totalorder %s40, 0
      %p481 = por %p479, %p480
      %p482 = scmp.ne.s32.totalorder %s470, %s471
      %p483 = scmp.eq.s32.totalorder %s41, 1
      %p484 = por %p482, %p483
      %p486 = scmp.ne.s32.totalorder %s471, %s485
      %p487 = scmp.eq.s32.totalorder %s41, 0
      %p488 = por %p486, %p487
      %s490 = sadd.s32 %s489, 1
      %p493 = scmp.eq.s32.totalorder %s35, 1
      %p494 = scmp.ne.s32.totalorder %s489, %s491
      %p495 = scmp.eq.s32.totalorder %s35, 0
      %p496 = por %p494, %p495
      %p497 = scmp.ne.s32.totalorder %s489, %s491
      %p498 = scmp.eq.s32.totalorder %s40, 1
      %p499 = por %p497, %p498
      %p500 = scmp.ne.s32.totalorder %s491, %s492
      %p501 = scmp.eq.s32.totalorder %s40, 0
      %p502 = por %p500, %p501
      %p503 = scmp.ne.s32.totalorder %s491, %s492
      %p504 = scmp.eq.s32.totalorder %s41, 1
      %p505 = por %p503, %p504
      %p507 = scmp.ne.s32.totalorder %s492, %s506
      %p508 = scmp.eq.s32.totalorder %s41, 0
      %p509 = por %p507, %p508
      %s511 = sadd.s32 %s510, 1
      %p514 = scmp.eq.s32.totalorder %s35, 1
      %p515 = scmp.ne.s32.totalorder %s510, %s512
      %p516 = scmp.eq.s32.totalorder %s35, 0
      %p517 = por %p515, %p516
      %p518 = scmp.ne.s32.totalorder %s510, %s512
      %p519 = scmp.eq.s32.totalorder %s40, 1
      %p520 = por %p518, %p519
      %p521 = scmp.ne.s32.totalorder %s512, %s513
      %p522 = scmp.eq.s32.totalorder %s40, 0
      %p523 = por %p521, %p522
      %p524 = scmp.ne.s32.totalorder %s512, %s513
      %p525 = scmp.eq.s32.totalorder %s41, 1
      %p526 = por %p524, %p525
      %p528 = scmp.ne.s32.totalorder %s513, %s527
      %p529 = scmp.eq.s32.totalorder %s41, 0
      %p530 = por %p528, %p529
      %s532 = sadd.s32 %s531, 1
      %p535 = scmp.eq.s32.totalorder %s35, 1
      %p536 = scmp.ne.s32.totalorder %s531, %s533
      %p537 = scmp.eq.s32.totalorder %s35, 0
      %p538 = por %p536, %p537
      %p539 = scmp.ne.s32.totalorder %s531, %s533
      %p540 = scmp.eq.s32.totalorder %s40, 1
      %p541 = por %p539, %p540
      %p542 = scmp.ne.s32.totalorder %s533, %s534
      %p543 = scmp.eq.s32.totalorder %s40, 0
      %p544 = por %p542, %p543
      %p545 = scmp.ne.s32.totalorder %s533, %s534
      %p546 = scmp.eq.s32.totalorder %s41, 1
      %p547 = por %p545, %p546
      %p549 = scmp.ne.s32.totalorder %s534, %s548
      %p550 = scmp.eq.s32.totalorder %s41, 0
      %p551 = por %p549, %p550
      %s553 = sadd.s32 %s552, 1
      %p556 = scmp.eq.s32.totalorder %s35, 1
      %p557 = scmp.ne.s32.totalorder %s552, %s554
      %p558 = scmp.eq.s32.totalorder %s35, 0
      %p559 = por %p557, %p558
      %p560 = scmp.ne.s32.totalorder %s552, %s554
      %p561 = scmp.eq.s32.totalorder %s40, 1
      %p562 = por %p560, %p561
      %p563 = scmp.ne.s32.totalorder %s554, %s555
      %p564 = scmp.eq.s32.totalorder %s40, 0
      %p565 = por %p563, %p564
      %p566 = scmp.ne.s32.totalorder %s554, %s555
      %p567 = scmp.eq.s32.totalorder %s41, 1
      %p568 = por %p566, %p567
      %p570 = scmp.ne.s32.totalorder %s555, %s569
      %p571 = scmp.eq.s32.totalorder %s41, 0
      %p572 = por %p570, %p571
      %s574 = sadd.s32 %s573, 1
      %p577 = scmp.eq.s32.totalorder %s35, 1
      %p578 = scmp.ne.s32.totalorder %s573, %s575
      %p579 = scmp.eq.s32.totalorder %s35, 0
      %p580 = por %p578, %p579
      %p581 = scmp.ne.s32.totalorder %s573, %s575
      %p582 = scmp.eq.s32.totalorder %s40, 1
      %p583 = por %p581, %p582
      %p584 = scmp.ne.s32.totalorder %s575, %s576
      %p585 = scmp.eq.s32.totalorder %s40, 0
      %p586 = por %p584, %p585
      %p587 = scmp.ne.s32.totalorder %s575, %s576
      %p588 = scmp.eq.s32.totalorder %s41, 1
      %p589 = por %p587, %p588
      %p591 = scmp.ne.s32.totalorder %s576, %s590
      %p592 = scmp.eq.s32.totalorder %s41, 0
      %p593 = por %p591, %p592
      %s594 = ssub.s32 %s35, %s42
      %p595 = scmp.eq.s32.totalorder %s594, 0
      %s597 = sadd.s32 %s596, 1
      %s598 = scalar_select %p595, %s596, %s597
      %p601 = pneg %p595
      %p602 = scmp.eq.s32.totalorder %s35, 1
      %p603 = por %p601, %p602
      %p604 = scmp.ne.s32.totalorder %s596, %s599
      %p605 = scmp.eq.s32.totalorder %s35, 0
      %p606 = por %p604, %p605
      %p607 = scmp.ne.s32.totalorder %s596, %s599
      %p608 = scmp.eq.s32.totalorder %s40, 1
      %p609 = por %p607, %p608
      %p610 = scmp.ne.s32.totalorder %s599, %s600
      %p611 = scmp.eq.s32.totalorder %s40, 0
      %p612 = por %p610, %p611
      %p613 = scmp.ne.s32.totalorder %s599, %s600
      %p614 = scmp.eq.s32.totalorder %s41, 1
      %p615 = por %p613, %p614
      %p617 = scmp.ne.s32.totalorder %s600, %s616
      %p618 = scmp.eq.s32.totalorder %s41, 0
      %p619 = por %p617, %p618
      %p620 = scmp.le.s32.totalorder 1, %s35
      %p621 = scmp.lt.s32.totalorder %s35, 3
      %p622 = pnand %p620, %p621
      %p623 = pneg %p622
      // Predicated region
      $region9: #{transformer_sentence_forward.1} parent=5 // pred_check
        _
      $region10: #{transformer_sentence_forward.1} parent=5 // pred_check_branch
        %625 = sbr.rel (%p622) target = $region12
      $region11: #{transformer_sentence_forward.1} parent=5 // pred_region
        %s626 = ssub.s32 %s35, 1
        // Predicated region
        $region13: #{transformer_sentence_forward.1} parent=11 // pred_check
          %p627 = pneg %p82
        $region14: #{transformer_sentence_forward.1} parent=11 // pred_check_branch
          %629 = sbr.rel (%p627) target = $region16
        $region15: #{transformer_sentence_forward.1} parent=11 // pred_region
          _
        $region16: #{transformer_sentence_forward.1} parent=11 // pred_fallthru
          _
        // Predicated region
        $region17: #{transformer_sentence_forward.1} parent=11 // pred_check
          %p630 = pneg %p103
        $region18: #{transformer_sentence_forward.1} parent=11 // pred_check_branch
          %632 = sbr.rel (%p630) target = $region20
        $region19: #{transformer_sentence_forward.1} parent=11 // pred_region
          _
        $region20: #{transformer_sentence_forward.1} parent=11 // pred_fallthru
          _
        // Predicated region
        $region21: #{transformer_sentence_forward.1} parent=11 // pred_check
          %p633 = pneg %p124
        $region22: #{transformer_sentence_forward.1} parent=11 // pred_check_branch
          %635 = sbr.rel (%p633) target = $region24
        $region23: #{transformer_sentence_forward.1} parent=11 // pred_region
          _
        $region24: #{transformer_sentence_forward.1} parent=11 // pred_fallthru
          _
        // Predicated region
        $region25: #{transformer_sentence_forward.1} parent=11 // pred_check
          %p636 = pneg %p145
        $region26: #{transformer_sentence_forward.1} parent=11 // pred_check_branch
          %638 = sbr.rel (%p636) target = $region28
        $region27: #{transformer_sentence_forward.1} parent=11 // pred_region
          _
        $region28: #{transformer_sentence_forward.1} parent=11 // pred_fallthru
          _
        // Predicated region
        $region29: #{transformer_sentence_forward.1} parent=11 // pred_check
          %p639 = pneg %p166
        $region30: #{transformer_sentence_forward.1} parent=11 // pred_check_branch
          %641 = sbr.rel (%p639) target = $region32
        $region31: #{transformer_sentence_forward.1} parent=11 // pred_region
          _
        $region32: #{transformer_sentence_forward.1} parent=11 // pred_fallthru
          _
        // Predicated region
        $region33: #{transformer_sentence_forward.1} parent=11 // pred_check
          %p642 = pneg %p187
        $region34: #{transformer_sentence_forward.1} parent=11 // pred_check_branch
          %644 = sbr.rel (%p642) target = $region36
        $region35: #{transformer_sentence_forward.1} parent=11 // pred_region
          _
        $region36: #{transformer_sentence_forward.1} parent=11 // pred_fallthru
          _
        // Predicated region
        $region37: #{transformer_sentence_forward.1} parent=11 // pred_check
          %p645 = pneg %p208
        $region38: #{transformer_sentence_forward.1} parent=11 // pred_check_branch
          %647 = sbr.rel (%p645) target = $region40
        $region39: #{transformer_sentence_forward.1} parent=11 // pred_region
          _
        $region40: #{transformer_sentence_forward.1} parent=11 // pred_fallthru
          _
        // Predicated region
        $region41: #{transformer_sentence_forward.1} parent=11 // pred_check
          %p648 = pneg %p229
        $region42: #{transformer_sentence_forward.1} parent=11 // pred_check_branch
          %650 = sbr.rel (%p648) target = $region44
        $region43: #{transformer_sentence_forward.1} parent=11 // pred_region
          _
        $region44: #{transformer_sentence_forward.1} parent=11 // pred_fallthru
          _
        // Predicated region
        $region45: #{transformer_sentence_forward.1} parent=11 // pred_check
          %p651 = pneg %p250
        $region46: #{transformer_sentence_forward.1} parent=11 // pred_check_branch
          %653 = sbr.rel (%p651) target = $region48
        $region47: #{transformer_sentence_forward.1} parent=11 // pred_region
          _
        $region48: #{transformer_sentence_forward.1} parent=11 // pred_fallthru
          _
        // Predicated region
        $region49: #{transformer_sentence_forward.1} parent=11 // pred_check
          %p654 = pneg %p271
        $region50: #{transformer_sentence_forward.1} parent=11 // pred_check_branch
          %656 = sbr.rel (%p654) target = $region52
        $region51: #{transformer_sentence_forward.1} parent=11 // pred_region
          _
        $region52: #{transformer_sentence_forward.1} parent=11 // pred_fallthru
          _
        // Predicated region
        $region53: #{transformer_sentence_forward.1} parent=11 // pred_check
          %p657 = pneg %p292
        $region54: #{transformer_sentence_forward.1} parent=11 // pred_check_branch
          %659 = sbr.rel (%p657) target = $region56
        $region55: #{transformer_sentence_forward.1} parent=11 // pred_region
          _
        $region56: #{transformer_sentence_forward.1} parent=11 // pred_fallthru
          _
        // Predicated region
        $region57: #{transformer_sentence_forward.1} parent=11 // pred_check
          %p660 = pneg %p313
        $region58: #{transformer_sentence_forward.1} parent=11 // pred_check_branch
          %662 = sbr.rel (%p660) target = $region60
        $region59: #{transformer_sentence_forward.1} parent=11 // pred_region
          _
        $region60: #{transformer_sentence_forward.1} parent=11 // pred_fallthru
          _
        // Predicated region
        $region61: #{transformer_sentence_forward.1} parent=11 // pred_check
          %p663 = pneg %p334
        $region62: #{transformer_sentence_forward.1} parent=11 // pred_check_branch
          %665 = sbr.rel (%p663) target = $region64
        $region63: #{transformer_sentence_forward.1} parent=11 // pred_region
          _
        $region64: #{transformer_sentence_forward.1} parent=11 // pred_fallthru
          _
        // Predicated region
        $region65: #{transformer_sentence_forward.1} parent=11 // pred_check
          %p666 = pneg %p355
        $region66: #{transformer_sentence_forward.1} parent=11 // pred_check_branch
          %668 = sbr.rel (%p666) target = $region68
        $region67: #{transformer_sentence_forward.1} parent=11 // pred_region
          _
        $region68: #{transformer_sentence_forward.1} parent=11 // pred_fallthru
          _
        // Predicated region
        $region69: #{transformer_sentence_forward.1} parent=11 // pred_check
          %p669 = pneg %p376
        $region70: #{transformer_sentence_forward.1} parent=11 // pred_check_branch
          %671 = sbr.rel (%p669) target = $region72
        $region71: #{transformer_sentence_forward.1} parent=11 // pred_region
          _
        $region72: #{transformer_sentence_forward.1} parent=11 // pred_fallthru
          _
        // Predicated region
        $region73: #{transformer_sentence_forward.1} parent=11 // pred_check
          %p672 = pneg %p397
        $region74: #{transformer_sentence_forward.1} parent=11 // pred_check_branch
          %674 = sbr.rel (%p672) target = $region76
        $region75: #{transformer_sentence_forward.1} parent=11 // pred_region
          _
        $region76: #{transformer_sentence_forward.1} parent=11 // pred_fallthru
          _
        // Predicated region
        $region77: #{transformer_sentence_forward.1} parent=11 // pred_check
          %p675 = pneg %p418
        $region78: #{transformer_sentence_forward.1} parent=11 // pred_check_branch
          %677 = sbr.rel (%p675) target = $region80
        $region79: #{transformer_sentence_forward.1} parent=11 // pred_region
          _
        $region80: #{transformer_sentence_forward.1} parent=11 // pred_fallthru
          _
        // Predicated region
        $region81: #{transformer_sentence_forward.1} parent=11 // pred_check
          %p678 = pneg %p439
        $region82: #{transformer_sentence_forward.1} parent=11 // pred_check_branch
          %680 = sbr.rel (%p678) target = $region84
        $region83: #{transformer_sentence_forward.1} parent=11 // pred_region
          _
        $region84: #{transformer_sentence_forward.1} parent=11 // pred_fallthru
          _
        // Predicated region
        $region85: #{transformer_sentence_forward.1} parent=11 // pred_check
          %p681 = pneg %p460
        $region86: #{transformer_sentence_forward.1} parent=11 // pred_check_branch
          %683 = sbr.rel (%p681) target = $region88
        $region87: #{transformer_sentence_forward.1} parent=11 // pred_region
          _
        $region88: #{transformer_sentence_forward.1} parent=11 // pred_fallthru
          _
        // Predicated region
        $region89: #{transformer_sentence_forward.1} parent=11 // pred_check
          %p684 = pneg %p481
        $region90: #{transformer_sentence_forward.1} parent=11 // pred_check_branch
          %686 = sbr.rel (%p684) target = $region92
        $region91: #{transformer_sentence_forward.1} parent=11 // pred_region
          _
        $region92: #{transformer_sentence_forward.1} parent=11 // pred_fallthru
          _
        // Predicated region
        $region93: #{transformer_sentence_forward.1} parent=11 // pred_check
          %p687 = pneg %p502
        $region94: #{transformer_sentence_forward.1} parent=11 // pred_check_branch
          %689 = sbr.rel (%p687) target = $region96
        $region95: #{transformer_sentence_forward.1} parent=11 // pred_region
          _
        $region96: #{transformer_sentence_forward.1} parent=11 // pred_fallthru
          _
        // Predicated region
        $region97: #{transformer_sentence_forward.1} parent=11 // pred_check
          %p690 = pneg %p523
        $region98: #{transformer_sentence_forward.1} parent=11 // pred_check_branch
          %692 = sbr.rel (%p690) target = $region100
        $region99: #{transformer_sentence_forward.1} parent=11 // pred_region
          _
        $region100: #{transformer_sentence_forward.1} parent=11 // pred_fallthru
          _
        // Predicated region
        $region101: #{transformer_sentence_forward.1} parent=11 // pred_check
          %p693 = pneg %p544
        $region102: #{transformer_sentence_forward.1} parent=11 // pred_check_branch
          %695 = sbr.rel (%p693) target = $region104
        $region103: #{transformer_sentence_forward.1} parent=11 // pred_region
          _
        $region104: #{transformer_sentence_forward.1} parent=11 // pred_fallthru
          _
        // Predicated region
        $region105: #{transformer_sentence_forward.1} parent=11 // pred_check
          %p696 = pneg %p565
        $region106: #{transformer_sentence_forward.1} parent=11 // pred_check_branch
          %698 = sbr.rel (%p696) target = $region108
        $region107: #{transformer_sentence_forward.1} parent=11 // pred_region
          _
        $region108: #{transformer_sentence_forward.1} parent=11 // pred_fallthru
          _
        // Predicated region
        $region109: #{transformer_sentence_forward.1} parent=11 // pred_check
          %p699 = pneg %p586
        $region110: #{transformer_sentence_forward.1} parent=11 // pred_check_branch
          %701 = sbr.rel (%p699) target = $region112
        $region111: #{transformer_sentence_forward.1} parent=11 // pred_region
          _
        $region112: #{transformer_sentence_forward.1} parent=11 // pred_fallthru
          _
      $region12: #{transformer_sentence_forward.1} parent=5 // pred_fallthru
        _
      %p702 = scmp.lt.s32.totalorder %s35, 2
      // Predicated region
      $region113: #{transformer_sentence_forward.1} parent=5 // pred_check
        %p703 = pneg %p702
      $region114: #{transformer_sentence_forward.1} parent=5 // pred_check_branch
        %705 = sbr.rel (%p703) target = $region116
      $region115: #{transformer_sentence_forward.1} parent=5 // pred_region
        // Predicated region
        $region117: #{transformer_sentence_forward.1} parent=115 // pred_check
          %p706 = pneg %p55
        $region118: #{transformer_sentence_forward.1} parent=115 // pred_check_branch
          %708 = sbr.rel (%p706) target = $region120
        $region119: #{transformer_sentence_forward.1} parent=115 // pred_region
          %p709 = scmp.lt.s32.totalorder %s35, 1
          %s710 = scalar_select %p709, %s35, 1
          %s711 = smul.addr %s710, 2
          %s712 = smul.addr %s711, 8
          %s713 = scalar_lea.vmem %s0, %s712
        $region120: #{transformer_sentence_forward.1} parent=115 // pred_fallthru
          _
      $region116: #{transformer_sentence_forward.1} parent=5 // pred_fallthru
        _
      %p714 = scmp.le.s32.totalorder 1, %s35
      %p715 = scmp.lt.s32.totalorder %s35, 3
      %p716 = pnand %p714, %p715
      %p717 = pneg %p716
      // Predicated region
      $region121: #{transformer_sentence_forward.1} parent=5 // pred_check
        _
      $region122: #{transformer_sentence_forward.1} parent=5 // pred_check_branch
        %719 = sbr.rel (%p716) target = $region124
      $region123: #{transformer_sentence_forward.1} parent=5 // pred_region
        %s720 = ssub.s32 %s35, 1
        %p721 = scmp.lt.s32.totalorder %s40, 1
        %s722 = scalar_select %p721, %s40, 1
        %s723 = smul.addr %s722, 2
        %s724 = smul.addr %s723, 8
        %s725 = scalar_lea.vmem %s0, %s724
        %p726 = pneg %p61
        %p727 = pneg %p58
        %p728 = pneg %p82
        %p729 = pneg %p79
        %p730 = pneg %p103
        %p731 = pneg %p100
        %p732 = pneg %p124
        %p733 = pneg %p121
        %p734 = pneg %p145
        %p735 = pneg %p142
        %p736 = pneg %p166
        %p737 = pneg %p163
        %p738 = pneg %p187
        %p739 = pneg %p184
        %p740 = pneg %p208
        %p741 = pneg %p205
        %p742 = pneg %p229
        %p743 = pneg %p226
        %p744 = pneg %p250
        %p745 = pneg %p247
        %p746 = pneg %p271
        %p747 = pneg %p268
        %p748 = pneg %p292
        %p749 = pneg %p289
        %p750 = pneg %p313
        %p751 = pneg %p310
        %p752 = pneg %p334
        %p753 = pneg %p331
        %p754 = pneg %p355
        %p755 = pneg %p352
        %p756 = pneg %p376
        %p757 = pneg %p373
        %p758 = pneg %p397
        %p759 = pneg %p394
        %p760 = pneg %p418
        %p761 = pneg %p415
        %p762 = pneg %p439
        %p763 = pneg %p436
        %p764 = pneg %p460
        %p765 = pneg %p457
        %p766 = pneg %p481
        %p767 = pneg %p478
        %p768 = pneg %p502
        %p769 = pneg %p499
        %p770 = pneg %p523
        %p771 = pneg %p520
        %p772 = pneg %p544
        %p773 = pneg %p541
        %p774 = pneg %p565
        %p775 = pneg %p562
        %p776 = pneg %p586
        %p777 = pneg %p583
        %p778 = pneg %p612
        %p779 = pneg %p609
        %s780 = sand.u32 %s599, 1
        %s781 = scalar_lea.sflag [#allocation3], %s780
        %s782 = sand.u32 %s599, 1
        %s783 = scalar_lea.vmem [#allocation2], %s782
        %p784 = scmp.lt.s32.totalorder %s40, 1
        %s785 = scalar_select %p784, %s40, 1
        %s786 = smul.addr %s785, 2
        %s787 = smul.addr %s786, 8
        %s788 = scalar_lea.vmem %s0, %s787
        %v789 = vld [vmem:[%s788] sm:$0xff]
        %v790 = vld [vmem:[%s788 + $0x8] sm:$0xff]
        %v791 = vmul.f32 %v789, 2.0
        %v792 = vmul.f32 %v790, 2.0
        %v793 = vld [vmem:[%s1] sm:$0xff]
        %v794 = vadd.f32 %v791, %v793
        %v795 = vadd.f32 %v792, %v793
        %v796 = vld [vmem:[%s2] sm:$0x1]
        %v797 = vld [vmem:[%s3] sm:$0x1]
        %vm798 = vcmask 261120
        %v799 = vsel %vm798, %v794, 0.0
        %800 = vadd.xlane.f32.xlu0 %v799
        %v801 = vpop.xlane.xlu0 %800
        %v802 = vsel %vm798, %v795, 0.0
        %803 = vadd.xlane.f32.xlu0 %v802
        %v804 = vpop.xlane.xlu0 %803
        %v805 = vrcp.pop 32.0
        %v806 = vmul.f32 %v801, %v805
        %v807 = vmul.f32 %v804, %v805
        %v808 = vsub.f32 %v794, %v806
        %v809 = vsub.f32 %v795, %v807
        %v810 = vmul.f32 %v808, %v808
        %v811 = vmul.f32 %v809, %v809
        %v812 = vsel %vm798, %v810, 0.0
        %813 = vadd.xlane.f32.xlu0 %v812
        %v814 = vpop.xlane.xlu0 %813
        %v815 = vsel %vm798, %v811, 0.0
        %816 = vadd.xlane.f32.xlu0 %v815
        %v817 = vpop.xlane.xlu0 %816
        %v818 = vmul.f32 %v814, %v805
        %v819 = vmul.f32 %v817, %v805
        %v820 = vadd.f32 %v818, 1e-12
        %v821 = vadd.f32 %v819, 1e-12
        %v822 = vrsqrt.pop %v820
        %v823 = vrsqrt.pop %v821
        %v824 = vmul.f32 %v808, %v822
        %v825 = vmul.f32 %v809, %v823
        %v827 = vlaneseq
        %v828 = vshrl.u32 %v827, 7
        %v829 = vsub.s32 0, %v828
        %v830 = vrot.slane %v796, %v829
        %v832 = vmul.f32 %v824, %v830
        %v833 = vmul.f32 %v825, %v830
        %v835 = vlaneseq
        %v836 = vshrl.u32 %v835, 7
        %v837 = vsub.s32 0, %v836
        %v838 = vrot.slane %v797, %v837
        %v840 = vadd.f32 %v832, %v838
        %v841 = vadd.f32 %v833, %v838
        %v842 = vld [vmem:[%s4] sm:$0xff]
        %v843 = vld [vmem:[%s4 + $0x8] sm:$0xff]
        %v844 = vld [vmem:[%s4 + $0x10] sm:$0xff]
        %v845 = vld [vmem:[%s4 + $0x18] sm:$0xff]
        %v846 = vld [vmem:[%s5] sm:$0x1]
        %v848 = vlaneseq
        %v849 = vshrl.u32 %v848, 7
        %v850 = vsub.s32 0, %v849
        %v851 = vrot.slane %v846, %v850
        %v854 = vsel %vm798, %v840, 0
        %v857 = vsel %vm798, %v841, 0
        %859 = vmatprep.subr.mxu0 0.0
        %860 = vmatpush1.msra.mxu0 %v842
        %861 = vmatprep.subr.mxu0 0.0
        %862 = vmatpush1.msra.mxu0 %v843
        %863 = vmatprep.subr.mxu0 0.0
        %864 = vmatpush1.msra.mxu0 %v844
        %865 = vmatprep.subr.mxu0 0.0
        %866 = vmatpush1.msra.mxu0 %v845
        %867 = vmatprep.subr.mxu0 0.0
        %868 = vmatpush1.msra.mxu0 0.0
        %869 = vmatprep.subr.mxu0 0.0
        %870 = vmatpush1.msra.mxu0 0.0
        %871 = vmatprep.subr.mxu0 0.0
        %872 = vmatpush1.msra.mxu0 0.0
        %873 = vmatprep.subr.mxu0 0.0
        %874 = vmatpush1.msra.mxu0 0.0
        %875 = vmatprep.subr.mxu0 0.0
        %876 = vmatpush1.msra.mxu0 0.0
        %877 = vmatprep.subr.mxu0 0.0
        %878 = vmatpush1.msra.mxu0 0.0
        %879 = vmatprep.subr.mxu0 0.0
        %880 = vmatpush1.msra.mxu0 0.0
        %881 = vmatprep.subr.mxu0 0.0
        %882 = vmatpush1.msra.mxu0 0.0
        %883 = vmatprep.subr.mxu0 0.0
        %884 = vmatpush1.msra.mxu0 0.0
        %885 = vmatprep.subr.mxu0 0.0
        %886 = vmatpush1.msra.mxu0 0.0
        %887 = vmatprep.subr.mxu0 0.0
        %888 = vmatpush1.msra.mxu0 0.0
        %889 = vmatprep.subr.mxu0 0.0
        %890 = vmatpush1.msra.mxu0 0.0
        %891 = vmatprep.subr.mxu0 0.0
        %892 = vmatpush1.msra.mxu0 0.0
        %893 = vmatprep.subr.mxu0 0.0
        %894 = vmatpush1.msra.mxu0 0.0
        %895 = vmatprep.subr.mxu0 0.0
        %896 = vmatpush1.msra.mxu0 0.0
        %897 = vmatprep.subr.mxu0 0.0
        %898 = vmatpush1.msra.mxu0 0.0
        %899 = vmatprep.subr.mxu0 0.0
        %900 = vmatpush1.msra.mxu0 0.0
        %901 = vmatprep.subr.mxu0 0.0
        %902 = vmatpush1.msra.mxu0 0.0
        %903 = vmatprep.subr.mxu0 0.0
        %904 = vmatpush1.msra.mxu0 0.0
        %905 = vmatprep.subr.mxu0 0.0
        %906 = vmatpush1.msra.mxu0 0.0
        %907 = vmatprep.subr.mxu0 0.0
        %908 = vmatpush1.msra.mxu0 0.0
        %909 = vmatprep.subr.mxu0 0.0
        %910 = vmatpush1.msra.mxu0 0.0
        %911 = vmatprep.subr.mxu0 0.0
        %912 = vmatpush1.msra.mxu0 0.0
        %913 = vmatprep.subr.mxu0 0.0
        %914 = vmatpush1.msra.mxu0 0.0
        %915 = vmatprep.subr.mxu0 0.0
        %916 = vmatpush1.msra.mxu0 0.0
        %917 = vmatprep.subr.mxu0 0.0
        %918 = vmatpush1.msra.mxu0 0.0
        %919 = vmatprep.subr.mxu0 0.0
        %920 = vmatpush1.msra.mxu0 0.0
        %921 = vmatprep.subr.mxu0 0.0
        %922 = vmatpush1.msra.mxu0 0.0
        %923 = vmatprep.mubr.f32.mxu0 0.0
        %924 = vmatmul.mubr.f32.gmra.mrb[0].mxu0 %v854
        %v925 = vpop.f32.mrb[0].mxu0
        %v926 = vadd.f32 %v851, %v925
        %v927 = vpop.f32.mrb[0].mxu0
        %928 = vmatprep.mubr.f32.mxu0 0.0
        %929 = vmatmul.mubr.f32.gmra.mrb[0].mxu0 %v857
        %v930 = vpop.f32.mrb[0].mxu0
        %v931 = vadd.f32 %v851, %v930
        %v932 = vpop.f32.mrb[0].mxu0
        %933 = vdwg.mxu0
        %v934 = vld [vmem:[%s6] sm:$0xff]
        %v935 = vld [vmem:[%s6 + $0x8] sm:$0xff]
        %v936 = vld [vmem:[%s6 + $0x10] sm:$0xff]
        %v937 = vld [vmem:[%s6 + $0x18] sm:$0xff]
        %v938 = vld [vmem:[%s7] sm:$0x1]
        %v940 = vlaneseq
        %v941 = vshrl.u32 %v940, 7
        %v942 = vsub.s32 0, %v941
        %v943 = vrot.slane %v938, %v942
        %945 = vmatprep.subr.mxu0 0.0
        %946 = vmatpush1.msra.mxu0 %v934
        %947 = vmatprep.subr.mxu0 0.0
        %948 = vmatpush1.msra.mxu0 %v935
        %949 = vmatprep.subr.mxu0 0.0
        %950 = vmatpush1.msra.mxu0 %v936
        %951 = vmatprep.subr.mxu0 0.0
        %952 = vmatpush1.msra.mxu0 %v937
        %953 = vmatprep.subr.mxu0 0.0
        %954 = vmatpush1.msra.mxu0 0.0
        %955 = vmatprep.subr.mxu0 0.0
        %956 = vmatpush1.msra.mxu0 0.0
        %957 = vmatprep.subr.mxu0 0.0
        %958 = vmatpush1.msra.mxu0 0.0
        %959 = vmatprep.subr.mxu0 0.0
        %960 = vmatpush1.msra.mxu0 0.0
        %961 = vmatprep.subr.mxu0 0.0
        %962 = vmatpush1.msra.mxu0 0.0
        %963 = vmatprep.subr.mxu0 0.0
        %964 = vmatpush1.msra.mxu0 0.0
        %965 = vmatprep.subr.mxu0 0.0
        %966 = vmatpush1.msra.mxu0 0.0
        %967 = vmatprep.subr.mxu0 0.0
        %968 = vmatpush1.msra.mxu0 0.0
        %969 = vmatprep.subr.mxu0 0.0
        %970 = vmatpush1.msra.mxu0 0.0
        %971 = vmatprep.subr.mxu0 0.0
        %972 = vmatpush1.msra.mxu0 0.0
        %973 = vmatprep.subr.mxu0 0.0
        %974 = vmatpush1.msra.mxu0 0.0
        %975 = vmatprep.subr.mxu0 0.0
        %976 = vmatpush1.msra.mxu0 0.0
        %977 = vmatprep.subr.mxu0 0.0
        %978 = vmatpush1.msra.mxu0 0.0
        %979 = vmatprep.subr.mxu0 0.0
        %980 = vmatpush1.msra.mxu0 0.0
        %981 = vmatprep.subr.mxu0 0.0
        %982 = vmatpush1.msra.mxu0 0.0
        %983 = vmatprep.subr.mxu0 0.0
        %984 = vmatpush1.msra.mxu0 0.0
        %985 = vmatprep.subr.mxu0 0.0
        %986 = vmatpush1.msra.mxu0 0.0
        %987 = vmatprep.subr.mxu0 0.0
        %988 = vmatpush1.msra.mxu0 0.0
        %989 = vmatprep.subr.mxu0 0.0
        %990 = vmatpush1.msra.mxu0 0.0
        %991 = vmatprep.subr.mxu0 0.0
        %992 = vmatpush1.msra.mxu0 0.0
        %993 = vmatprep.subr.mxu0 0.0
        %994 = vmatpush1.msra.mxu0 0.0
        %995 = vmatprep.subr.mxu0 0.0
        %996 = vmatpush1.msra.mxu0 0.0
        %997 = vmatprep.subr.mxu0 0.0
        %998 = vmatpush1.msra.mxu0 0.0
        %999 = vmatprep.subr.mxu0 0.0
        %1000 = vmatpush1.msra.mxu0 0.0
        %1001 = vmatprep.subr.mxu0 0.0
        %1002 = vmatpush1.msra.mxu0 0.0
        %1003 = vmatprep.subr.mxu0 0.0
        %1004 = vmatpush1.msra.mxu0 0.0
        %1005 = vmatprep.subr.mxu0 0.0
        %1006 = vmatpush1.msra.mxu0 0.0
        %1007 = vmatprep.subr.mxu0 0.0
        %1008 = vmatpush1.msra.mxu0 0.0
        %1009 = vmatprep.mubr.f32.mxu0 0.0
        %1010 = vmatmul.mubr.f32.gmra.mrb[0].mxu0 %v854
        %v1011 = vpop.f32.mrb[0].mxu0
        %v1012 = vadd.f32 %v943, %v1011
        %v1013 = vpop.f32.mrb[0].mxu0
        %1014 = vmatprep.mubr.f32.mxu0 0.0
        %1015 = vmatmul.mubr.f32.gmra.mrb[0].mxu0 %v857
        %v1016 = vpop.f32.mrb[0].mxu0
        %v1017 = vadd.f32 %v943, %v1016
        %v1018 = vpop.f32.mrb[0].mxu0
        %1019 = vdwg.mxu0
        %v1020 = vld [vmem:[%s8] sm:$0xff]
        %v1021 = vld [vmem:[%s8 + $0x8] sm:$0xff]
        %v1022 = vld [vmem:[%s8 + $0x10] sm:$0xff]
        %v1023 = vld [vmem:[%s8 + $0x18] sm:$0xff]
        %v1024 = vld [vmem:[%s9] sm:$0x1]
        %v1026 = vlaneseq
        %v1027 = vshrl.u32 %v1026, 7
        %v1028 = vsub.s32 0, %v1027
        %v1029 = vrot.slane %v1024, %v1028
        %1031 = vmatprep.subr.mxu0 0.0
        %1032 = vmatpush1.msra.mxu0 %v1020
        %1033 = vmatprep.subr.mxu0 0.0
        %1034 = vmatpush1.msra.mxu0 %v1021
        %1035 = vmatprep.subr.mxu0 0.0
        %1036 = vmatpush1.msra.mxu0 %v1022
        %1037 = vmatprep.subr.mxu0 0.0
        %1038 = vmatpush1.msra.mxu0 %v1023
        %1039 = vmatprep.subr.mxu0 0.0
        %1040 = vmatpush1.msra.mxu0 0.0
        %1041 = vmatprep.subr.mxu0 0.0
        %1042 = vmatpush1.msra.mxu0 0.0
        %1043 = vmatprep.subr.mxu0 0.0
        %1044 = vmatpush1.msra.mxu0 0.0
        %1045 = vmatprep.subr.mxu0 0.0
        %1046 = vmatpush1.msra.mxu0 0.0
        %1047 = vmatprep.subr.mxu0 0.0
        %1048 = vmatpush1.msra.mxu0 0.0
        %1049 = vmatprep.subr.mxu0 0.0
        %1050 = vmatpush1.msra.mxu0 0.0
        %1051 = vmatprep.subr.mxu0 0.0
        %1052 = vmatpush1.msra.mxu0 0.0
        %1053 = vmatprep.subr.mxu0 0.0
        %1054 = vmatpush1.msra.mxu0 0.0
        %1055 = vmatprep.subr.mxu0 0.0
        %1056 = vmatpush1.msra.mxu0 0.0
        %1057 = vmatprep.subr.mxu0 0.0
        %1058 = vmatpush1.msra.mxu0 0.0
        %1059 = vmatprep.subr.mxu0 0.0
        %1060 = vmatpush1.msra.mxu0 0.0
        %1061 = vmatprep.subr.mxu0 0.0
        %1062 = vmatpush1.msra.mxu0 0.0
        %1063 = vmatprep.subr.mxu0 0.0
        %1064 = vmatpush1.msra.mxu0 0.0
        %1065 = vmatprep.subr.mxu0 0.0
        %1066 = vmatpush1.msra.mxu0 0.0
        %1067 = vmatprep.subr.mxu0 0.0
        %1068 = vmatpush1.msra.mxu0 0.0
        %1069 = vmatprep.subr.mxu0 0.0
        %1070 = vmatpush1.msra.mxu0 0.0
        %1071 = vmatprep.subr.mxu0 0.0
        %1072 = vmatpush1.msra.mxu0 0.0
        %1073 = vmatprep.subr.mxu0 0.0
        %1074 = vmatpush1.msra.mxu0 0.0
        %1075 = vmatprep.subr.mxu0 0.0
        %1076 = vmatpush1.msra.mxu0 0.0
        %1077 = vmatprep.subr.mxu0 0.0
        %1078 = vmatpush1.msra.mxu0 0.0
        %1079 = vmatprep.subr.mxu0 0.0
        %1080 = vmatpush1.msra.mxu0 0.0
        %1081 = vmatprep.subr.mxu0 0.0
        %1082 = vmatpush1.msra.mxu0 0.0
        %1083 = vmatprep.subr.mxu0 0.0
        %1084 = vmatpush1.msra.mxu0 0.0
        %1085 = vmatprep.subr.mxu0 0.0
        %1086 = vmatpush1.msra.mxu0 0.0
        %1087 = vmatprep.subr.mxu0 0.0
        %1088 = vmatpush1.msra.mxu0 0.0
        %1089 = vmatprep.subr.mxu0 0.0
        %1090 = vmatpush1.msra.mxu0 0.0
        %1091 = vmatprep.subr.mxu0 0.0
        %1092 = vmatpush1.msra.mxu0 0.0
        %1093 = vmatprep.subr.mxu0 0.0
        %1094 = vmatpush1.msra.mxu0 0.0
        %1095 = vmatprep.mubr.f32.mxu0 0.0
        %1096 = vmatmul.mubr.f32.gmra.mrb[0].mxu0 %v854
        %v1097 = vpop.f32.mrb[0].mxu0
        %v1098 = vadd.f32 %v1029, %v1097
        %v1099 = vpop.f32.mrb[0].mxu0
        %1100 = vmatprep.mubr.f32.mxu0 0.0
        %1101 = vmatmul.mubr.f32.gmra.mrb[0].mxu0 %v857
        %v1102 = vpop.f32.mrb[0].mxu0
        %v1103 = vadd.f32 %v1029, %v1102
        %v1104 = vpop.f32.mrb[0].mxu0
        %1105 = vdwg.mxu0
        %vm1106 = vcmask 130048
        %v1108 = vsel %vm1106, %v926, 0
        %v1111 = vsel %vm1106, %v1012, 0
        %1113 = vmatprep.subr.mxu0 0.0
        %1114 = vmatpush1.xpose.msra.mxu0 %v1111
        %1115 = vmatprep.subr.mxu0 0.0
        %1116 = vmatpush1.xpose.msra.mxu0 0.0
        %1117 = vmatprep.subr.mxu0 0.0
        %1118 = vmatpush1.xpose.msra.mxu0 0.0
        %1119 = vmatprep.subr.mxu0 0.0
        %1120 = vmatpush1.xpose.msra.mxu0 0.0
        %1121 = vmatprep.subr.mxu0 0.0
        %1122 = vmatpush1.xpose.msra.mxu0 0.0
        %1123 = vmatprep.subr.mxu0 0.0
        %1124 = vmatpush1.xpose.msra.mxu0 0.0
        %1125 = vmatprep.subr.mxu0 0.0
        %1126 = vmatpush1.xpose.msra.mxu0 0.0
        %1127 = vmatprep.subr.mxu0 0.0
        %1128 = vmatpush1.xpose.msra.mxu0 0.0
        %1129 = vmatprep.subr.mxu0 0.0
        %1130 = vmatpush1.xpose.msra.mxu0 0.0
        %1131 = vmatprep.subr.mxu0 0.0
        %1132 = vmatpush1.xpose.msra.mxu0 0.0
        %1133 = vmatprep.subr.mxu0 0.0
        %1134 = vmatpush1.xpose.msra.mxu0 0.0
        %1135 = vmatprep.subr.mxu0 0.0
        %1136 = vmatpush1.xpose.msra.mxu0 0.0
        %1137 = vmatprep.subr.mxu0 0.0
        %1138 = vmatpush1.xpose.msra.mxu0 0.0
        %1139 = vmatprep.subr.mxu0 0.0
        %1140 = vmatpush1.xpose.msra.mxu0 0.0
        %1141 = vmatprep.subr.mxu0 0.0
        %1142 = vmatpush1.xpose.msra.mxu0 0.0
        %1143 = vmatprep.subr.mxu0 0.0
        %1144 = vmatpush1.xpose.msra.mxu0 0.0
        %1145 = vmatprep.subr.mxu0 0.0
        %1146 = vmatpush1.xpose.msra.mxu0 0.0
        %1147 = vmatprep.subr.mxu0 0.0
        %1148 = vmatpush1.xpose.msra.mxu0 0.0
        %1149 = vmatprep.subr.mxu0 0.0
        %1150 = vmatpush1.xpose.msra.mxu0 0.0
        %1151 = vmatprep.subr.mxu0 0.0
        %1152 = vmatpush1.xpose.msra.mxu0 0.0
        %1153 = vmatprep.subr.mxu0 0.0
        %1154 = vmatpush1.xpose.msra.mxu0 0.0
        %1155 = vmatprep.subr.mxu0 0.0
        %1156 = vmatpush1.xpose.msra.mxu0 0.0
        %1157 = vmatprep.subr.mxu0 0.0
        %1158 = vmatpush1.xpose.msra.mxu0 0.0
        %1159 = vmatprep.subr.mxu0 0.0
        %1160 = vmatpush1.xpose.msra.mxu0 0.0
        %1161 = vmatprep.subr.mxu0 0.0
        %1162 = vmatpush1.xpose.msra.mxu0 0.0
        %1163 = vmatprep.subr.mxu0 0.0
        %1164 = vmatpush1.xpose.msra.mxu0 0.0
        %1165 = vmatprep.subr.mxu0 0.0
        %1166 = vmatpush1.xpose.msra.mxu0 0.0
        %1167 = vmatprep.subr.mxu0 0.0
        %1168 = vmatpush1.xpose.msra.mxu0 0.0
        %1169 = vmatprep.subr.mxu0 0.0
        %1170 = vmatpush1.xpose.msra.mxu0 0.0
        %1171 = vmatprep.subr.mxu0 0.0
        %1172 = vmatpush1.xpose.msra.mxu0 0.0
        %1173 = vmatprep.subr.mxu0 0.0
        %1174 = vmatpush1.xpose.msra.mxu0 0.0
        %1175 = vmatprep.subr.mxu0 0.0
        %1176 = vmatpush1.xpose.msra.mxu0 0.0
        %1177 = vmatprep.mubr.f32.mxu0 0.0
        %1178 = vmatmul.mubr.f32.gmra.mrb[0].mxu0 %v1108
        %v1179 = vpop.f32.mrb[0].mxu0
        %v1180 = vadd.f32 0.0, %v1179
        %v1181 = vpop.f32.mrb[0].mxu0
        %1182 = vdwg.mxu0
        %v1184 = vsel %vm1106, %v931, 0
        %v1187 = vsel %vm1106, %v1017, 0
        %1189 = vmatprep.subr.mxu0 0.0
        %1190 = vmatpush1.xpose.msra.mxu0 %v1187
        %1191 = vmatprep.subr.mxu0 0.0
        %1192 = vmatpush1.xpose.msra.mxu0 0.0
        %1193 = vmatprep.subr.mxu0 0.0
        %1194 = vmatpush1.xpose.msra.mxu0 0.0
        %1195 = vmatprep.subr.mxu0 0.0
        %1196 = vmatpush1.xpose.msra.mxu0 0.0
        %1197 = vmatprep.subr.mxu0 0.0
        %1198 = vmatpush1.xpose.msra.mxu0 0.0
        %1199 = vmatprep.subr.mxu0 0.0
        %1200 = vmatpush1.xpose.msra.mxu0 0.0
        %1201 = vmatprep.subr.mxu0 0.0
        %1202 = vmatpush1.xpose.msra.mxu0 0.0
        %1203 = vmatprep.subr.mxu0 0.0
        %1204 = vmatpush1.xpose.msra.mxu0 0.0
        %1205 = vmatprep.subr.mxu0 0.0
        %1206 = vmatpush1.xpose.msra.mxu0 0.0
        %1207 = vmatprep.subr.mxu0 0.0
        %1208 = vmatpush1.xpose.msra.mxu0 0.0
        %1209 = vmatprep.subr.mxu0 0.0
        %1210 = vmatpush1.xpose.msra.mxu0 0.0
        %1211 = vmatprep.subr.mxu0 0.0
        %1212 = vmatpush1.xpose.msra.mxu0 0.0
        %1213 = vmatprep.subr.mxu0 0.0
        %1214 = vmatpush1.xpose.msra.mxu0 0.0
        %1215 = vmatprep.subr.mxu0 0.0
        %1216 = vmatpush1.xpose.msra.mxu0 0.0
        %1217 = vmatprep.subr.mxu0 0.0
        %1218 = vmatpush1.xpose.msra.mxu0 0.0
        %1219 = vmatprep.subr.mxu0 0.0
        %1220 = vmatpush1.xpose.msra.mxu0 0.0
        %1221 = vmatprep.subr.mxu0 0.0
        %1222 = vmatpush1.xpose.msra.mxu0 0.0
        %1223 = vmatprep.subr.mxu0 0.0
        %1224 = vmatpush1.xpose.msra.mxu0 0.0
        %1225 = vmatprep.subr.mxu0 0.0
        %1226 = vmatpush1.xpose.msra.mxu0 0.0
        %1227 = vmatprep.subr.mxu0 0.0
        %1228 = vmatpush1.xpose.msra.mxu0 0.0
        %1229 = vmatprep.subr.mxu0 0.0
        %1230 = vmatpush1.xpose.msra.mxu0 0.0
        %1231 = vmatprep.subr.mxu0 0.0
        %1232 = vmatpush1.xpose.msra.mxu0 0.0
        %1233 = vmatprep.subr.mxu0 0.0
        %1234 = vmatpush1.xpose.msra.mxu0 0.0
        %1235 = vmatprep.subr.mxu0 0.0
        %1236 = vmatpush1.xpose.msra.mxu0 0.0
        %1237 = vmatprep.subr.mxu0 0.0
        %1238 = vmatpush1.xpose.msra.mxu0 0.0
        %1239 = vmatprep.subr.mxu0 0.0
        %1240 = vmatpush1.xpose.msra.mxu0 0.0
        %1241 = vmatprep.subr.mxu0 0.0
        %1242 = vmatpush1.xpose.msra.mxu0 0.0
        %1243 = vmatprep.subr.mxu0 0.0
        %1244 = vmatpush1.xpose.msra.mxu0 0.0
        %1245 = vmatprep.subr.mxu0 0.0
        %1246 = vmatpush1.xpose.msra.mxu0 0.0
        %1247 = vmatprep.subr.mxu0 0.0
        %1248 = vmatpush1.xpose.msra.mxu0 0.0
        %1249 = vmatprep.subr.mxu0 0.0
        %1250 = vmatpush1.xpose.msra.mxu0 0.0
        %1251 = vmatprep.subr.mxu0 0.0
        %1252 = vmatpush1.xpose.msra.mxu0 0.0
        %1253 = vmatprep.mubr.f32.mxu0 0.0
        %1254 = vmatmul.mubr.f32.gmra.mrb[0].mxu0 %v1184
        %v1255 = vpop.f32.mrb[0].mxu0
        %v1256 = vadd.f32 0.0, %v1255
        %v1257 = vpop.f32.mrb[0].mxu0
        %1258 = vdwg.mxu0
        %v1259 = vmul.f32 %v1180, 0.25
        %v1260 = vmul.f32 %v1256, 0.25
        %vm1261 = vcmask 64512
        %v1262 = vsel %vm1261, %v1259, -inf
        %1263 = vmax.xlane.f32.xlu0 %v1262
        %v1264 = vpop.xlane.xlu0 %1263
        %v1265 = vsel %vm1261, %v1260, -inf
        %1266 = vmax.xlane.f32.xlu0 %v1265
        %v1267 = vpop.xlane.xlu0 %1266
        %v1268 = vsub.f32 %v1259, %v1264
        %v1269 = vsub.f32 %v1260, %v1267
        %v1270 = vmul.f32 %v1268, 1.442695
        %v1271 = vpow.pop %v1270
        %v1272 = vmul.f32 %v1269, 1.442695
        %v1273 = vpow.pop %v1272
        %v1274 = vsel %vm1261, %v1271, 0.0
        %1275 = vadd.xlane.f32.xlu0 %v1274
        %v1276 = vpop.xlane.xlu0 %1275
        %v1277 = vsel %vm1261, %v1273, 0.0
        %1278 = vadd.xlane.f32.xlu0 %v1277
        %v1279 = vpop.xlane.xlu0 %1278
        %v1280 = vrcp.pop %v1276
        %v1281 = vrcp.pop %v1279
        %v1282 = vmul.f32 %v1271, %v1280
        %v1283 = vmul.f32 %v1273, %v1281
        %v1285 = vsel %vm1261, %v1282, 0
        %1287 = vmatprep.subr.mxu0 0.0
        %1288 = vmatpush1.msra.mxu0 %v1098
        %1289 = vmatprep.subr.mxu0 0.0
        %1290 = vmatpush1.msra.mxu0 0.0
        %1291 = vmatprep.subr.mxu0 0.0
        %1292 = vmatpush1.msra.mxu0 0.0
        %1293 = vmatprep.subr.mxu0 0.0
        %1294 = vmatpush1.msra.mxu0 0.0
        %1295 = vmatprep.subr.mxu0 0.0
        %1296 = vmatpush1.msra.mxu0 0.0
        %1297 = vmatprep.subr.mxu0 0.0
        %1298 = vmatpush1.msra.mxu0 0.0
        %1299 = vmatprep.subr.mxu0 0.0
        %1300 = vmatpush1.msra.mxu0 0.0
        %1301 = vmatprep.subr.mxu0 0.0
        %1302 = vmatpush1.msra.mxu0 0.0
        %1303 = vmatprep.subr.mxu0 0.0
        %1304 = vmatpush1.msra.mxu0 0.0
        %1305 = vmatprep.subr.mxu0 0.0
        %1306 = vmatpush1.msra.mxu0 0.0
        %1307 = vmatprep.subr.mxu0 0.0
        %1308 = vmatpush1.msra.mxu0 0.0
        %1309 = vmatprep.subr.mxu0 0.0
        %1310 = vmatpush1.msra.mxu0 0.0
        %1311 = vmatprep.subr.mxu0 0.0
        %1312 = vmatpush1.msra.mxu0 0.0
        %1313 = vmatprep.subr.mxu0 0.0
        %1314 = vmatpush1.msra.mxu0 0.0
        %1315 = vmatprep.subr.mxu0 0.0
        %1316 = vmatpush1.msra.mxu0 0.0
        %1317 = vmatprep.subr.mxu0 0.0
        %1318 = vmatpush1.msra.mxu0 0.0
        %1319 = vmatprep.subr.mxu0 0.0
        %1320 = vmatpush1.msra.mxu0 0.0
        %1321 = vmatprep.subr.mxu0 0.0
        %1322 = vmatpush1.msra.mxu0 0.0
        %1323 = vmatprep.subr.mxu0 0.0
        %1324 = vmatpush1.msra.mxu0 0.0
        %1325 = vmatprep.subr.mxu0 0.0
        %1326 = vmatpush1.msra.mxu0 0.0
        %1327 = vmatprep.subr.mxu0 0.0
        %1328 = vmatpush1.msra.mxu0 0.0
        %1329 = vmatprep.subr.mxu0 0.0
        %1330 = vmatpush1.msra.mxu0 0.0
        %1331 = vmatprep.subr.mxu0 0.0
        %1332 = vmatpush1.msra.mxu0 0.0
        %1333 = vmatprep.subr.mxu0 0.0
        %1334 = vmatpush1.msra.mxu0 0.0
        %1335 = vmatprep.subr.mxu0 0.0
        %1336 = vmatpush1.msra.mxu0 0.0
        %1337 = vmatprep.subr.mxu0 0.0
        %1338 = vmatpush1.msra.mxu0 0.0
        %1339 = vmatprep.subr.mxu0 0.0
        %1340 = vmatpush1.msra.mxu0 0.0
        %1341 = vmatprep.subr.mxu0 0.0
        %1342 = vmatpush1.msra.mxu0 0.0
        %1343 = vmatprep.subr.mxu0 0.0
        %1344 = vmatpush1.msra.mxu0 0.0
        %1345 = vmatprep.subr.mxu0 0.0
        %1346 = vmatpush1.msra.mxu0 0.0
        %1347 = vmatprep.subr.mxu0 0.0
        %1348 = vmatpush1.msra.mxu0 0.0
        %1349 = vmatprep.subr.mxu0 0.0
        %1350 = vmatpush1.msra.mxu0 0.0
        %1351 = vmatprep.mubr.f32.mxu0 0.0
        %1352 = vmatmul.mubr.f32.gmra.mrb[0].mxu0 %v1285
        %v1353 = vpop.f32.mrb[0].mxu0
        %v1354 = vadd.f32 0.0, %v1353
        %v1355 = vpop.f32.mrb[0].mxu0
        %1356 = vdwg.mxu0
        %v1358 = vsel %vm1261, %v1283, 0
        %1360 = vmatprep.subr.mxu0 0.0
        %1361 = vmatpush1.msra.mxu0 %v1103
        %1362 = vmatprep.subr.mxu0 0.0
        %1363 = vmatpush1.msra.mxu0 0.0
        %1364 = vmatprep.subr.mxu0 0.0
        %1365 = vmatpush1.msra.mxu0 0.0
        %1366 = vmatprep.subr.mxu0 0.0
        %1367 = vmatpush1.msra.mxu0 0.0
        %1368 = vmatprep.subr.mxu0 0.0
        %1369 = vmatpush1.msra.mxu0 0.0
        %1370 = vmatprep.subr.mxu0 0.0
        %1371 = vmatpush1.msra.mxu0 0.0
        %1372 = vmatprep.subr.mxu0 0.0
        %1373 = vmatpush1.msra.mxu0 0.0
        %1374 = vmatprep.subr.mxu0 0.0
        %1375 = vmatpush1.msra.mxu0 0.0
        %1376 = vmatprep.subr.mxu0 0.0
        %1377 = vmatpush1.msra.mxu0 0.0
        %1378 = vmatprep.subr.mxu0 0.0
        %1379 = vmatpush1.msra.mxu0 0.0
        %1380 = vmatprep.subr.mxu0 0.0
        %1381 = vmatpush1.msra.mxu0 0.0
        %1382 = vmatprep.subr.mxu0 0.0
        %1383 = vmatpush1.msra.mxu0 0.0
        %1384 = vmatprep.subr.mxu0 0.0
        %1385 = vmatpush1.msra.mxu0 0.0
        %1386 = vmatprep.subr.mxu0 0.0
        %1387 = vmatpush1.msra.mxu0 0.0
        %1388 = vmatprep.subr.mxu0 0.0
        %1389 = vmatpush1.msra.mxu0 0.0
        %1390 = vmatprep.subr.mxu0 0.0
        %1391 = vmatpush1.msra.mxu0 0.0
        %1392 = vmatprep.subr.mxu0 0.0
        %1393 = vmatpush1.msra.mxu0 0.0
        %1394 = vmatprep.subr.mxu0 0.0
        %1395 = vmatpush1.msra.mxu0 0.0
        %1396 = vmatprep.subr.mxu0 0.0
        %1397 = vmatpush1.msra.mxu0 0.0
        %1398 = vmatprep.subr.mxu0 0.0
        %1399 = vmatpush1.msra.mxu0 0.0
        %1400 = vmatprep.subr.mxu0 0.0
        %1401 = vmatpush1.msra.mxu0 0.0
        %1402 = vmatprep.subr.mxu0 0.0
        %1403 = vmatpush1.msra.mxu0 0.0
        %1404 = vmatprep.subr.mxu0 0.0
        %1405 = vmatpush1.msra.mxu0 0.0
        %1406 = vmatprep.subr.mxu0 0.0
        %1407 = vmatpush1.msra.mxu0 0.0
        %1408 = vmatprep.subr.mxu0 0.0
        %1409 = vmatpush1.msra.mxu0 0.0
        %1410 = vmatprep.subr.mxu0 0.0
        %1411 = vmatpush1.msra.mxu0 0.0
        %1412 = vmatprep.subr.mxu0 0.0
        %1413 = vmatpush1.msra.mxu0 0.0
        %1414 = vmatprep.subr.mxu0 0.0
        %1415 = vmatpush1.msra.mxu0 0.0
        %1416 = vmatprep.subr.mxu0 0.0
        %1417 = vmatpush1.msra.mxu0 0.0
        %1418 = vmatprep.subr.mxu0 0.0
        %1419 = vmatpush1.msra.mxu0 0.0
        %1420 = vmatprep.subr.mxu0 0.0
        %1421 = vmatpush1.msra.mxu0 0.0
        %1422 = vmatprep.subr.mxu0 0.0
        %1423 = vmatpush1.msra.mxu0 0.0
        %1424 = vmatprep.mubr.f32.mxu0 0.0
        %1425 = vmatmul.mubr.f32.gmra.mrb[0].mxu0 %v1358
        %v1426 = vpop.f32.mrb[0].mxu0
        %v1427 = vadd.f32 0.0, %v1426
        %v1428 = vpop.f32.mrb[0].mxu0
        %1429 = vdwg.mxu0
        %v1430 = vld [vmem:[%s10] sm:$0xff]
        %v1431 = vld [vmem:[%s10 + $0x8] sm:$0xff]
        %s1432 = scalar_lea.vmem %s4, 32
        %v1433 = vld [vmem:[%s1432] sm:$0xff]
        %v1434 = vld [vmem:[%s1432 + $0x8] sm:$0xff]
        %v1435 = vld [vmem:[%s1432 + $0x10] sm:$0xff]
        %v1436 = vld [vmem:[%s1432 + $0x18] sm:$0xff]
        %s1437 = scalar_lea.vmem %s5, 1
        %v1438 = vld [vmem:[%s1437] sm:$0x1]
        %v1440 = vlaneseq
        %v1441 = vshrl.u32 %v1440, 7
        %v1442 = vsub.s32 0, %v1441
        %v1443 = vrot.slane %v1438, %v1442
        %1445 = vmatprep.subr.mxu0 0.0
        %1446 = vmatpush1.msra.mxu0 %v1433
        %1447 = vmatprep.subr.mxu0 0.0
        %1448 = vmatpush1.msra.mxu0 %v1434
        %1449 = vmatprep.subr.mxu0 0.0
        %1450 = vmatpush1.msra.mxu0 %v1435
        %1451 = vmatprep.subr.mxu0 0.0
        %1452 = vmatpush1.msra.mxu0 %v1436
        %1453 = vmatprep.subr.mxu0 0.0
        %1454 = vmatpush1.msra.mxu0 0.0
        %1455 = vmatprep.subr.mxu0 0.0
        %1456 = vmatpush1.msra.mxu0 0.0
        %1457 = vmatprep.subr.mxu0 0.0
        %1458 = vmatpush1.msra.mxu0 0.0
        %1459 = vmatprep.subr.mxu0 0.0
        %1460 = vmatpush1.msra.mxu0 0.0
        %1461 = vmatprep.subr.mxu0 0.0
        %1462 = vmatpush1.msra.mxu0 0.0
        %1463 = vmatprep.subr.mxu0 0.0
        %1464 = vmatpush1.msra.mxu0 0.0
        %1465 = vmatprep.subr.mxu0 0.0
        %1466 = vmatpush1.msra.mxu0 0.0
        %1467 = vmatprep.subr.mxu0 0.0
        %1468 = vmatpush1.msra.mxu0 0.0
        %1469 = vmatprep.subr.mxu0 0.0
        %1470 = vmatpush1.msra.mxu0 0.0
        %1471 = vmatprep.subr.mxu0 0.0
        %1472 = vmatpush1.msra.mxu0 0.0
        %1473 = vmatprep.subr.mxu0 0.0
        %1474 = vmatpush1.msra.mxu0 0.0
        %1475 = vmatprep.subr.mxu0 0.0
        %1476 = vmatpush1.msra.mxu0 0.0
        %1477 = vmatprep.subr.mxu0 0.0
        %1478 = vmatpush1.msra.mxu0 0.0
        %1479 = vmatprep.subr.mxu0 0.0
        %1480 = vmatpush1.msra.mxu0 0.0
        %1481 = vmatprep.subr.mxu0 0.0
        %1482 = vmatpush1.msra.mxu0 0.0
        %1483 = vmatprep.subr.mxu0 0.0
        %1484 = vmatpush1.msra.mxu0 0.0
        %1485 = vmatprep.subr.mxu0 0.0
        %1486 = vmatpush1.msra.mxu0 0.0
        %1487 = vmatprep.subr.mxu0 0.0
        %1488 = vmatpush1.msra.mxu0 0.0
        %1489 = vmatprep.subr.mxu0 0.0
        %1490 = vmatpush1.msra.mxu0 0.0
        %1491 = vmatprep.subr.mxu0 0.0
        %1492 = vmatpush1.msra.mxu0 0.0
        %1493 = vmatprep.subr.mxu0 0.0
        %1494 = vmatpush1.msra.mxu0 0.0
        %1495 = vmatprep.subr.mxu0 0.0
        %1496 = vmatpush1.msra.mxu0 0.0
        %1497 = vmatprep.subr.mxu0 0.0
        %1498 = vmatpush1.msra.mxu0 0.0
        %1499 = vmatprep.subr.mxu0 0.0
        %1500 = vmatpush1.msra.mxu0 0.0
        %1501 = vmatprep.subr.mxu0 0.0
        %1502 = vmatpush1.msra.mxu0 0.0
        %1503 = vmatprep.subr.mxu0 0.0
        %1504 = vmatpush1.msra.mxu0 0.0
        %1505 = vmatprep.subr.mxu0 0.0
        %1506 = vmatpush1.msra.mxu0 0.0
        %1507 = vmatprep.subr.mxu0 0.0
        %1508 = vmatpush1.msra.mxu0 0.0
        %1509 = vmatprep.mubr.f32.mxu0 0.0
        %1510 = vmatmul.mubr.f32.gmra.mrb[0].mxu0 %v854
        %v1511 = vpop.f32.mrb[0].mxu0
        %v1512 = vadd.f32 %v1443, %v1511
        %v1513 = vpop.f32.mrb[0].mxu0
        %1514 = vmatprep.mubr.f32.mxu0 0.0
        %1515 = vmatmul.mubr.f32.gmra.mrb[0].mxu0 %v857
        %v1516 = vpop.f32.mrb[0].mxu0
        %v1517 = vadd.f32 %v1443, %v1516
        %v1518 = vpop.f32.mrb[0].mxu0
        %1519 = vdwg.mxu0
        %s1520 = scalar_lea.vmem %s6, 32
        %v1521 = vld [vmem:[%s1520] sm:$0xff]
        %v1522 = vld [vmem:[%s1520 + $0x8] sm:$0xff]
        %v1523 = vld [vmem:[%s1520 + $0x10] sm:$0xff]
        %v1524 = vld [vmem:[%s1520 + $0x18] sm:$0xff]
        %s1525 = scalar_lea.vmem %s7, 1
        %v1526 = vld [vmem:[%s1525] sm:$0x1]
        %v1528 = vlaneseq
        %v1529 = vshrl.u32 %v1528, 7
        %v1530 = vsub.s32 0, %v1529
        %v1531 = vrot.slane %v1526, %v1530
        %1533 = vmatprep.subr.mxu0 0.0
        %1534 = vmatpush1.msra.mxu0 %v1521
        %1535 = vmatprep.subr.mxu0 0.0
        %1536 = vmatpush1.msra.mxu0 %v1522
        %1537 = vmatprep.subr.mxu0 0.0
        %1538 = vmatpush1.msra.mxu0 %v1523
        %1539 = vmatprep.subr.mxu0 0.0
        %1540 = vmatpush1.msra.mxu0 %v1524
        %1541 = vmatprep.subr.mxu0 0.0
        %1542 = vmatpush1.msra.mxu0 0.0
        %1543 = vmatprep.subr.mxu0 0.0
        %1544 = vmatpush1.msra.mxu0 0.0
        %1545 = vmatprep.subr.mxu0 0.0
        %1546 = vmatpush1.msra.mxu0 0.0
        %1547 = vmatprep.subr.mxu0 0.0
        %1548 = vmatpush1.msra.mxu0 0.0
        %1549 = vmatprep.subr.mxu0 0.0
        %1550 = vmatpush1.msra.mxu0 0.0
        %1551 = vmatprep.subr.mxu0 0.0
        %1552 = vmatpush1.msra.mxu0 0.0
        %1553 = vmatprep.subr.mxu0 0.0
        %1554 = vmatpush1.msra.mxu0 0.0
        %1555 = vmatprep.subr.mxu0 0.0
        %1556 = vmatpush1.msra.mxu0 0.0
        %1557 = vmatprep.subr.mxu0 0.0
        %1558 = vmatpush1.msra.mxu0 0.0
        %1559 = vmatprep.subr.mxu0 0.0
        %1560 = vmatpush1.msra.mxu0 0.0
        %1561 = vmatprep.subr.mxu0 0.0
        %1562 = vmatpush1.msra.mxu0 0.0
        %1563 = vmatprep.subr.mxu0 0.0
        %1564 = vmatpush1.msra.mxu0 0.0
        %1565 = vmatprep.subr.mxu0 0.0
        %1566 = vmatpush1.msra.mxu0 0.0
        %1567 = vmatprep.subr.mxu0 0.0
        %1568 = vmatpush1.msra.mxu0 0.0
        %1569 = vmatprep.subr.mxu0 0.0
        %1570 = vmatpush1.msra.mxu0 0.0
        %1571 = vmatprep.subr.mxu0 0.0
        %1572 = vmatpush1.msra.mxu0 0.0
        %1573 = vmatprep.subr.mxu0 0.0
        %1574 = vmatpush1.msra.mxu0 0.0
        %1575 = vmatprep.subr.mxu0 0.0
        %1576 = vmatpush1.msra.mxu0 0.0
        %1577 = vmatprep.subr.mxu0 0.0
        %1578 = vmatpush1.msra.mxu0 0.0
        %1579 = vmatprep.subr.mxu0 0.0
        %1580 = vmatpush1.msra.mxu0 0.0
        %1581 = vmatprep.subr.mxu0 0.0
        %1582 = vmatpush1.msra.mxu0 0.0
        %1583 = vmatprep.subr.mxu0 0.0
        %1584 = vmatpush1.msra.mxu0 0.0
        %1585 = vmatprep.subr.mxu0 0.0
        %1586 = vmatpush1.msra.mxu0 0.0
        %1587 = vmatprep.subr.mxu0 0.0
        %1588 = vmatpush1.msra.mxu0 0.0
        %1589 = vmatprep.subr.mxu0 0.0
        %1590 = vmatpush1.msra.mxu0 0.0
        %1591 = vmatprep.subr.mxu0 0.0
        %1592 = vmatpush1.msra.mxu0 0.0
        %1593 = vmatprep.subr.mxu0 0.0
        %1594 = vmatpush1.msra.mxu0 0.0
        %1595 = vmatprep.subr.mxu0 0.0
        %1596 = vmatpush1.msra.mxu0 0.0
        %1597 = vmatprep.mubr.f32.mxu0 0.0
        %1598 = vmatmul.mubr.f32.gmra.mrb[0].mxu0 %v854
        %v1599 = vpop.f32.mrb[0].mxu0
        %v1600 = vadd.f32 %v1531, %v1599
        %v1601 = vpop.f32.mrb[0].mxu0
        %1602 = vmatprep.mubr.f32.mxu0 0.0
        %1603 = vmatmul.mubr.f32.gmra.mrb[0].mxu0 %v857
        %v1604 = vpop.f32.mrb[0].mxu0
        %v1605 = vadd.f32 %v1531, %v1604
        %v1606 = vpop.f32.mrb[0].mxu0
        %1607 = vdwg.mxu0
        %s1608 = scalar_lea.vmem %s8, 32
        %v1609 = vld [vmem:[%s1608] sm:$0xff]
        %v1610 = vld [vmem:[%s1608 + $0x8] sm:$0xff]
        %v1611 = vld [vmem:[%s1608 + $0x10] sm:$0xff]
        %v1612 = vld [vmem:[%s1608 + $0x18] sm:$0xff]
        %s1613 = scalar_lea.vmem %s9, 1
        %v1614 = vld [vmem:[%s1613] sm:$0x1]
        %v1616 = vlaneseq
        %v1617 = vshrl.u32 %v1616, 7
        %v1618 = vsub.s32 0, %v1617
        %v1619 = vrot.slane %v1614, %v1618
        %1621 = vmatprep.subr.mxu0 0.0
        %1622 = vmatpush1.msra.mxu0 %v1609
        %1623 = vmatprep.subr.mxu0 0.0
        %1624 = vmatpush1.msra.mxu0 %v1610
        %1625 = vmatprep.subr.mxu0 0.0
        %1626 = vmatpush1.msra.mxu0 %v1611
        %1627 = vmatprep.subr.mxu0 0.0
        %1628 = vmatpush1.msra.mxu0 %v1612
        %1629 = vmatprep.subr.mxu0 0.0
        %1630 = vmatpush1.msra.mxu0 0.0
        %1631 = vmatprep.subr.mxu0 0.0
        %1632 = vmatpush1.msra.mxu0 0.0
        %1633 = vmatprep.subr.mxu0 0.0
        %1634 = vmatpush1.msra.mxu0 0.0
        %1635 = vmatprep.subr.mxu0 0.0
        %1636 = vmatpush1.msra.mxu0 0.0
        %1637 = vmatprep.subr.mxu0 0.0
        %1638 = vmatpush1.msra.mxu0 0.0
        %1639 = vmatprep.subr.mxu0 0.0
        %1640 = vmatpush1.msra.mxu0 0.0
        %1641 = vmatprep.subr.mxu0 0.0
        %1642 = vmatpush1.msra.mxu0 0.0
        %1643 = vmatprep.subr.mxu0 0.0
        %1644 = vmatpush1.msra.mxu0 0.0
        %1645 = vmatprep.subr.mxu0 0.0
        %1646 = vmatpush1.msra.mxu0 0.0
        %1647 = vmatprep.subr.mxu0 0.0
        %1648 = vmatpush1.msra.mxu0 0.0
        %1649 = vmatprep.subr.mxu0 0.0
        %1650 = vmatpush1.msra.mxu0 0.0
        %1651 = vmatprep.subr.mxu0 0.0
        %1652 = vmatpush1.msra.mxu0 0.0
        %1653 = vmatprep.subr.mxu0 0.0
        %1654 = vmatpush1.msra.mxu0 0.0
        %1655 = vmatprep.subr.mxu0 0.0
        %1656 = vmatpush1.msra.mxu0 0.0
        %1657 = vmatprep.subr.mxu0 0.0
        %1658 = vmatpush1.msra.mxu0 0.0
        %1659 = vmatprep.subr.mxu0 0.0
        %1660 = vmatpush1.msra.mxu0 0.0
        %1661 = vmatprep.subr.mxu0 0.0
        %1662 = vmatpush1.msra.mxu0 0.0
        %1663 = vmatprep.subr.mxu0 0.0
        %1664 = vmatpush1.msra.mxu0 0.0
        %1665 = vmatprep.subr.mxu0 0.0
        %1666 = vmatpush1.msra.mxu0 0.0
        %1667 = vmatprep.subr.mxu0 0.0
        %1668 = vmatpush1.msra.mxu0 0.0
        %1669 = vmatprep.subr.mxu0 0.0
        %1670 = vmatpush1.msra.mxu0 0.0
        %1671 = vmatprep.subr.mxu0 0.0
        %1672 = vmatpush1.msra.mxu0 0.0
        %1673 = vmatprep.subr.mxu0 0.0
        %1674 = vmatpush1.msra.mxu0 0.0
        %1675 = vmatprep.subr.mxu0 0.0
        %1676 = vmatpush1.msra.mxu0 0.0
        %1677 = vmatprep.subr.mxu0 0.0
        %1678 = vmatpush1.msra.mxu0 0.0
        %1679 = vmatprep.subr.mxu0 0.0
        %1680 = vmatpush1.msra.mxu0 0.0
        %1681 = vmatprep.subr.mxu0 0.0
        %1682 = vmatpush1.msra.mxu0 0.0
        %1683 = vmatprep.subr.mxu0 0.0
        %1684 = vmatpush1.msra.mxu0 0.0
        %1685 = vmatprep.mubr.f32.mxu0 0.0
        %1686 = vmatmul.mubr.f32.gmra.mrb[0].mxu0 %v854
        %v1687 = vpop.f32.mrb[0].mxu0
        %v1688 = vadd.f32 %v1619, %v1687
        %v1689 = vpop.f32.mrb[0].mxu0
        %1690 = vmatprep.mubr.f32.mxu0 0.0
        %1691 = vmatmul.mubr.f32.gmra.mrb[0].mxu0 %v857
        %v1692 = vpop.f32.mrb[0].mxu0
        %v1693 = vadd.f32 %v1619, %v1692
        %v1694 = vpop.f32.mrb[0].mxu0
        %1695 = vdwg.mxu0
        %v1697 = vsel %vm1106, %v1512, 0
        %v1700 = vsel %vm1106, %v1600, 0
        %1702 = vmatprep.subr.mxu0 0.0
        %1703 = vmatpush1.xpose.msra.mxu0 %v1700
        %1704 = vmatprep.subr.mxu0 0.0
        %1705 = vmatpush1.xpose.msra.mxu0 0.0
        %1706 = vmatprep.subr.mxu0 0.0
        %1707 = vmatpush1.xpose.msra.mxu0 0.0
        %1708 = vmatprep.subr.mxu0 0.0
        %1709 = vmatpush1.xpose.msra.mxu0 0.0
        %1710 = vmatprep.subr.mxu0 0.0
        %1711 = vmatpush1.xpose.msra.mxu0 0.0
        %1712 = vmatprep.subr.mxu0 0.0
        %1713 = vmatpush1.xpose.msra.mxu0 0.0
        %1714 = vmatprep.subr.mxu0 0.0
        %1715 = vmatpush1.xpose.msra.mxu0 0.0
        %1716 = vmatprep.subr.mxu0 0.0
        %1717 = vmatpush1.xpose.msra.mxu0 0.0
        %1718 = vmatprep.subr.mxu0 0.0
        %1719 = vmatpush1.xpose.msra.mxu0 0.0
        %1720 = vmatprep.subr.mxu0 0.0
        %1721 = vmatpush1.xpose.msra.mxu0 0.0
        %1722 = vmatprep.subr.mxu0 0.0
        %1723 = vmatpush1.xpose.msra.mxu0 0.0
        %1724 = vmatprep.subr.mxu0 0.0
        %1725 = vmatpush1.xpose.msra.mxu0 0.0
        %1726 = vmatprep.subr.mxu0 0.0
        %1727 = vmatpush1.xpose.msra.mxu0 0.0
        %1728 = vmatprep.subr.mxu0 0.0
        %1729 = vmatpush1.xpose.msra.mxu0 0.0
        %1730 = vmatprep.subr.mxu0 0.0
        %1731 = vmatpush1.xpose.msra.mxu0 0.0
        %1732 = vmatprep.subr.mxu0 0.0
        %1733 = vmatpush1.xpose.msra.mxu0 0.0
        %1734 = vmatprep.subr.mxu0 0.0
        %1735 = vmatpush1.xpose.msra.mxu0 0.0
        %1736 = vmatprep.subr.mxu0 0.0
        %1737 = vmatpush1.xpose.msra.mxu0 0.0
        %1738 = vmatprep.subr.mxu0 0.0
        %1739 = vmatpush1.xpose.msra.mxu0 0.0
        %1740 = vmatprep.subr.mxu0 0.0
        %1741 = vmatpush1.xpose.msra.mxu0 0.0
        %1742 = vmatprep.subr.mxu0 0.0
        %1743 = vmatpush1.xpose.msra.mxu0 0.0
        %1744 = vmatprep.subr.mxu0 0.0
        %1745 = vmatpush1.xpose.msra.mxu0 0.0
        %1746 = vmatprep.subr.mxu0 0.0
        %1747 = vmatpush1.xpose.msra.mxu0 0.0
        %1748 = vmatprep.subr.mxu0 0.0
        %1749 = vmatpush1.xpose.msra.mxu0 0.0
        %1750 = vmatprep.subr.mxu0 0.0
        %1751 = vmatpush1.xpose.msra.mxu0 0.0
        %1752 = vmatprep.subr.mxu0 0.0
        %1753 = vmatpush1.xpose.msra.mxu0 0.0
        %1754 = vmatprep.subr.mxu0 0.0
        %1755 = vmatpush1.xpose.msra.mxu0 0.0
        %1756 = vmatprep.subr.mxu0 0.0
        %1757 = vmatpush1.xpose.msra.mxu0 0.0
        %1758 = vmatprep.subr.mxu0 0.0
        %1759 = vmatpush1.xpose.msra.mxu0 0.0
        %1760 = vmatprep.subr.mxu0 0.0
        %1761 = vmatpush1.xpose.msra.mxu0 0.0
        %1762 = vmatprep.subr.mxu0 0.0
        %1763 = vmatpush1.xpose.msra.mxu0 0.0
        %1764 = vmatprep.subr.mxu0 0.0
        %1765 = vmatpush1.xpose.msra.mxu0 0.0
        %1766 = vmatprep.mubr.f32.mxu0 0.0
        %1767 = vmatmul.mubr.f32.gmra.mrb[0].mxu0 %v1697
        %v1768 = vpop.f32.mrb[0].mxu0
        %v1769 = vadd.f32 0.0, %v1768
        %v1770 = vpop.f32.mrb[0].mxu0
        %1771 = vdwg.mxu0
        %v1773 = vsel %vm1106, %v1517, 0
        %v1776 = vsel %vm1106, %v1605, 0
        %1778 = vmatprep.subr.mxu0 0.0
        %1779 = vmatpush1.xpose.msra.mxu0 %v1776
        %1780 = vmatprep.subr.mxu0 0.0
        %1781 = vmatpush1.xpose.msra.mxu0 0.0
        %1782 = vmatprep.subr.mxu0 0.0
        %1783 = vmatpush1.xpose.msra.mxu0 0.0
        %1784 = vmatprep.subr.mxu0 0.0
        %1785 = vmatpush1.xpose.msra.mxu0 0.0
        %1786 = vmatprep.subr.mxu0 0.0
        %1787 = vmatpush1.xpose.msra.mxu0 0.0
        %1788 = vmatprep.subr.mxu0 0.0
        %1789 = vmatpush1.xpose.msra.mxu0 0.0
        %1790 = vmatprep.subr.mxu0 0.0
        %1791 = vmatpush1.xpose.msra.mxu0 0.0
        %1792 = vmatprep.subr.mxu0 0.0
        %1793 = vmatpush1.xpose.msra.mxu0 0.0
        %1794 = vmatprep.subr.mxu0 0.0
        %1795 = vmatpush1.xpose.msra.mxu0 0.0
        %1796 = vmatprep.subr.mxu0 0.0
        %1797 = vmatpush1.xpose.msra.mxu0 0.0
        %1798 = vmatprep.subr.mxu0 0.0
        %1799 = vmatpush1.xpose.msra.mxu0 0.0
        %1800 = vmatprep.subr.mxu0 0.0
        %1801 = vmatpush1.xpose.msra.mxu0 0.0
        %1802 = vmatprep.subr.mxu0 0.0
        %1803 = vmatpush1.xpose.msra.mxu0 0.0
        %1804 = vmatprep.subr.mxu0 0.0
        %1805 = vmatpush1.xpose.msra.mxu0 0.0
        %1806 = vmatprep.subr.mxu0 0.0
        %1807 = vmatpush1.xpose.msra.mxu0 0.0
        %1808 = vmatprep.subr.mxu0 0.0
        %1809 = vmatpush1.xpose.msra.mxu0 0.0
        %1810 = vmatprep.subr.mxu0 0.0
        %1811 = vmatpush1.xpose.msra.mxu0 0.0
        %1812 = vmatprep.subr.mxu0 0.0
        %1813 = vmatpush1.xpose.msra.mxu0 0.0
        %1814 = vmatprep.subr.mxu0 0.0
        %1815 = vmatpush1.xpose.msra.mxu0 0.0
        %1816 = vmatprep.subr.mxu0 0.0
        %1817 = vmatpush1.xpose.msra.mxu0 0.0
        %1818 = vmatprep.subr.mxu0 0.0
        %1819 = vmatpush1.xpose.msra.mxu0 0.0
        %1820 = vmatprep.subr.mxu0 0.0
        %1821 = vmatpush1.xpose.msra.mxu0 0.0
        %1822 = vmatprep.subr.mxu0 0.0
        %1823 = vmatpush1.xpose.msra.mxu0 0.0
        %1824 = vmatprep.subr.mxu0 0.0
        %1825 = vmatpush1.xpose.msra.mxu0 0.0
        %1826 = vmatprep.subr.mxu0 0.0
        %1827 = vmatpush1.xpose.msra.mxu0 0.0
        %1828 = vmatprep.subr.mxu0 0.0
        %1829 = vmatpush1.xpose.msra.mxu0 0.0
        %1830 = vmatprep.subr.mxu0 0.0
        %1831 = vmatpush1.xpose.msra.mxu0 0.0
        %1832 = vmatprep.subr.mxu0 0.0
        %1833 = vmatpush1.xpose.msra.mxu0 0.0
        %1834 = vmatprep.subr.mxu0 0.0
        %1835 = vmatpush1.xpose.msra.mxu0 0.0
        %1836 = vmatprep.subr.mxu0 0.0
        %1837 = vmatpush1.xpose.msra.mxu0 0.0
        %1838 = vmatprep.subr.mxu0 0.0
        %1839 = vmatpush1.xpose.msra.mxu0 0.0
        %1840 = vmatprep.subr.mxu0 0.0
        %1841 = vmatpush1.xpose.msra.mxu0 0.0
        %1842 = vmatprep.mubr.f32.mxu0 0.0
        %1843 = vmatmul.mubr.f32.gmra.mrb[0].mxu0 %v1773
        %v1844 = vpop.f32.mrb[0].mxu0
        %v1845 = vadd.f32 0.0, %v1844
        %v1846 = vpop.f32.mrb[0].mxu0
        %1847 = vdwg.mxu0
        %v1848 = vmul.f32 %v1769, 0.25
        %v1849 = vmul.f32 %v1845, 0.25
        %v1850 = vsel %vm1261, %v1848, -inf
        %1851 = vmax.xlane.f32.xlu0 %v1850
        %v1852 = vpop.xlane.xlu0 %1851
        %v1853 = vsel %vm1261, %v1849, -inf
        %1854 = vmax.xlane.f32.xlu0 %v1853
        %v1855 = vpop.xlane.xlu0 %1854
        %v1856 = vsub.f32 %v1848, %v1852
        %v1857 = vsub.f32 %v1849, %v1855
        %v1858 = vmul.f32 %v1856, 1.442695
        %v1859 = vpow.pop %v1858
        %v1860 = vmul.f32 %v1857, 1.442695
        %v1861 = vpow.pop %v1860
        %v1862 = vsel %vm1261, %v1859, 0.0
        %1863 = vadd.xlane.f32.xlu0 %v1862
        %v1864 = vpop.xlane.xlu0 %1863
        %v1865 = vsel %vm1261, %v1861, 0.0
        %1866 = vadd.xlane.f32.xlu0 %v1865
        %v1867 = vpop.xlane.xlu0 %1866
        %v1868 = vrcp.pop %v1864
        %v1869 = vrcp.pop %v1867
        %v1870 = vmul.f32 %v1859, %v1868
        %v1871 = vmul.f32 %v1861, %v1869
        %v1873 = vsel %vm1261, %v1870, 0
        %1875 = vmatprep.subr.mxu0 0.0
        %1876 = vmatpush1.msra.mxu0 %v1688
        %1877 = vmatprep.subr.mxu0 0.0
        %1878 = vmatpush1.msra.mxu0 0.0
        %1879 = vmatprep.subr.mxu0 0.0
        %1880 = vmatpush1.msra.mxu0 0.0
        %1881 = vmatprep.subr.mxu0 0.0
        %1882 = vmatpush1.msra.mxu0 0.0
        %1883 = vmatprep.subr.mxu0 0.0
        %1884 = vmatpush1.msra.mxu0 0.0
        %1885 = vmatprep.subr.mxu0 0.0
        %1886 = vmatpush1.msra.mxu0 0.0
        %1887 = vmatprep.subr.mxu0 0.0
        %1888 = vmatpush1.msra.mxu0 0.0
        %1889 = vmatprep.subr.mxu0 0.0
        %1890 = vmatpush1.msra.mxu0 0.0
        %1891 = vmatprep.subr.mxu0 0.0
        %1892 = vmatpush1.msra.mxu0 0.0
        %1893 = vmatprep.subr.mxu0 0.0
        %1894 = vmatpush1.msra.mxu0 0.0
        %1895 = vmatprep.subr.mxu0 0.0
        %1896 = vmatpush1.msra.mxu0 0.0
        %1897 = vmatprep.subr.mxu0 0.0
        %1898 = vmatpush1.msra.mxu0 0.0
        %1899 = vmatprep.subr.mxu0 0.0
        %1900 = vmatpush1.msra.mxu0 0.0
        %1901 = vmatprep.subr.mxu0 0.0
        %1902 = vmatpush1.msra.mxu0 0.0
        %1903 = vmatprep.subr.mxu0 0.0
        %1904 = vmatpush1.msra.mxu0 0.0
        %1905 = vmatprep.subr.mxu0 0.0
        %1906 = vmatpush1.msra.mxu0 0.0
        %1907 = vmatprep.subr.mxu0 0.0
        %1908 = vmatpush1.msra.mxu0 0.0
        %1909 = vmatprep.subr.mxu0 0.0
        %1910 = vmatpush1.msra.mxu0 0.0
        %1911 = vmatprep.subr.mxu0 0.0
        %1912 = vmatpush1.msra.mxu0 0.0
        %1913 = vmatprep.subr.mxu0 0.0
        %1914 = vmatpush1.msra.mxu0 0.0
        %1915 = vmatprep.subr.mxu0 0.0
        %1916 = vmatpush1.msra.mxu0 0.0
        %1917 = vmatprep.subr.mxu0 0.0
        %1918 = vmatpush1.msra.mxu0 0.0
        %1919 = vmatprep.subr.mxu0 0.0
        %1920 = vmatpush1.msra.mxu0 0.0
        %1921 = vmatprep.subr.mxu0 0.0
        %1922 = vmatpush1.msra.mxu0 0.0
        %1923 = vmatprep.subr.mxu0 0.0
        %1924 = vmatpush1.msra.mxu0 0.0
        %1925 = vmatprep.subr.mxu0 0.0
        %1926 = vmatpush1.msra.mxu0 0.0
        %1927 = vmatprep.subr.mxu0 0.0
        %1928 = vmatpush1.msra.mxu0 0.0
        %1929 = vmatprep.subr.mxu0 0.0
        %1930 = vmatpush1.msra.mxu0 0.0
        %1931 = vmatprep.subr.mxu0 0.0
        %1932 = vmatpush1.msra.mxu0 0.0
        %1933 = vmatprep.subr.mxu0 0.0
        %1934 = vmatpush1.msra.mxu0 0.0
        %1935 = vmatprep.subr.mxu0 0.0
        %1936 = vmatpush1.msra.mxu0 0.0
        %1937 = vmatprep.subr.mxu0 0.0
        %1938 = vmatpush1.msra.mxu0 0.0
        %1939 = vmatprep.mubr.f32.mxu0 0.0
        %1940 = vmatmul.mubr.f32.gmra.mrb[0].mxu0 %v1873
        %v1941 = vpop.f32.mrb[0].mxu0
        %v1942 = vadd.f32 0.0, %v1941
        %v1943 = vpop.f32.mrb[0].mxu0
        %1944 = vdwg.mxu0
        %v1946 = vsel %vm1261, %v1871, 0
        %1948 = vmatprep.subr.mxu0 0.0
        %1949 = vmatpush1.msra.mxu0 %v1693
        %1950 = vmatprep.subr.mxu0 0.0
        %1951 = vmatpush1.msra.mxu0 0.0
        %1952 = vmatprep.subr.mxu0 0.0
        %1953 = vmatpush1.msra.mxu0 0.0
        %1954 = vmatprep.subr.mxu0 0.0
        %1955 = vmatpush1.msra.mxu0 0.0
        %1956 = vmatprep.subr.mxu0 0.0
        %1957 = vmatpush1.msra.mxu0 0.0
        %1958 = vmatprep.subr.mxu0 0.0
        %1959 = vmatpush1.msra.mxu0 0.0
        %1960 = vmatprep.subr.mxu0 0.0
        %1961 = vmatpush1.msra.mxu0 0.0
        %1962 = vmatprep.subr.mxu0 0.0
        %1963 = vmatpush1.msra.mxu0 0.0
        %1964 = vmatprep.subr.mxu0 0.0
        %1965 = vmatpush1.msra.mxu0 0.0
        %1966 = vmatprep.subr.mxu0 0.0
        %1967 = vmatpush1.msra.mxu0 0.0
        %1968 = vmatprep.subr.mxu0 0.0
        %1969 = vmatpush1.msra.mxu0 0.0
        %1970 = vmatprep.subr.mxu0 0.0
        %1971 = vmatpush1.msra.mxu0 0.0
        %1972 = vmatprep.subr.mxu0 0.0
        %1973 = vmatpush1.msra.mxu0 0.0
        %1974 = vmatprep.subr.mxu0 0.0
        %1975 = vmatpush1.msra.mxu0 0.0
        %1976 = vmatprep.subr.mxu0 0.0
        %1977 = vmatpush1.msra.mxu0 0.0
        %1978 = vmatprep.subr.mxu0 0.0
        %1979 = vmatpush1.msra.mxu0 0.0
        %1980 = vmatprep.subr.mxu0 0.0
        %1981 = vmatpush1.msra.mxu0 0.0
        %1982 = vmatprep.subr.mxu0 0.0
        %1983 = vmatpush1.msra.mxu0 0.0
        %1984 = vmatprep.subr.mxu0 0.0
        %1985 = vmatpush1.msra.mxu0 0.0
        %1986 = vmatprep.subr.mxu0 0.0
        %1987 = vmatpush1.msra.mxu0 0.0
        %1988 = vmatprep.subr.mxu0 0.0
        %1989 = vmatpush1.msra.mxu0 0.0
        %1990 = vmatprep.subr.mxu0 0.0
        %1991 = vmatpush1.msra.mxu0 0.0
        %1992 = vmatprep.subr.mxu0 0.0
        %1993 = vmatpush1.msra.mxu0 0.0
        %1994 = vmatprep.subr.mxu0 0.0
        %1995 = vmatpush1.msra.mxu0 0.0
        %1996 = vmatprep.subr.mxu0 0.0
        %1997 = vmatpush1.msra.mxu0 0.0
        %1998 = vmatprep.subr.mxu0 0.0
        %1999 = vmatpush1.msra.mxu0 0.0
        %2000 = vmatprep.subr.mxu0 0.0
        %2001 = vmatpush1.msra.mxu0 0.0
        %2002 = vmatprep.subr.mxu0 0.0
        %2003 = vmatpush1.msra.mxu0 0.0
        %2004 = vmatprep.subr.mxu0 0.0
        %2005 = vmatpush1.msra.mxu0 0.0
        %2006 = vmatprep.subr.mxu0 0.0
        %2007 = vmatpush1.msra.mxu0 0.0
        %2008 = vmatprep.subr.mxu0 0.0
        %2009 = vmatpush1.msra.mxu0 0.0
        %2010 = vmatprep.subr.mxu0 0.0
        %2011 = vmatpush1.msra.mxu0 0.0
        %2012 = vmatprep.mubr.f32.mxu0 0.0
        %2013 = vmatmul.mubr.f32.gmra.mrb[0].mxu0 %v1946
        %v2014 = vpop.f32.mrb[0].mxu0
        %v2015 = vadd.f32 0.0, %v2014
        %v2016 = vpop.f32.mrb[0].mxu0
        %2017 = vdwg.mxu0
        %s2018 = scalar_lea.vmem %s10, 16
        %v2019 = vld [vmem:[%s2018] sm:$0xff]
        %v2020 = vld [vmem:[%s2018 + $0x8] sm:$0xff]
        %v2022 = vsel %vm1106, %v1942, 0
        %v2025 = vsel %vm1106, %v2015, 0
        %2027 = vmatprep.subr.mxu0 0.0
        %2028 = vmatpush1.msra.mxu0 %v2019
        %2029 = vmatprep.subr.mxu0 0.0
        %2030 = vmatpush1.msra.mxu0 %v2020
        %2031 = vmatprep.subr.mxu0 0.0
        %2032 = vmatpush1.msra.mxu0 0.0
        %2033 = vmatprep.subr.mxu0 0.0
        %2034 = vmatpush1.msra.mxu0 0.0
        %2035 = vmatprep.subr.mxu0 0.0
        %2036 = vmatpush1.msra.mxu0 0.0
        %2037 = vmatprep.subr.mxu0 0.0
        %2038 = vmatpush1.msra.mxu0 0.0
        %2039 = vmatprep.subr.mxu0 0.0
        %2040 = vmatpush1.msra.mxu0 0.0
        %2041 = vmatprep.subr.mxu0 0.0
        %2042 = vmatpush1.msra.mxu0 0.0
        %2043 = vmatprep.subr.mxu0 0.0
        %2044 = vmatpush1.msra.mxu0 0.0
        %2045 = vmatprep.subr.mxu0 0.0
        %2046 = vmatpush1.msra.mxu0 0.0
        %2047 = vmatprep.subr.mxu0 0.0
        %2048 = vmatpush1.msra.mxu0 0.0
        %2049 = vmatprep.subr.mxu0 0.0
        %2050 = vmatpush1.msra.mxu0 0.0
        %2051 = vmatprep.subr.mxu0 0.0
        %2052 = vmatpush1.msra.mxu0 0.0
        %2053 = vmatprep.subr.mxu0 0.0
        %2054 = vmatpush1.msra.mxu0 0.0
        %2055 = vmatprep.subr.mxu0 0.0
        %2056 = vmatpush1.msra.mxu0 0.0
        %2057 = vmatprep.subr.mxu0 0.0
        %2058 = vmatpush1.msra.mxu0 0.0
        %2059 = vmatprep.subr.mxu0 0.0
        %2060 = vmatpush1.msra.mxu0 0.0
        %2061 = vmatprep.subr.mxu0 0.0
        %2062 = vmatpush1.msra.mxu0 0.0
        %2063 = vmatprep.subr.mxu0 0.0
        %2064 = vmatpush1.msra.mxu0 0.0
        %2065 = vmatprep.subr.mxu0 0.0
        %2066 = vmatpush1.msra.mxu0 0.0
        %2067 = vmatprep.subr.mxu0 0.0
        %2068 = vmatpush1.msra.mxu0 0.0
        %2069 = vmatprep.subr.mxu0 0.0
        %2070 = vmatpush1.msra.mxu0 0.0
        %2071 = vmatprep.subr.mxu0 0.0
        %2072 = vmatpush1.msra.mxu0 0.0
        %2073 = vmatprep.subr.mxu0 0.0
        %2074 = vmatpush1.msra.mxu0 0.0
        %2075 = vmatprep.subr.mxu0 0.0
        %2076 = vmatpush1.msra.mxu0 0.0
        %2077 = vmatprep.subr.mxu0 0.0
        %2078 = vmatpush1.msra.mxu0 0.0
        %2079 = vmatprep.subr.mxu0 0.0
        %2080 = vmatpush1.msra.mxu0 0.0
        %2081 = vmatprep.subr.mxu0 0.0
        %2082 = vmatpush1.msra.mxu0 0.0
        %2083 = vmatprep.subr.mxu0 0.0
        %2084 = vmatpush1.msra.mxu0 0.0
        %2085 = vmatprep.subr.mxu0 0.0
        %2086 = vmatpush1.msra.mxu0 0.0
        %2087 = vmatprep.subr.mxu0 0.0
        %2088 = vmatpush1.msra.mxu0 0.0
        %2089 = vmatprep.subr.mxu0 0.0
        %2090 = vmatpush1.msra.mxu0 0.0
        %2091 = vmatprep.mubr.f32.mxu0 0.0
        %2092 = vmatmul.mubr.f32.gmra.mrb[0].mxu0 %v2022
        %v2093 = vpop.f32.mrb[0].mxu0
        %v2094 = vadd.f32 0.0, %v2093
        %v2095 = vpop.f32.mrb[0].mxu0
        %2096 = vmatprep.mubr.f32.mxu0 0.0
        %2097 = vmatmul.mubr.f32.gmra.mrb[0].mxu0 %v2025
        %v2098 = vpop.f32.mrb[0].mxu0
        %v2099 = vadd.f32 0.0, %v2098
        %v2100 = vpop.f32.mrb[0].mxu0
        %2101 = vdwg.mxu0
        %v2103 = vsel %vm1106, %v1354, 0
        %v2106 = vsel %vm1106, %v1427, 0
        %2108 = vmatprep.subr.mxu0 0.0
        %2109 = vmatpush1.msra.mxu0 %v1430
        %2110 = vmatprep.subr.mxu0 0.0
        %2111 = vmatpush1.msra.mxu0 %v1431
        %2112 = vmatprep.subr.mxu0 0.0
        %2113 = vmatpush1.msra.mxu0 0.0
        %2114 = vmatprep.subr.mxu0 0.0
        %2115 = vmatpush1.msra.mxu0 0.0
        %2116 = vmatprep.subr.mxu0 0.0
        %2117 = vmatpush1.msra.mxu0 0.0
        %2118 = vmatprep.subr.mxu0 0.0
        %2119 = vmatpush1.msra.mxu0 0.0
        %2120 = vmatprep.subr.mxu0 0.0
        %2121 = vmatpush1.msra.mxu0 0.0
        %2122 = vmatprep.subr.mxu0 0.0
        %2123 = vmatpush1.msra.mxu0 0.0
        %2124 = vmatprep.subr.mxu0 0.0
        %2125 = vmatpush1.msra.mxu0 0.0
        %2126 = vmatprep.subr.mxu0 0.0
        %2127 = vmatpush1.msra.mxu0 0.0
        %2128 = vmatprep.subr.mxu0 0.0
        %2129 = vmatpush1.msra.mxu0 0.0
        %2130 = vmatprep.subr.mxu0 0.0
        %2131 = vmatpush1.msra.mxu0 0.0
        %2132 = vmatprep.subr.mxu0 0.0
        %2133 = vmatpush1.msra.mxu0 0.0
        %2134 = vmatprep.subr.mxu0 0.0
        %2135 = vmatpush1.msra.mxu0 0.0
        %2136 = vmatprep.subr.mxu0 0.0
        %2137 = vmatpush1.msra.mxu0 0.0
        %2138 = vmatprep.subr.mxu0 0.0
        %2139 = vmatpush1.msra.mxu0 0.0
        %2140 = vmatprep.subr.mxu0 0.0
        %2141 = vmatpush1.msra.mxu0 0.0
        %2142 = vmatprep.subr.mxu0 0.0
        %2143 = vmatpush1.msra.mxu0 0.0
        %2144 = vmatprep.subr.mxu0 0.0
        %2145 = vmatpush1.msra.mxu0 0.0
        %2146 = vmatprep.subr.mxu0 0.0
        %2147 = vmatpush1.msra.mxu0 0.0
        %2148 = vmatprep.subr.mxu0 0.0
        %2149 = vmatpush1.msra.mxu0 0.0
        %2150 = vmatprep.subr.mxu0 0.0
        %2151 = vmatpush1.msra.mxu0 0.0
        %2152 = vmatprep.subr.mxu0 0.0
        %2153 = vmatpush1.msra.mxu0 0.0
        %2154 = vmatprep.subr.mxu0 0.0
        %2155 = vmatpush1.msra.mxu0 0.0
        %2156 = vmatprep.subr.mxu0 0.0
        %2157 = vmatpush1.msra.mxu0 0.0
        %2158 = vmatprep.subr.mxu0 0.0
        %2159 = vmatpush1.msra.mxu0 0.0
        %2160 = vmatprep.subr.mxu0 0.0
        %2161 = vmatpush1.msra.mxu0 0.0
        %2162 = vmatprep.subr.mxu0 0.0
        %2163 = vmatpush1.msra.mxu0 0.0
        %2164 = vmatprep.subr.mxu0 0.0
        %2165 = vmatpush1.msra.mxu0 0.0
        %2166 = vmatprep.subr.mxu0 0.0
        %2167 = vmatpush1.msra.mxu0 0.0
        %2168 = vmatprep.subr.mxu0 0.0
        %2169 = vmatpush1.msra.mxu0 0.0
        %2170 = vmatprep.subr.mxu0 0.0
        %2171 = vmatpush1.msra.mxu0 0.0
        %2172 = vmatprep.mubr.f32.mxu0 0.0
        %2173 = vmatmul.mubr.f32.gmra.mrb[0].mxu0 %v2103
        %v2174 = vpop.f32.mrb[0].mxu0
        %v2175 = vadd.f32 %v2094, %v2174
        %v2176 = vpop.f32.mrb[0].mxu0
        %2177 = vmatprep.mubr.f32.mxu0 0.0
        %2178 = vmatmul.mubr.f32.gmra.mrb[0].mxu0 %v2106
        %v2179 = vpop.f32.mrb[0].mxu0
        %v2180 = vadd.f32 %v2099, %v2179
        %v2181 = vpop.f32.mrb[0].mxu0
        %2182 = vdwg.mxu0
        %v2183 = vld [vmem:[%s11] sm:$0x1]
        %v2185 = vlaneseq
        %v2186 = vshrl.u32 %v2185, 7
        %v2187 = vsub.s32 0, %v2186
        %v2188 = vrot.slane %v2183, %v2187
        %v2190 = vadd.f32 %v2175, %v2188
        %v2191 = vadd.f32 %v2180, %v2188
        %v2192 = vadd.f32 %v2190, %v840
        %v2193 = vadd.f32 %v2191, %v841
        %v2194 = vld [vmem:[%s12] sm:$0x1]
        %v2195 = vld [vmem:[%s13] sm:$0x1]
        %v2196 = vsel %vm798, %v2192, 0.0
        %2197 = vadd.xlane.f32.xlu0 %v2196
        %v2198 = vpop.xlane.xlu0 %2197
        %v2199 = vsel %vm798, %v2193, 0.0
        %2200 = vadd.xlane.f32.xlu0 %v2199
        %v2201 = vpop.xlane.xlu0 %2200
        %v2202 = vmul.f32 %v2198, %v805
        %v2203 = vmul.f32 %v2201, %v805
        %v2204 = vsub.f32 %v2192, %v2202
        %v2205 = vsub.f32 %v2193, %v2203
        %v2206 = vmul.f32 %v2204, %v2204
        %v2207 = vmul.f32 %v2205, %v2205
        %v2208 = vsel %vm798, %v2206, 0.0
        %2209 = vadd.xlane.f32.xlu0 %v2208
        %v2210 = vpop.xlane.xlu0 %2209
        %v2211 = vsel %vm798, %v2207, 0.0
        %2212 = vadd.xlane.f32.xlu0 %v2211
        %v2213 = vpop.xlane.xlu0 %2212
        %v2214 = vmul.f32 %v2210, %v805
        %v2215 = vmul.f32 %v2213, %v805
        %v2216 = vadd.f32 %v2214, 1e-06
        %v2217 = vadd.f32 %v2215, 1e-06
        %v2218 = vrsqrt.pop %v2216
        %v2219 = vrsqrt.pop %v2217
        %v2220 = vmul.f32 %v2204, %v2218
        %v2221 = vmul.f32 %v2205, %v2219
        %v2223 = vlaneseq
        %v2224 = vshrl.u32 %v2223, 7
        %v2225 = vsub.s32 0, %v2224
        %v2226 = vrot.slane %v2194, %v2225
        %v2228 = vmul.f32 %v2220, %v2226
        %v2229 = vmul.f32 %v2221, %v2226
        %v2231 = vlaneseq
        %v2232 = vshrl.u32 %v2231, 7
        %v2233 = vsub.s32 0, %v2232
        %v2234 = vrot.slane %v2195, %v2233
        %v2236 = vadd.f32 %v2228, %v2234
        %v2237 = vadd.f32 %v2229, %v2234
        %v2238 = vld [vmem:[%s14] sm:$0xff]
        %v2239 = vld [vmem:[%s14 + $0x8] sm:$0xff]
        %v2240 = vld [vmem:[%s14 + $0x10] sm:$0xff]
        %v2241 = vld [vmem:[%s14 + $0x18] sm:$0xff]
        %v2242 = vld [vmem:[%s15] sm:$0x1]
        %v2244 = vlaneseq
        %v2245 = vshrl.u32 %v2244, 7
        %v2246 = vsub.s32 0, %v2245
        %v2247 = vrot.slane %v2242, %v2246
        %v2250 = vsel %vm798, %v2236, 0
        %v2253 = vsel %vm798, %v2237, 0
        %2255 = vmatprep.subr.mxu0 0.0
        %2256 = vmatpush1.msra.mxu0 %v2238
        %2257 = vmatprep.subr.mxu0 0.0
        %2258 = vmatpush1.msra.mxu0 %v2239
        %2259 = vmatprep.subr.mxu0 0.0
        %2260 = vmatpush1.msra.mxu0 %v2240
        %2261 = vmatprep.subr.mxu0 0.0
        %2262 = vmatpush1.msra.mxu0 %v2241
        %2263 = vmatprep.subr.mxu0 0.0
        %2264 = vmatpush1.msra.mxu0 0.0
        %2265 = vmatprep.subr.mxu0 0.0
        %2266 = vmatpush1.msra.mxu0 0.0
        %2267 = vmatprep.subr.mxu0 0.0
        %2268 = vmatpush1.msra.mxu0 0.0
        %2269 = vmatprep.subr.mxu0 0.0
        %2270 = vmatpush1.msra.mxu0 0.0
        %2271 = vmatprep.subr.mxu0 0.0
        %2272 = vmatpush1.msra.mxu0 0.0
        %2273 = vmatprep.subr.mxu0 0.0
        %2274 = vmatpush1.msra.mxu0 0.0
        %2275 = vmatprep.subr.mxu0 0.0
        %2276 = vmatpush1.msra.mxu0 0.0
        %2277 = vmatprep.subr.mxu0 0.0
        %2278 = vmatpush1.msra.mxu0 0.0
        %2279 = vmatprep.subr.mxu0 0.0
        %2280 = vmatpush1.msra.mxu0 0.0
        %2281 = vmatprep.subr.mxu0 0.0
        %2282 = vmatpush1.msra.mxu0 0.0
        %2283 = vmatprep.subr.mxu0 0.0
        %2284 = vmatpush1.msra.mxu0 0.0
        %2285 = vmatprep.subr.mxu0 0.0
        %2286 = vmatpush1.msra.mxu0 0.0
        %2287 = vmatprep.subr.mxu0 0.0
        %2288 = vmatpush1.msra.mxu0 0.0
        %2289 = vmatprep.subr.mxu0 0.0
        %2290 = vmatpush1.msra.mxu0 0.0
        %2291 = vmatprep.subr.mxu0 0.0
        %2292 = vmatpush1.msra.mxu0 0.0
        %2293 = vmatprep.subr.mxu0 0.0
        %2294 = vmatpush1.msra.mxu0 0.0
        %2295 = vmatprep.subr.mxu0 0.0
        %2296 = vmatpush1.msra.mxu0 0.0
        %2297 = vmatprep.subr.mxu0 0.0
        %2298 = vmatpush1.msra.mxu0 0.0
        %2299 = vmatprep.subr.mxu0 0.0
        %2300 = vmatpush1.msra.mxu0 0.0
        %2301 = vmatprep.subr.mxu0 0.0
        %2302 = vmatpush1.msra.mxu0 0.0
        %2303 = vmatprep.subr.mxu0 0.0
        %2304 = vmatpush1.msra.mxu0 0.0
        %2305 = vmatprep.subr.mxu0 0.0
        %2306 = vmatpush1.msra.mxu0 0.0
        %2307 = vmatprep.subr.mxu0 0.0
        %2308 = vmatpush1.msra.mxu0 0.0
        %2309 = vmatprep.subr.mxu0 0.0
        %2310 = vmatpush1.msra.mxu0 0.0
        %2311 = vmatprep.subr.mxu0 0.0
        %2312 = vmatpush1.msra.mxu0 0.0
        %2313 = vmatprep.subr.mxu0 0.0
        %2314 = vmatpush1.msra.mxu0 0.0
        %2315 = vmatprep.subr.mxu0 0.0
        %2316 = vmatpush1.msra.mxu0 0.0
        %2317 = vmatprep.subr.mxu0 0.0
        %2318 = vmatpush1.msra.mxu0 0.0
        %2319 = vmatprep.mubr.f32.mxu0 0.0
        %2320 = vmatmul.mubr.f32.gmra.mrb[0].mxu0 %v2250
        %v2321 = vpop.f32.mrb[0].mxu0
        %v2322 = vadd.f32 %v2247, %v2321
        %v2323 = vpop.f32.mrb[0].mxu0
        %2324 = vmatprep.mubr.f32.mxu0 0.0
        %2325 = vmatmul.mubr.f32.gmra.mrb[0].mxu0 %v2253
        %v2326 = vpop.f32.mrb[0].mxu0
        %v2327 = vadd.f32 %v2247, %v2326
        %v2328 = vpop.f32.mrb[0].mxu0
        %2329 = vdwg.mxu0
        %v2330 = vmax.f32 %v2322, 0.0
        %v2331 = vmax.f32 %v2327, 0.0
        %v2332 = vld [vmem:[%s16] sm:$0xff]
        %v2333 = vld [vmem:[%s16 + $0x8] sm:$0xff]
        %v2334 = vld [vmem:[%s16 + $0x10] sm:$0xff]
        %v2335 = vld [vmem:[%s16 + $0x18] sm:$0xff]
        %v2336 = vld [vmem:[%s16 + $0x20] sm:$0xff]
        %v2337 = vld [vmem:[%s16 + $0x28] sm:$0xff]
        %v2338 = vld [vmem:[%s16 + $0x30] sm:$0xff]
        %v2339 = vld [vmem:[%s16 + $0x38] sm:$0xff]
        %v2340 = vld [vmem:[%s17] sm:$0x1]
        %v2342 = vlaneseq
        %v2343 = vshrl.u32 %v2342, 7
        %v2344 = vsub.s32 0, %v2343
        %v2345 = vrot.slane %v2340, %v2344
        %vm2347 = vcmask 523264
        %v2349 = vsel %vm2347, %v2330, 0
        %v2352 = vsel %vm2347, %v2331, 0
        %2354 = vmatprep.subr.mxu0 0.0
        %2355 = vmatpush1.msra.mxu0 %v2332
        %2356 = vmatprep.subr.mxu0 0.0
        %2357 = vmatpush1.msra.mxu0 %v2333
        %2358 = vmatprep.subr.mxu0 0.0
        %2359 = vmatpush1.msra.mxu0 %v2334
        %2360 = vmatprep.subr.mxu0 0.0
        %2361 = vmatpush1.msra.mxu0 %v2335
        %2362 = vmatprep.subr.mxu0 0.0
        %2363 = vmatpush1.msra.mxu0 %v2336
        %2364 = vmatprep.subr.mxu0 0.0
        %2365 = vmatpush1.msra.mxu0 %v2337
        %2366 = vmatprep.subr.mxu0 0.0
        %2367 = vmatpush1.msra.mxu0 %v2338
        %2368 = vmatprep.subr.mxu0 0.0
        %2369 = vmatpush1.msra.mxu0 %v2339
        %2370 = vmatprep.subr.mxu0 0.0
        %2371 = vmatpush1.msra.mxu0 0.0
        %2372 = vmatprep.subr.mxu0 0.0
        %2373 = vmatpush1.msra.mxu0 0.0
        %2374 = vmatprep.subr.mxu0 0.0
        %2375 = vmatpush1.msra.mxu0 0.0
        %2376 = vmatprep.subr.mxu0 0.0
        %2377 = vmatpush1.msra.mxu0 0.0
        %2378 = vmatprep.subr.mxu0 0.0
        %2379 = vmatpush1.msra.mxu0 0.0
        %2380 = vmatprep.subr.mxu0 0.0
        %2381 = vmatpush1.msra.mxu0 0.0
        %2382 = vmatprep.subr.mxu0 0.0
        %2383 = vmatpush1.msra.mxu0 0.0
        %2384 = vmatprep.subr.mxu0 0.0
        %2385 = vmatpush1.msra.mxu0 0.0
        %2386 = vmatprep.subr.mxu0 0.0
        %2387 = vmatpush1.msra.mxu0 0.0
        %2388 = vmatprep.subr.mxu0 0.0
        %2389 = vmatpush1.msra.mxu0 0.0
        %2390 = vmatprep.subr.mxu0 0.0
        %2391 = vmatpush1.msra.mxu0 0.0
        %2392 = vmatprep.subr.mxu0 0.0
        %2393 = vmatpush1.msra.mxu0 0.0
        %2394 = vmatprep.subr.mxu0 0.0
        %2395 = vmatpush1.msra.mxu0 0.0
        %2396 = vmatprep.subr.mxu0 0.0
        %2397 = vmatpush1.msra.mxu0 0.0
        %2398 = vmatprep.subr.mxu0 0.0
        %2399 = vmatpush1.msra.mxu0 0.0
        %2400 = vmatprep.subr.mxu0 0.0
        %2401 = vmatpush1.msra.mxu0 0.0
        %2402 = vmatprep.subr.mxu0 0.0
        %2403 = vmatpush1.msra.mxu0 0.0
        %2404 = vmatprep.subr.mxu0 0.0
        %2405 = vmatpush1.msra.mxu0 0.0
        %2406 = vmatprep.subr.mxu0 0.0
        %2407 = vmatpush1.msra.mxu0 0.0
        %2408 = vmatprep.subr.mxu0 0.0
        %2409 = vmatpush1.msra.mxu0 0.0
        %2410 = vmatprep.subr.mxu0 0.0
        %2411 = vmatpush1.msra.mxu0 0.0
        %2412 = vmatprep.subr.mxu0 0.0
        %2413 = vmatpush1.msra.mxu0 0.0
        %2414 = vmatprep.subr.mxu0 0.0
        %2415 = vmatpush1.msra.mxu0 0.0
        %2416 = vmatprep.subr.mxu0 0.0
        %2417 = vmatpush1.msra.mxu0 0.0
        %2418 = vmatprep.mubr.f32.mxu0 0.0
        %2419 = vmatmul.mubr.f32.gmra.mrb[0].mxu0 %v2349
        %v2420 = vpop.f32.mrb[0].mxu0
        %v2421 = vadd.f32 %v2345, %v2420
        %v2422 = vpop.f32.mrb[0].mxu0
        %2423 = vmatprep.mubr.f32.mxu0 0.0
        %2424 = vmatmul.mubr.f32.gmra.mrb[0].mxu0 %v2352
        %v2425 = vpop.f32.mrb[0].mxu0
        %v2426 = vadd.f32 %v2345, %v2425
        %v2427 = vpop.f32.mrb[0].mxu0
        %2428 = vdwg.mxu0
        %v2429 = vadd.f32 %v2421, %v2236
        %v2430 = vadd.f32 %v2426, %v2237
        %v2431 = vld [vmem:[%s18] sm:$0x1]
        %v2432 = vld [vmem:[%s19] sm:$0x1]
        %v2433 = vsel %vm798, %v2429, 0.0
        %2434 = vadd.xlane.f32.xlu0 %v2433
        %v2435 = vpop.xlane.xlu0 %2434
        %v2436 = vsel %vm798, %v2430, 0.0
        %2437 = vadd.xlane.f32.xlu0 %v2436
        %v2438 = vpop.xlane.xlu0 %2437
        %v2439 = vmul.f32 %v2435, %v805
        %v2440 = vmul.f32 %v2438, %v805
        %v2441 = vsub.f32 %v2429, %v2439
        %v2442 = vsub.f32 %v2430, %v2440
        %v2443 = vmul.f32 %v2441, %v2441
        %v2444 = vmul.f32 %v2442, %v2442
        %v2445 = vsel %vm798, %v2443, 0.0
        %2446 = vadd.xlane.f32.xlu0 %v2445
        %v2447 = vpop.xlane.xlu0 %2446
        %v2448 = vsel %vm798, %v2444, 0.0
        %2449 = vadd.xlane.f32.xlu0 %v2448
        %v2450 = vpop.xlane.xlu0 %2449
        %v2451 = vmul.f32 %v2447, %v805
        %v2452 = vmul.f32 %v2450, %v805
        %v2453 = vadd.f32 %v2451, 1e-06
        %v2454 = vadd.f32 %v2452, 1e-06
        %v2455 = vrsqrt.pop %v2453
        %v2456 = vrsqrt.pop %v2454
        %v2457 = vmul.f32 %v2441, %v2455
        %v2458 = vmul.f32 %v2442, %v2456
        %v2460 = vlaneseq
        %v2461 = vshrl.u32 %v2460, 7
        %v2462 = vsub.s32 0, %v2461
        %v2463 = vrot.slane %v2431, %v2462
        %v2465 = vmul.f32 %v2457, %v2463
        %v2466 = vmul.f32 %v2458, %v2463
        %v2468 = vlaneseq
        %v2469 = vshrl.u32 %v2468, 7
        %v2470 = vsub.s32 0, %v2469
        %v2471 = vrot.slane %v2432, %v2470
        %v2473 = vadd.f32 %v2465, %v2471
        %v2474 = vadd.f32 %v2466, %v2471
        %s2475 = scalar_lea.vmem %s4, 64
        %v2476 = vld [vmem:[%s2475] sm:$0xff]
        %v2477 = vld [vmem:[%s2475 + $0x8] sm:$0xff]
        %v2478 = vld [vmem:[%s2475 + $0x10] sm:$0xff]
        %v2479 = vld [vmem:[%s2475 + $0x18] sm:$0xff]
        %s2480 = scalar_lea.vmem %s5, 2
        %v2481 = vld [vmem:[%s2480] sm:$0x1]
        %v2483 = vlaneseq
        %v2484 = vshrl.u32 %v2483, 7
        %v2485 = vsub.s32 0, %v2484
        %v2486 = vrot.slane %v2481, %v2485
        %v2489 = vsel %vm798, %v2473, 0
        %v2492 = vsel %vm798, %v2474, 0
        %2494 = vmatprep.subr.mxu0 0.0
        %2495 = vmatpush1.msra.mxu0 %v2476
        %2496 = vmatprep.subr.mxu0 0.0
        %2497 = vmatpush1.msra.mxu0 %v2477
        %2498 = vmatprep.subr.mxu0 0.0
        %2499 = vmatpush1.msra.mxu0 %v2478
        %2500 = vmatprep.subr.mxu0 0.0
        %2501 = vmatpush1.msra.mxu0 %v2479
        %2502 = vmatprep.subr.mxu0 0.0
        %2503 = vmatpush1.msra.mxu0 0.0
        %2504 = vmatprep.subr.mxu0 0.0
        %2505 = vmatpush1.msra.mxu0 0.0
        %2506 = vmatprep.subr.mxu0 0.0
        %2507 = vmatpush1.msra.mxu0 0.0
        %2508 = vmatprep.subr.mxu0 0.0
        %2509 = vmatpush1.msra.mxu0 0.0
        %2510 = vmatprep.subr.mxu0 0.0
        %2511 = vmatpush1.msra.mxu0 0.0
        %2512 = vmatprep.subr.mxu0 0.0
        %2513 = vmatpush1.msra.mxu0 0.0
        %2514 = vmatprep.subr.mxu0 0.0
        %2515 = vmatpush1.msra.mxu0 0.0
        %2516 = vmatprep.subr.mxu0 0.0
        %2517 = vmatpush1.msra.mxu0 0.0
        %2518 = vmatprep.subr.mxu0 0.0
        %2519 = vmatpush1.msra.mxu0 0.0
        %2520 = vmatprep.subr.mxu0 0.0
        %2521 = vmatpush1.msra.mxu0 0.0
        %2522 = vmatprep.subr.mxu0 0.0
        %2523 = vmatpush1.msra.mxu0 0.0
        %2524 = vmatprep.subr.mxu0 0.0
        %2525 = vmatpush1.msra.mxu0 0.0
        %2526 = vmatprep.subr.mxu0 0.0
        %2527 = vmatpush1.msra.mxu0 0.0
        %2528 = vmatprep.subr.mxu0 0.0
        %2529 = vmatpush1.msra.mxu0 0.0
        %2530 = vmatprep.subr.mxu0 0.0
        %2531 = vmatpush1.msra.mxu0 0.0
        %2532 = vmatprep.subr.mxu0 0.0
        %2533 = vmatpush1.msra.mxu0 0.0
        %2534 = vmatprep.subr.mxu0 0.0
        %2535 = vmatpush1.msra.mxu0 0.0
        %2536 = vmatprep.subr.mxu0 0.0
        %2537 = vmatpush1.msra.mxu0 0.0
        %2538 = vmatprep.subr.mxu0 0.0
        %2539 = vmatpush1.msra.mxu0 0.0
        %2540 = vmatprep.subr.mxu0 0.0
        %2541 = vmatpush1.msra.mxu0 0.0
        %2542 = vmatprep.subr.mxu0 0.0
        %2543 = vmatpush1.msra.mxu0 0.0
        %2544 = vmatprep.subr.mxu0 0.0
        %2545 = vmatpush1.msra.mxu0 0.0
        %2546 = vmatprep.subr.mxu0 0.0
        %2547 = vmatpush1.msra.mxu0 0.0
        %2548 = vmatprep.subr.mxu0 0.0
        %2549 = vmatpush1.msra.mxu0 0.0
        %2550 = vmatprep.subr.mxu0 0.0
        %2551 = vmatpush1.msra.mxu0 0.0
        %2552 = vmatprep.subr.mxu0 0.0
        %2553 = vmatpush1.msra.mxu0 0.0
        %2554 = vmatprep.subr.mxu0 0.0
        %2555 = vmatpush1.msra.mxu0 0.0
        %2556 = vmatprep.subr.mxu0 0.0
        %2557 = vmatpush1.msra.mxu0 0.0
        %2558 = vmatprep.mubr.f32.mxu0 0.0
        %2559 = vmatmul.mubr.f32.gmra.mrb[0].mxu0 %v2489
        %v2560 = vpop.f32.mrb[0].mxu0
        %v2561 = vadd.f32 %v2486, %v2560
        %v2562 = vpop.f32.mrb[0].mxu0
        %2563 = vmatprep.mubr.f32.mxu0 0.0
        %2564 = vmatmul.mubr.f32.gmra.mrb[0].mxu0 %v2492
        %v2565 = vpop.f32.mrb[0].mxu0
        %v2566 = vadd.f32 %v2486, %v2565
        %v2567 = vpop.f32.mrb[0].mxu0
        %2568 = vdwg.mxu0
        %s2569 = scalar_lea.vmem %s6, 64
        %v2570 = vld [vmem:[%s2569] sm:$0xff]
        %v2571 = vld [vmem:[%s2569 + $0x8] sm:$0xff]
        %v2572 = vld [vmem:[%s2569 + $0x10] sm:$0xff]
        %v2573 = vld [vmem:[%s2569 + $0x18] sm:$0xff]
        %s2574 = scalar_lea.vmem %s7, 2
        %v2575 = vld [vmem:[%s2574] sm:$0x1]
        %v2577 = vlaneseq
        %v2578 = vshrl.u32 %v2577, 7
        %v2579 = vsub.s32 0, %v2578
        %v2580 = vrot.slane %v2575, %v2579
        %2582 = vmatprep.subr.mxu0 0.0
        %2583 = vmatpush1.msra.mxu0 %v2570
        %2584 = vmatprep.subr.mxu0 0.0
        %2585 = vmatpush1.msra.mxu0 %v2571
        %2586 = vmatprep.subr.mxu0 0.0
        %2587 = vmatpush1.msra.mxu0 %v2572
        %2588 = vmatprep.subr.mxu0 0.0
        %2589 = vmatpush1.msra.mxu0 %v2573
        %2590 = vmatprep.subr.mxu0 0.0
        %2591 = vmatpush1.msra.mxu0 0.0
        %2592 = vmatprep.subr.mxu0 0.0
        %2593 = vmatpush1.msra.mxu0 0.0
        %2594 = vmatprep.subr.mxu0 0.0
        %2595 = vmatpush1.msra.mxu0 0.0
        %2596 = vmatprep.subr.mxu0 0.0
        %2597 = vmatpush1.msra.mxu0 0.0
        %2598 = vmatprep.subr.mxu0 0.0
        %2599 = vmatpush1.msra.mxu0 0.0
        %2600 = vmatprep.subr.mxu0 0.0
        %2601 = vmatpush1.msra.mxu0 0.0
        %2602 = vmatprep.subr.mxu0 0.0
        %2603 = vmatpush1.msra.mxu0 0.0
        %2604 = vmatprep.subr.mxu0 0.0
        %2605 = vmatpush1.msra.mxu0 0.0
        %2606 = vmatprep.subr.mxu0 0.0
        %2607 = vmatpush1.msra.mxu0 0.0
        %2608 = vmatprep.subr.mxu0 0.0
        %2609 = vmatpush1.msra.mxu0 0.0
        %2610 = vmatprep.subr.mxu0 0.0
        %2611 = vmatpush1.msra.mxu0 0.0
        %2612 = vmatprep.subr.mxu0 0.0
        %2613 = vmatpush1.msra.mxu0 0.0
        %2614 = vmatprep.subr.mxu0 0.0
        %2615 = vmatpush1.msra.mxu0 0.0
        %2616 = vmatprep.subr.mxu0 0.0
        %2617 = vmatpush1.msra.mxu0 0.0
        %2618 = vmatprep.subr.mxu0 0.0
        %2619 = vmatpush1.msra.mxu0 0.0
        %2620 = vmatprep.subr.mxu0 0.0
        %2621 = vmatpush1.msra.mxu0 0.0
        %2622 = vmatprep.subr.mxu0 0.0
        %2623 = vmatpush1.msra.mxu0 0.0
        %2624 = vmatprep.subr.mxu0 0.0
        %2625 = vmatpush1.msra.mxu0 0.0
        %2626 = vmatprep.subr.mxu0 0.0
        %2627 = vmatpush1.msra.mxu0 0.0
        %2628 = vmatprep.subr.mxu0 0.0
        %2629 = vmatpush1.msra.mxu0 0.0
        %2630 = vmatprep.subr.mxu0 0.0
        %2631 = vmatpush1.msra.mxu0 0.0
        %2632 = vmatprep.subr.mxu0 0.0
        %2633 = vmatpush1.msra.mxu0 0.0
        %2634 = vmatprep.subr.mxu0 0.0
        %2635 = vmatpush1.msra.mxu0 0.0
        %2636 = vmatprep.subr.mxu0 0.0
        %2637 = vmatpush1.msra.mxu0 0.0
        %2638 = vmatprep.subr.mxu0 0.0
        %2639 = vmatpush1.msra.mxu0 0.0
        %2640 = vmatprep.subr.mxu0 0.0
        %2641 = vmatpush1.msra.mxu0 0.0
        %2642 = vmatprep.subr.mxu0 0.0
        %2643 = vmatpush1.msra.mxu0 0.0
        %2644 = vmatprep.subr.mxu0 0.0
        %2645 = vmatpush1.msra.mxu0 0.0
        %2646 = vmatprep.mubr.f32.mxu0 0.0
        %2647 = vmatmul.mubr.f32.gmra.mrb[0].mxu0 %v2489
        %v2648 = vpop.f32.mrb[0].mxu0
        %v2649 = vadd.f32 %v2580, %v2648
        %v2650 = vpop.f32.mrb[0].mxu0
        %2651 = vmatprep.mubr.f32.mxu0 0.0
        %2652 = vmatmul.mubr.f32.gmra.mrb[0].mxu0 %v2492
        %v2653 = vpop.f32.mrb[0].mxu0
        %v2654 = vadd.f32 %v2580, %v2653
        %v2655 = vpop.f32.mrb[0].mxu0
        %2656 = vdwg.mxu0
        %s2657 = scalar_lea.vmem %s8, 64
        %v2658 = vld [vmem:[%s2657] sm:$0xff]
        %v2659 = vld [vmem:[%s2657 + $0x8] sm:$0xff]
        %v2660 = vld [vmem:[%s2657 + $0x10] sm:$0xff]
        %v2661 = vld [vmem:[%s2657 + $0x18] sm:$0xff]
        %s2662 = scalar_lea.vmem %s9, 2
        %v2663 = vld [vmem:[%s2662] sm:$0x1]
        %v2665 = vlaneseq
        %v2666 = vshrl.u32 %v2665, 7
        %v2667 = vsub.s32 0, %v2666
        %v2668 = vrot.slane %v2663, %v2667
        %2670 = vmatprep.subr.mxu0 0.0
        %2671 = vmatpush1.msra.mxu0 %v2658
        %2672 = vmatprep.subr.mxu0 0.0
        %2673 = vmatpush1.msra.mxu0 %v2659
        %2674 = vmatprep.subr.mxu0 0.0
        %2675 = vmatpush1.msra.mxu0 %v2660
        %2676 = vmatprep.subr.mxu0 0.0
        %2677 = vmatpush1.msra.mxu0 %v2661
        %2678 = vmatprep.subr.mxu0 0.0
        %2679 = vmatpush1.msra.mxu0 0.0
        %2680 = vmatprep.subr.mxu0 0.0
        %2681 = vmatpush1.msra.mxu0 0.0
        %2682 = vmatprep.subr.mxu0 0.0
        %2683 = vmatpush1.msra.mxu0 0.0
        %2684 = vmatprep.subr.mxu0 0.0
        %2685 = vmatpush1.msra.mxu0 0.0
        %2686 = vmatprep.subr.mxu0 0.0
        %2687 = vmatpush1.msra.mxu0 0.0
        %2688 = vmatprep.subr.mxu0 0.0
        %2689 = vmatpush1.msra.mxu0 0.0
        %2690 = vmatprep.subr.mxu0 0.0
        %2691 = vmatpush1.msra.mxu0 0.0
        %2692 = vmatprep.subr.mxu0 0.0
        %2693 = vmatpush1.msra.mxu0 0.0
        %2694 = vmatprep.subr.mxu0 0.0
        %2695 = vmatpush1.msra.mxu0 0.0
        %2696 = vmatprep.subr.mxu0 0.0
        %2697 = vmatpush1.msra.mxu0 0.0
        %2698 = vmatprep.subr.mxu0 0.0
        %2699 = vmatpush1.msra.mxu0 0.0
        %2700 = vmatprep.subr.mxu0 0.0
        %2701 = vmatpush1.msra.mxu0 0.0
        %2702 = vmatprep.subr.mxu0 0.0
        %2703 = vmatpush1.msra.mxu0 0.0
        %2704 = vmatprep.subr.mxu0 0.0
        %2705 = vmatpush1.msra.mxu0 0.0
        %2706 = vmatprep.subr.mxu0 0.0
        %2707 = vmatpush1.msra.mxu0 0.0
        %2708 = vmatprep.subr.mxu0 0.0
        %2709 = vmatpush1.msra.mxu0 0.0
        %2710 = vmatprep.subr.mxu0 0.0
        %2711 = vmatpush1.msra.mxu0 0.0
        %2712 = vmatprep.subr.mxu0 0.0
        %2713 = vmatpush1.msra.mxu0 0.0
        %2714 = vmatprep.subr.mxu0 0.0
        %2715 = vmatpush1.msra.mxu0 0.0
        %2716 = vmatprep.subr.mxu0 0.0
        %2717 = vmatpush1.msra.mxu0 0.0
        %2718 = vmatprep.subr.mxu0 0.0
        %2719 = vmatpush1.msra.mxu0 0.0
        %2720 = vmatprep.subr.mxu0 0.0
        %2721 = vmatpush1.msra.mxu0 0.0
        %2722 = vmatprep.subr.mxu0 0.0
        %2723 = vmatpush1.msra.mxu0 0.0
        %2724 = vmatprep.subr.mxu0 0.0
        %2725 = vmatpush1.msra.mxu0 0.0
        %2726 = vmatprep.subr.mxu0 0.0
        %2727 = vmatpush1.msra.mxu0 0.0
        %2728 = vmatprep.subr.mxu0 0.0
        %2729 = vmatpush1.msra.mxu0 0.0
        %2730 = vmatprep.subr.mxu0 0.0
        %2731 = vmatpush1.msra.mxu0 0.0
        %2732 = vmatprep.subr.mxu0 0.0
        %2733 = vmatpush1.msra.mxu0 0.0
        %2734 = vmatprep.mubr.f32.mxu0 0.0
        %2735 = vmatmul.mubr.f32.gmra.mrb[0].mxu0 %v2489
        %v2736 = vpop.f32.mrb[0].mxu0
        %v2737 = vadd.f32 %v2668, %v2736
        %v2738 = vpop.f32.mrb[0].mxu0
        %2739 = vmatprep.mubr.f32.mxu0 0.0
        %2740 = vmatmul.mubr.f32.gmra.mrb[0].mxu0 %v2492
        %v2741 = vpop.f32.mrb[0].mxu0
        %v2742 = vadd.f32 %v2668, %v2741
        %v2743 = vpop.f32.mrb[0].mxu0
        %2744 = vdwg.mxu0
        %v2746 = vsel %vm1106, %v2561, 0
        %v2749 = vsel %vm1106, %v2649, 0
        %2751 = vmatprep.subr.mxu0 0.0
        %2752 = vmatpush1.xpose.msra.mxu0 %v2749
        %2753 = vmatprep.subr.mxu0 0.0
        %2754 = vmatpush1.xpose.msra.mxu0 0.0
        %2755 = vmatprep.subr.mxu0 0.0
        %2756 = vmatpush1.xpose.msra.mxu0 0.0
        %2757 = vmatprep.subr.mxu0 0.0
        %2758 = vmatpush1.xpose.msra.mxu0 0.0
        %2759 = vmatprep.subr.mxu0 0.0
        %2760 = vmatpush1.xpose.msra.mxu0 0.0
        %2761 = vmatprep.subr.mxu0 0.0
        %2762 = vmatpush1.xpose.msra.mxu0 0.0
        %2763 = vmatprep.subr.mxu0 0.0
        %2764 = vmatpush1.xpose.msra.mxu0 0.0
        %2765 = vmatprep.subr.mxu0 0.0
        %2766 = vmatpush1.xpose.msra.mxu0 0.0
        %2767 = vmatprep.subr.mxu0 0.0
        %2768 = vmatpush1.xpose.msra.mxu0 0.0
        %2769 = vmatprep.subr.mxu0 0.0
        %2770 = vmatpush1.xpose.msra.mxu0 0.0
        %2771 = vmatprep.subr.mxu0 0.0
        %2772 = vmatpush1.xpose.msra.mxu0 0.0
        %2773 = vmatprep.subr.mxu0 0.0
        %2774 = vmatpush1.xpose.msra.mxu0 0.0
        %2775 = vmatprep.subr.mxu0 0.0
        %2776 = vmatpush1.xpose.msra.mxu0 0.0
        %2777 = vmatprep.subr.mxu0 0.0
        %2778 = vmatpush1.xpose.msra.mxu0 0.0
        %2779 = vmatprep.subr.mxu0 0.0
        %2780 = vmatpush1.xpose.msra.mxu0 0.0
        %2781 = vmatprep.subr.mxu0 0.0
        %2782 = vmatpush1.xpose.msra.mxu0 0.0
        %2783 = vmatprep.subr.mxu0 0.0
        %2784 = vmatpush1.xpose.msra.mxu0 0.0
        %2785 = vmatprep.subr.mxu0 0.0
        %2786 = vmatpush1.xpose.msra.mxu0 0.0
        %2787 = vmatprep.subr.mxu0 0.0
        %2788 = vmatpush1.xpose.msra.mxu0 0.0
        %2789 = vmatprep.subr.mxu0 0.0
        %2790 = vmatpush1.xpose.msra.mxu0 0.0
        %2791 = vmatprep.subr.mxu0 0.0
        %2792 = vmatpush1.xpose.msra.mxu0 0.0
        %2793 = vmatprep.subr.mxu0 0.0
        %2794 = vmatpush1.xpose.msra.mxu0 0.0
        %2795 = vmatprep.subr.mxu0 0.0
        %2796 = vmatpush1.xpose.msra.mxu0 0.0
        %2797 = vmatprep.subr.mxu0 0.0
        %2798 = vmatpush1.xpose.msra.mxu0 0.0
        %2799 = vmatprep.subr.mxu0 0.0
        %2800 = vmatpush1.xpose.msra.mxu0 0.0
        %2801 = vmatprep.subr.mxu0 0.0
        %2802 = vmatpush1.xpose.msra.mxu0 0.0
        %2803 = vmatprep.subr.mxu0 0.0
        %2804 = vmatpush1.xpose.msra.mxu0 0.0
        %2805 = vmatprep.subr.mxu0 0.0
        %2806 = vmatpush1.xpose.msra.mxu0 0.0
        %2807 = vmatprep.subr.mxu0 0.0
        %2808 = vmatpush1.xpose.msra.mxu0 0.0
        %2809 = vmatprep.subr.mxu0 0.0
        %2810 = vmatpush1.xpose.msra.mxu0 0.0
        %2811 = vmatprep.subr.mxu0 0.0
        %2812 = vmatpush1.xpose.msra.mxu0 0.0
        %2813 = vmatprep.subr.mxu0 0.0
        %2814 = vmatpush1.xpose.msra.mxu0 0.0
        %2815 = vmatprep.mubr.f32.mxu0 0.0
        %2816 = vmatmul.mubr.f32.gmra.mrb[0].mxu0 %v2746
        %v2817 = vpop.f32.mrb[0].mxu0
        %v2818 = vadd.f32 0.0, %v2817
        %v2819 = vpop.f32.mrb[0].mxu0
        %2820 = vdwg.mxu0
        %v2822 = vsel %vm1106, %v2566, 0
        %v2825 = vsel %vm1106, %v2654, 0
        %2827 = vmatprep.subr.mxu0 0.0
        %2828 = vmatpush1.xpose.msra.mxu0 %v2825
        %2829 = vmatprep.subr.mxu0 0.0
        %2830 = vmatpush1.xpose.msra.mxu0 0.0
        %2831 = vmatprep.subr.mxu0 0.0
        %2832 = vmatpush1.xpose.msra.mxu0 0.0
        %2833 = vmatprep.subr.mxu0 0.0
        %2834 = vmatpush1.xpose.msra.mxu0 0.0
        %2835 = vmatprep.subr.mxu0 0.0
        %2836 = vmatpush1.xpose.msra.mxu0 0.0
        %2837 = vmatprep.subr.mxu0 0.0
        %2838 = vmatpush1.xpose.msra.mxu0 0.0
        %2839 = vmatprep.subr.mxu0 0.0
        %2840 = vmatpush1.xpose.msra.mxu0 0.0
        %2841 = vmatprep.subr.mxu0 0.0
        %2842 = vmatpush1.xpose.msra.mxu0 0.0
        %2843 = vmatprep.subr.mxu0 0.0
        %2844 = vmatpush1.xpose.msra.mxu0 0.0
        %2845 = vmatprep.subr.mxu0 0.0
        %2846 = vmatpush1.xpose.msra.mxu0 0.0
        %2847 = vmatprep.subr.mxu0 0.0
        %2848 = vmatpush1.xpose.msra.mxu0 0.0
        %2849 = vmatprep.subr.mxu0 0.0
        %2850 = vmatpush1.xpose.msra.mxu0 0.0
        %2851 = vmatprep.subr.mxu0 0.0
        %2852 = vmatpush1.xpose.msra.mxu0 0.0
        %2853 = vmatprep.subr.mxu0 0.0
        %2854 = vmatpush1.xpose.msra.mxu0 0.0
        %2855 = vmatprep.subr.mxu0 0.0
        %2856 = vmatpush1.xpose.msra.mxu0 0.0
        %2857 = vmatprep.subr.mxu0 0.0
        %2858 = vmatpush1.xpose.msra.mxu0 0.0
        %2859 = vmatprep.subr.mxu0 0.0
        %2860 = vmatpush1.xpose.msra.mxu0 0.0
        %2861 = vmatprep.subr.mxu0 0.0
        %2862 = vmatpush1.xpose.msra.mxu0 0.0
        %2863 = vmatprep.subr.mxu0 0.0
        %2864 = vmatpush1.xpose.msra.mxu0 0.0
        %2865 = vmatprep.subr.mxu0 0.0
        %2866 = vmatpush1.xpose.msra.mxu0 0.0
        %2867 = vmatprep.subr.mxu0 0.0
        %2868 = vmatpush1.xpose.msra.mxu0 0.0
        %2869 = vmatprep.subr.mxu0 0.0
        %2870 = vmatpush1.xpose.msra.mxu0 0.0
        %2871 = vmatprep.subr.mxu0 0.0
        %2872 = vmatpush1.xpose.msra.mxu0 0.0
        %2873 = vmatprep.subr.mxu0 0.0
        %2874 = vmatpush1.xpose.msra.mxu0 0.0
        %2875 = vmatprep.subr.mxu0 0.0
        %2876 = vmatpush1.xpose.msra.mxu0 0.0
        %2877 = vmatprep.subr.mxu0 0.0
        %2878 = vmatpush1.xpose.msra.mxu0 0.0
        %2879 = vmatprep.subr.mxu0 0.0
        %2880 = vmatpush1.xpose.msra.mxu0 0.0
        %2881 = vmatprep.subr.mxu0 0.0
        %2882 = vmatpush1.xpose.msra.mxu0 0.0
        %2883 = vmatprep.subr.mxu0 0.0
        %2884 = vmatpush1.xpose.msra.mxu0 0.0
        %2885 = vmatprep.subr.mxu0 0.0
        %2886 = vmatpush1.xpose.msra.mxu0 0.0
        %2887 = vmatprep.subr.mxu0 0.0
        %2888 = vmatpush1.xpose.msra.mxu0 0.0
        %2889 = vmatprep.subr.mxu0 0.0
        %2890 = vmatpush1.xpose.msra.mxu0 0.0
        %2891 = vmatprep.mubr.f32.mxu0 0.0
        %2892 = vmatmul.mubr.f32.gmra.mrb[0].mxu0 %v2822
        %v2893 = vpop.f32.mrb[0].mxu0
        %v2894 = vadd.f32 0.0, %v2893
        %v2895 = vpop.f32.mrb[0].mxu0
        %2896 = vdwg.mxu0
        %v2897 = vmul.f32 %v2818, 0.25
        %v2898 = vmul.f32 %v2894, 0.25
        %v2899 = vsel %vm1261, %v2897, -inf
        %2900 = vmax.xlane.f32.xlu0 %v2899
        %v2901 = vpop.xlane.xlu0 %2900
        %v2902 = vsel %vm1261, %v2898, -inf
        %2903 = vmax.xlane.f32.xlu0 %v2902
        %v2904 = vpop.xlane.xlu0 %2903
        %v2905 = vsub.f32 %v2897, %v2901
        %v2906 = vsub.f32 %v2898, %v2904
        %v2907 = vmul.f32 %v2905, 1.442695
        %v2908 = vpow.pop %v2907
        %v2909 = vmul.f32 %v2906, 1.442695
        %v2910 = vpow.pop %v2909
        %v2911 = vsel %vm1261, %v2908, 0.0
        %2912 = vadd.xlane.f32.xlu0 %v2911
        %v2913 = vpop.xlane.xlu0 %2912
        %v2914 = vsel %vm1261, %v2910, 0.0
        %2915 = vadd.xlane.f32.xlu0 %v2914
        %v2916 = vpop.xlane.xlu0 %2915
        %v2917 = vrcp.pop %v2913
        %v2918 = vrcp.pop %v2916
        %v2919 = vmul.f32 %v2908, %v2917
        %v2920 = vmul.f32 %v2910, %v2918
        %v2922 = vsel %vm1261, %v2919, 0
        %2924 = vmatprep.subr.mxu0 0.0
        %2925 = vmatpush1.msra.mxu0 %v2737
        %2926 = vmatprep.subr.mxu0 0.0
        %2927 = vmatpush1.msra.mxu0 0.0
        %2928 = vmatprep.subr.mxu0 0.0
        %2929 = vmatpush1.msra.mxu0 0.0
        %2930 = vmatprep.subr.mxu0 0.0
        %2931 = vmatpush1.msra.mxu0 0.0
        %2932 = vmatprep.subr.mxu0 0.0
        %2933 = vmatpush1.msra.mxu0 0.0
        %2934 = vmatprep.subr.mxu0 0.0
        %2935 = vmatpush1.msra.mxu0 0.0
        %2936 = vmatprep.subr.mxu0 0.0
        %2937 = vmatpush1.msra.mxu0 0.0
        %2938 = vmatprep.subr.mxu0 0.0
        %2939 = vmatpush1.msra.mxu0 0.0
        %2940 = vmatprep.subr.mxu0 0.0
        %2941 = vmatpush1.msra.mxu0 0.0
        %2942 = vmatprep.subr.mxu0 0.0
        %2943 = vmatpush1.msra.mxu0 0.0
        %2944 = vmatprep.subr.mxu0 0.0
        %2945 = vmatpush1.msra.mxu0 0.0
        %2946 = vmatprep.subr.mxu0 0.0
        %2947 = vmatpush1.msra.mxu0 0.0
        %2948 = vmatprep.subr.mxu0 0.0
        %2949 = vmatpush1.msra.mxu0 0.0
        %2950 = vmatprep.subr.mxu0 0.0
        %2951 = vmatpush1.msra.mxu0 0.0
        %2952 = vmatprep.subr.mxu0 0.0
        %2953 = vmatpush1.msra.mxu0 0.0
        %2954 = vmatprep.subr.mxu0 0.0
        %2955 = vmatpush1.msra.mxu0 0.0
        %2956 = vmatprep.subr.mxu0 0.0
        %2957 = vmatpush1.msra.mxu0 0.0
        %2958 = vmatprep.subr.mxu0 0.0
        %2959 = vmatpush1.msra.mxu0 0.0
        %2960 = vmatprep.subr.mxu0 0.0
        %2961 = vmatpush1.msra.mxu0 0.0
        %2962 = vmatprep.subr.mxu0 0.0
        %2963 = vmatpush1.msra.mxu0 0.0
        %2964 = vmatprep.subr.mxu0 0.0
        %2965 = vmatpush1.msra.mxu0 0.0
        %2966 = vmatprep.subr.mxu0 0.0
        %2967 = vmatpush1.msra.mxu0 0.0
        %2968 = vmatprep.subr.mxu0 0.0
        %2969 = vmatpush1.msra.mxu0 0.0
        %2970 = vmatprep.subr.mxu0 0.0
        %2971 = vmatpush1.msra.mxu0 0.0
        %2972 = vmatprep.subr.mxu0 0.0
        %2973 = vmatpush1.msra.mxu0 0.0
        %2974 = vmatprep.subr.mxu0 0.0
        %2975 = vmatpush1.msra.mxu0 0.0
        %2976 = vmatprep.subr.mxu0 0.0
        %2977 = vmatpush1.msra.mxu0 0.0
        %2978 = vmatprep.subr.mxu0 0.0
        %2979 = vmatpush1.msra.mxu0 0.0
        %2980 = vmatprep.subr.mxu0 0.0
        %2981 = vmatpush1.msra.mxu0 0.0
        %2982 = vmatprep.subr.mxu0 0.0
        %2983 = vmatpush1.msra.mxu0 0.0
        %2984 = vmatprep.subr.mxu0 0.0
        %2985 = vmatpush1.msra.mxu0 0.0
        %2986 = vmatprep.subr.mxu0 0.0
        %2987 = vmatpush1.msra.mxu0 0.0
        %2988 = vmatprep.mubr.f32.mxu0 0.0
        %2989 = vmatmul.mubr.f32.gmra.mrb[0].mxu0 %v2922
        %v2990 = vpop.f32.mrb[0].mxu0
        %v2991 = vadd.f32 0.0, %v2990
        %v2992 = vpop.f32.mrb[0].mxu0
        %2993 = vdwg.mxu0
        %v2995 = vsel %vm1261, %v2920, 0
        %2997 = vmatprep.subr.mxu0 0.0
        %2998 = vmatpush1.msra.mxu0 %v2742
        %2999 = vmatprep.subr.mxu0 0.0
        %3000 = vmatpush1.msra.mxu0 0.0
        %3001 = vmatprep.subr.mxu0 0.0
        %3002 = vmatpush1.msra.mxu0 0.0
        %3003 = vmatprep.subr.mxu0 0.0
        %3004 = vmatpush1.msra.mxu0 0.0
        %3005 = vmatprep.subr.mxu0 0.0
        %3006 = vmatpush1.msra.mxu0 0.0
        %3007 = vmatprep.subr.mxu0 0.0
        %3008 = vmatpush1.msra.mxu0 0.0
        %3009 = vmatprep.subr.mxu0 0.0
        %3010 = vmatpush1.msra.mxu0 0.0
        %3011 = vmatprep.subr.mxu0 0.0
        %3012 = vmatpush1.msra.mxu0 0.0
        %3013 = vmatprep.subr.mxu0 0.0
        %3014 = vmatpush1.msra.mxu0 0.0
        %3015 = vmatprep.subr.mxu0 0.0
        %3016 = vmatpush1.msra.mxu0 0.0
        %3017 = vmatprep.subr.mxu0 0.0
        %3018 = vmatpush1.msra.mxu0 0.0
        %3019 = vmatprep.subr.mxu0 0.0
        %3020 = vmatpush1.msra.mxu0 0.0
        %3021 = vmatprep.subr.mxu0 0.0
        %3022 = vmatpush1.msra.mxu0 0.0
        %3023 = vmatprep.subr.mxu0 0.0
        %3024 = vmatpush1.msra.mxu0 0.0
        %3025 = vmatprep.subr.mxu0 0.0
        %3026 = vmatpush1.msra.mxu0 0.0
        %3027 = vmatprep.subr.mxu0 0.0
        %3028 = vmatpush1.msra.mxu0 0.0
        %3029 = vmatprep.subr.mxu0 0.0
        %3030 = vmatpush1.msra.mxu0 0.0
        %3031 = vmatprep.subr.mxu0 0.0
        %3032 = vmatpush1.msra.mxu0 0.0
        %3033 = vmatprep.subr.mxu0 0.0
        %3034 = vmatpush1.msra.mxu0 0.0
        %3035 = vmatprep.subr.mxu0 0.0
        %3036 = vmatpush1.msra.mxu0 0.0
        %3037 = vmatprep.subr.mxu0 0.0
        %3038 = vmatpush1.msra.mxu0 0.0
        %3039 = vmatprep.subr.mxu0 0.0
        %3040 = vmatpush1.msra.mxu0 0.0
        %3041 = vmatprep.subr.mxu0 0.0
        %3042 = vmatpush1.msra.mxu0 0.0
        %3043 = vmatprep.subr.mxu0 0.0
        %3044 = vmatpush1.msra.mxu0 0.0
        %3045 = vmatprep.subr.mxu0 0.0
        %3046 = vmatpush1.msra.mxu0 0.0
        %3047 = vmatprep.subr.mxu0 0.0
        %3048 = vmatpush1.msra.mxu0 0.0
        %3049 = vmatprep.subr.mxu0 0.0
        %3050 = vmatpush1.msra.mxu0 0.0
        %3051 = vmatprep.subr.mxu0 0.0
        %3052 = vmatpush1.msra.mxu0 0.0
        %3053 = vmatprep.subr.mxu0 0.0
        %3054 = vmatpush1.msra.mxu0 0.0
        %3055 = vmatprep.subr.mxu0 0.0
        %3056 = vmatpush1.msra.mxu0 0.0
        %3057 = vmatprep.subr.mxu0 0.0
        %3058 = vmatpush1.msra.mxu0 0.0
        %3059 = vmatprep.subr.mxu0 0.0
        %3060 = vmatpush1.msra.mxu0 0.0
        %3061 = vmatprep.mubr.f32.mxu0 0.0
        %3062 = vmatmul.mubr.f32.gmra.mrb[0].mxu0 %v2995
        %v3063 = vpop.f32.mrb[0].mxu0
        %v3064 = vadd.f32 0.0, %v3063
        %v3065 = vpop.f32.mrb[0].mxu0
        %3066 = vdwg.mxu0
        %s3067 = scalar_lea.vmem %s10, 32
        %v3068 = vld [vmem:[%s3067] sm:$0xff]
        %v3069 = vld [vmem:[%s3067 + $0x8] sm:$0xff]
        %s3070 = scalar_lea.vmem %s4, 96
        %v3071 = vld [vmem:[%s3070] sm:$0xff]
        %v3072 = vld [vmem:[%s3070 + $0x8] sm:$0xff]
        %v3073 = vld [vmem:[%s3070 + $0x10] sm:$0xff]
        %v3074 = vld [vmem:[%s3070 + $0x18] sm:$0xff]
        %s3075 = scalar_lea.vmem %s5, 3
        %v3076 = vld [vmem:[%s3075] sm:$0x1]
        %v3078 = vlaneseq
        %v3079 = vshrl.u32 %v3078, 7
        %v3080 = vsub.s32 0, %v3079
        %v3081 = vrot.slane %v3076, %v3080
        %3083 = vmatprep.subr.mxu0 0.0
        %3084 = vmatpush1.msra.mxu0 %v3071
        %3085 = vmatprep.subr.mxu0 0.0
        %3086 = vmatpush1.msra.mxu0 %v3072
        %3087 = vmatprep.subr.mxu0 0.0
        %3088 = vmatpush1.msra.mxu0 %v3073
        %3089 = vmatprep.subr.mxu0 0.0
        %3090 = vmatpush1.msra.mxu0 %v3074
        %3091 = vmatprep.subr.mxu0 0.0
        %3092 = vmatpush1.msra.mxu0 0.0
        %3093 = vmatprep.subr.mxu0 0.0
        %3094 = vmatpush1.msra.mxu0 0.0
        %3095 = vmatprep.subr.mxu0 0.0
        %3096 = vmatpush1.msra.mxu0 0.0
        %3097 = vmatprep.subr.mxu0 0.0
        %3098 = vmatpush1.msra.mxu0 0.0
        %3099 = vmatprep.subr.mxu0 0.0
        %3100 = vmatpush1.msra.mxu0 0.0
        %3101 = vmatprep.subr.mxu0 0.0
        %3102 = vmatpush1.msra.mxu0 0.0
        %3103 = vmatprep.subr.mxu0 0.0
        %3104 = vmatpush1.msra.mxu0 0.0
        %3105 = vmatprep.subr.mxu0 0.0
        %3106 = vmatpush1.msra.mxu0 0.0
        %3107 = vmatprep.subr.mxu0 0.0
        %3108 = vmatpush1.msra.mxu0 0.0
        %3109 = vmatprep.subr.mxu0 0.0
        %3110 = vmatpush1.msra.mxu0 0.0
        %3111 = vmatprep.subr.mxu0 0.0
        %3112 = vmatpush1.msra.mxu0 0.0
        %3113 = vmatprep.subr.mxu0 0.0
        %3114 = vmatpush1.msra.mxu0 0.0
        %3115 = vmatprep.subr.mxu0 0.0
        %3116 = vmatpush1.msra.mxu0 0.0
        %3117 = vmatprep.subr.mxu0 0.0
        %3118 = vmatpush1.msra.mxu0 0.0
        %3119 = vmatprep.subr.mxu0 0.0
        %3120 = vmatpush1.msra.mxu0 0.0
        %3121 = vmatprep.subr.mxu0 0.0
        %3122 = vmatpush1.msra.mxu0 0.0
        %3123 = vmatprep.subr.mxu0 0.0
        %3124 = vmatpush1.msra.mxu0 0.0
        %3125 = vmatprep.subr.mxu0 0.0
        %3126 = vmatpush1.msra.mxu0 0.0
        %3127 = vmatprep.subr.mxu0 0.0
        %3128 = vmatpush1.msra.mxu0 0.0
        %3129 = vmatprep.subr.mxu0 0.0
        %3130 = vmatpush1.msra.mxu0 0.0
        %3131 = vmatprep.subr.mxu0 0.0
        %3132 = vmatpush1.msra.mxu0 0.0
        %3133 = vmatprep.subr.mxu0 0.0
        %3134 = vmatpush1.msra.mxu0 0.0
        %3135 = vmatprep.subr.mxu0 0.0
        %3136 = vmatpush1.msra.mxu0 0.0
        %3137 = vmatprep.subr.mxu0 0.0
        %3138 = vmatpush1.msra.mxu0 0.0
        %3139 = vmatprep.subr.mxu0 0.0
        %3140 = vmatpush1.msra.mxu0 0.0
        %3141 = vmatprep.subr.mxu0 0.0
        %3142 = vmatpush1.msra.mxu0 0.0
        %3143 = vmatprep.subr.mxu0 0.0
        %3144 = vmatpush1.msra.mxu0 0.0
        %3145 = vmatprep.subr.mxu0 0.0
        %3146 = vmatpush1.msra.mxu0 0.0
        %3147 = vmatprep.mubr.f32.mxu0 0.0
        %3148 = vmatmul.mubr.f32.gmra.mrb[0].mxu0 %v2489
        %v3149 = vpop.f32.mrb[0].mxu0
        %v3150 = vadd.f32 %v3081, %v3149
        %v3151 = vpop.f32.mrb[0].mxu0
        %3152 = vmatprep.mubr.f32.mxu0 0.0
        %3153 = vmatmul.mubr.f32.gmra.mrb[0].mxu0 %v2492
        %v3154 = vpop.f32.mrb[0].mxu0
        %v3155 = vadd.f32 %v3081, %v3154
        %v3156 = vpop.f32.mrb[0].mxu0
        %3157 = vdwg.mxu0
        %s3158 = scalar_lea.vmem %s6, 96
        %v3159 = vld [vmem:[%s3158] sm:$0xff]
        %v3160 = vld [vmem:[%s3158 + $0x8] sm:$0xff]
        %v3161 = vld [vmem:[%s3158 + $0x10] sm:$0xff]
        %v3162 = vld [vmem:[%s3158 + $0x18] sm:$0xff]
        %s3163 = scalar_lea.vmem %s7, 3
        %v3164 = vld [vmem:[%s3163] sm:$0x1]
        %v3166 = vlaneseq
        %v3167 = vshrl.u32 %v3166, 7
        %v3168 = vsub.s32 0, %v3167
        %v3169 = vrot.slane %v3164, %v3168
        %3171 = vmatprep.subr.mxu0 0.0
        %3172 = vmatpush1.msra.mxu0 %v3159
        %3173 = vmatprep.subr.mxu0 0.0
        %3174 = vmatpush1.msra.mxu0 %v3160
        %3175 = vmatprep.subr.mxu0 0.0
        %3176 = vmatpush1.msra.mxu0 %v3161
        %3177 = vmatprep.subr.mxu0 0.0
        %3178 = vmatpush1.msra.mxu0 %v3162
        %3179 = vmatprep.subr.mxu0 0.0
        %3180 = vmatpush1.msra.mxu0 0.0
        %3181 = vmatprep.subr.mxu0 0.0
        %3182 = vmatpush1.msra.mxu0 0.0
        %3183 = vmatprep.subr.mxu0 0.0
        %3184 = vmatpush1.msra.mxu0 0.0
        %3185 = vmatprep.subr.mxu0 0.0
        %3186 = vmatpush1.msra.mxu0 0.0
        %3187 = vmatprep.subr.mxu0 0.0
        %3188 = vmatpush1.msra.mxu0 0.0
        %3189 = vmatprep.subr.mxu0 0.0
        %3190 = vmatpush1.msra.mxu0 0.0
        %3191 = vmatprep.subr.mxu0 0.0
        %3192 = vmatpush1.msra.mxu0 0.0
        %3193 = vmatprep.subr.mxu0 0.0
        %3194 = vmatpush1.msra.mxu0 0.0
        %3195 = vmatprep.subr.mxu0 0.0
        %3196 = vmatpush1.msra.mxu0 0.0
        %3197 = vmatprep.subr.mxu0 0.0
        %3198 = vmatpush1.msra.mxu0 0.0
        %3199 = vmatprep.subr.mxu0 0.0
        %3200 = vmatpush1.msra.mxu0 0.0
        %3201 = vmatprep.subr.mxu0 0.0
        %3202 = vmatpush1.msra.mxu0 0.0
        %3203 = vmatprep.subr.mxu0 0.0
        %3204 = vmatpush1.msra.mxu0 0.0
        %3205 = vmatprep.subr.mxu0 0.0
        %3206 = vmatpush1.msra.mxu0 0.0
        %3207 = vmatprep.subr.mxu0 0.0
        %3208 = vmatpush1.msra.mxu0 0.0
        %3209 = vmatprep.subr.mxu0 0.0
        %3210 = vmatpush1.msra.mxu0 0.0
        %3211 = vmatprep.subr.mxu0 0.0
        %3212 = vmatpush1.msra.mxu0 0.0
        %3213 = vmatprep.subr.mxu0 0.0
        %3214 = vmatpush1.msra.mxu0 0.0
        %3215 = vmatprep.subr.mxu0 0.0
        %3216 = vmatpush1.msra.mxu0 0.0
        %3217 = vmatprep.subr.mxu0 0.0
        %3218 = vmatpush1.msra.mxu0 0.0
        %3219 = vmatprep.subr.mxu0 0.0
        %3220 = vmatpush1.msra.mxu0 0.0
        %3221 = vmatprep.subr.mxu0 0.0
        %3222 = vmatpush1.msra.mxu0 0.0
        %3223 = vmatprep.subr.mxu0 0.0
        %3224 = vmatpush1.msra.mxu0 0.0
        %3225 = vmatprep.subr.mxu0 0.0
        %3226 = vmatpush1.msra.mxu0 0.0
        %3227 = vmatprep.subr.mxu0 0.0
        %3228 = vmatpush1.msra.mxu0 0.0
        %3229 = vmatprep.subr.mxu0 0.0
        %3230 = vmatpush1.msra.mxu0 0.0
        %3231 = vmatprep.subr.mxu0 0.0
        %3232 = vmatpush1.msra.mxu0 0.0
        %3233 = vmatprep.subr.mxu0 0.0
        %3234 = vmatpush1.msra.mxu0 0.0
        %3235 = vmatprep.mubr.f32.mxu0 0.0
        %3236 = vmatmul.mubr.f32.gmra.mrb[0].mxu0 %v2489
        %v3237 = vpop.f32.mrb[0].mxu0
        %v3238 = vadd.f32 %v3169, %v3237
        %v3239 = vpop.f32.mrb[0].mxu0
        %3240 = vmatprep.mubr.f32.mxu0 0.0
        %3241 = vmatmul.mubr.f32.gmra.mrb[0].mxu0 %v2492
        %v3242 = vpop.f32.mrb[0].mxu0
        %v3243 = vadd.f32 %v3169, %v3242
        %v3244 = vpop.f32.mrb[0].mxu0
        %3245 = vdwg.mxu0
        %s3246 = scalar_lea.vmem %s8, 96
        %v3247 = vld [vmem:[%s3246] sm:$0xff]
        %v3248 = vld [vmem:[%s3246 + $0x8] sm:$0xff]
        %v3249 = vld [vmem:[%s3246 + $0x10] sm:$0xff]
        %v3250 = vld [vmem:[%s3246 + $0x18] sm:$0xff]
        %s3251 = scalar_lea.vmem %s9, 3
        %v3252 = vld [vmem:[%s3251] sm:$0x1]
        %v3254 = vlaneseq
        %v3255 = vshrl.u32 %v3254, 7
        %v3256 = vsub.s32 0, %v3255
        %v3257 = vrot.slane %v3252, %v3256
        %3259 = vmatprep.subr.mxu0 0.0
        %3260 = vmatpush1.msra.mxu0 %v3247
        %3261 = vmatprep.subr.mxu0 0.0
        %3262 = vmatpush1.msra.mxu0 %v3248
        %3263 = vmatprep.subr.mxu0 0.0
        %3264 = vmatpush1.msra.mxu0 %v3249
        %3265 = vmatprep.subr.mxu0 0.0
        %3266 = vmatpush1.msra.mxu0 %v3250
        %3267 = vmatprep.subr.mxu0 0.0
        %3268 = vmatpush1.msra.mxu0 0.0
        %3269 = vmatprep.subr.mxu0 0.0
        %3270 = vmatpush1.msra.mxu0 0.0
        %3271 = vmatprep.subr.mxu0 0.0
        %3272 = vmatpush1.msra.mxu0 0.0
        %3273 = vmatprep.subr.mxu0 0.0
        %3274 = vmatpush1.msra.mxu0 0.0
        %3275 = vmatprep.subr.mxu0 0.0
        %3276 = vmatpush1.msra.mxu0 0.0
        %3277 = vmatprep.subr.mxu0 0.0
        %3278 = vmatpush1.msra.mxu0 0.0
        %3279 = vmatprep.subr.mxu0 0.0
        %3280 = vmatpush1.msra.mxu0 0.0
        %3281 = vmatprep.subr.mxu0 0.0
        %3282 = vmatpush1.msra.mxu0 0.0
        %3283 = vmatprep.subr.mxu0 0.0
        %3284 = vmatpush1.msra.mxu0 0.0
        %3285 = vmatprep.subr.mxu0 0.0
        %3286 = vmatpush1.msra.mxu0 0.0
        %3287 = vmatprep.subr.mxu0 0.0
        %3288 = vmatpush1.msra.mxu0 0.0
        %3289 = vmatprep.subr.mxu0 0.0
        %3290 = vmatpush1.msra.mxu0 0.0
        %3291 = vmatprep.subr.mxu0 0.0
        %3292 = vmatpush1.msra.mxu0 0.0
        %3293 = vmatprep.subr.mxu0 0.0
        %3294 = vmatpush1.msra.mxu0 0.0
        %3295 = vmatprep.subr.mxu0 0.0
        %3296 = vmatpush1.msra.mxu0 0.0
        %3297 = vmatprep.subr.mxu0 0.0
        %3298 = vmatpush1.msra.mxu0 0.0
        %3299 = vmatprep.subr.mxu0 0.0
        %3300 = vmatpush1.msra.mxu0 0.0
        %3301 = vmatprep.subr.mxu0 0.0
        %3302 = vmatpush1.msra.mxu0 0.0
        %3303 = vmatprep.subr.mxu0 0.0
        %3304 = vmatpush1.msra.mxu0 0.0
        %3305 = vmatprep.subr.mxu0 0.0
        %3306 = vmatpush1.msra.mxu0 0.0
        %3307 = vmatprep.subr.mxu0 0.0
        %3308 = vmatpush1.msra.mxu0 0.0
        %3309 = vmatprep.subr.mxu0 0.0
        %3310 = vmatpush1.msra.mxu0 0.0
        %3311 = vmatprep.subr.mxu0 0.0
        %3312 = vmatpush1.msra.mxu0 0.0
        %3313 = vmatprep.subr.mxu0 0.0
        %3314 = vmatpush1.msra.mxu0 0.0
        %3315 = vmatprep.subr.mxu0 0.0
        %3316 = vmatpush1.msra.mxu0 0.0
        %3317 = vmatprep.subr.mxu0 0.0
        %3318 = vmatpush1.msra.mxu0 0.0
        %3319 = vmatprep.subr.mxu0 0.0
        %3320 = vmatpush1.msra.mxu0 0.0
        %3321 = vmatprep.subr.mxu0 0.0
        %3322 = vmatpush1.msra.mxu0 0.0
        %3323 = vmatprep.mubr.f32.mxu0 0.0
        %3324 = vmatmul.mubr.f32.gmra.mrb[0].mxu0 %v2489
        %v3325 = vpop.f32.mrb[0].mxu0
        %v3326 = vadd.f32 %v3257, %v3325
        %v3327 = vpop.f32.mrb[0].mxu0
        %3328 = vmatprep.mubr.f32.mxu0 0.0
        %3329 = vmatmul.mubr.f32.gmra.mrb[0].mxu0 %v2492
        %v3330 = vpop.f32.mrb[0].mxu0
        %v3331 = vadd.f32 %v3257, %v3330
        %v3332 = vpop.f32.mrb[0].mxu0
        %3333 = vdwg.mxu0
        %v3335 = vsel %vm1106, %v3150, 0
        %v3338 = vsel %vm1106, %v3238, 0
        %3340 = vmatprep.subr.mxu0 0.0
        %3341 = vmatpush1.xpose.msra.mxu0 %v3338
        %3342 = vmatprep.subr.mxu0 0.0
        %3343 = vmatpush1.xpose.msra.mxu0 0.0
        %3344 = vmatprep.subr.mxu0 0.0
        %3345 = vmatpush1.xpose.msra.mxu0 0.0
        %3346 = vmatprep.subr.mxu0 0.0
        %3347 = vmatpush1.xpose.msra.mxu0 0.0
        %3348 = vmatprep.subr.mxu0 0.0
        %3349 = vmatpush1.xpose.msra.mxu0 0.0
        %3350 = vmatprep.subr.mxu0 0.0
        %3351 = vmatpush1.xpose.msra.mxu0 0.0
        %3352 = vmatprep.subr.mxu0 0.0
        %3353 = vmatpush1.xpose.msra.mxu0 0.0
        %3354 = vmatprep.subr.mxu0 0.0
        %3355 = vmatpush1.xpose.msra.mxu0 0.0
        %3356 = vmatprep.subr.mxu0 0.0
        %3357 = vmatpush1.xpose.msra.mxu0 0.0
        %3358 = vmatprep.subr.mxu0 0.0
        %3359 = vmatpush1.xpose.msra.mxu0 0.0
        %3360 = vmatprep.subr.mxu0 0.0
        %3361 = vmatpush1.xpose.msra.mxu0 0.0
        %3362 = vmatprep.subr.mxu0 0.0
        %3363 = vmatpush1.xpose.msra.mxu0 0.0
        %3364 = vmatprep.subr.mxu0 0.0
        %3365 = vmatpush1.xpose.msra.mxu0 0.0
        %3366 = vmatprep.subr.mxu0 0.0
        %3367 = vmatpush1.xpose.msra.mxu0 0.0
        %3368 = vmatprep.subr.mxu0 0.0
        %3369 = vmatpush1.xpose.msra.mxu0 0.0
        %3370 = vmatprep.subr.mxu0 0.0
        %3371 = vmatpush1.xpose.msra.mxu0 0.0
        %3372 = vmatprep.subr.mxu0 0.0
        %3373 = vmatpush1.xpose.msra.mxu0 0.0
        %3374 = vmatprep.subr.mxu0 0.0
        %3375 = vmatpush1.xpose.msra.mxu0 0.0
        %3376 = vmatprep.subr.mxu0 0.0
        %3377 = vmatpush1.xpose.msra.mxu0 0.0
        %3378 = vmatprep.subr.mxu0 0.0
        %3379 = vmatpush1.xpose.msra.mxu0 0.0
        %3380 = vmatprep.subr.mxu0 0.0
        %3381 = vmatpush1.xpose.msra.mxu0 0.0
        %3382 = vmatprep.subr.mxu0 0.0
        %3383 = vmatpush1.xpose.msra.mxu0 0.0
        %3384 = vmatprep.subr.mxu0 0.0
        %3385 = vmatpush1.xpose.msra.mxu0 0.0
        %3386 = vmatprep.subr.mxu0 0.0
        %3387 = vmatpush1.xpose.msra.mxu0 0.0
        %3388 = vmatprep.subr.mxu0 0.0
        %3389 = vmatpush1.xpose.msra.mxu0 0.0
        %3390 = vmatprep.subr.mxu0 0.0
        %3391 = vmatpush1.xpose.msra.mxu0 0.0
        %3392 = vmatprep.subr.mxu0 0.0
        %3393 = vmatpush1.xpose.msra.mxu0 0.0
        %3394 = vmatprep.subr.mxu0 0.0
        %3395 = vmatpush1.xpose.msra.mxu0 0.0
        %3396 = vmatprep.subr.mxu0 0.0
        %3397 = vmatpush1.xpose.msra.mxu0 0.0
        %3398 = vmatprep.subr.mxu0 0.0
        %3399 = vmatpush1.xpose.msra.mxu0 0.0
        %3400 = vmatprep.subr.mxu0 0.0
        %3401 = vmatpush1.xpose.msra.mxu0 0.0
        %3402 = vmatprep.subr.mxu0 0.0
        %3403 = vmatpush1.xpose.msra.mxu0 0.0
        %3404 = vmatprep.mubr.f32.mxu0 0.0
        %3405 = vmatmul.mubr.f32.gmra.mrb[0].mxu0 %v3335
        %v3406 = vpop.f32.mrb[0].mxu0
        %v3407 = vadd.f32 0.0, %v3406
        %v3408 = vpop.f32.mrb[0].mxu0
        %3409 = vdwg.mxu0
        %v3411 = vsel %vm1106, %v3155, 0
        %v3414 = vsel %vm1106, %v3243, 0
        %3416 = vmatprep.subr.mxu0 0.0
        %3417 = vmatpush1.xpose.msra.mxu0 %v3414
        %3418 = vmatprep.subr.mxu0 0.0
        %3419 = vmatpush1.xpose.msra.mxu0 0.0
        %3420 = vmatprep.subr.mxu0 0.0
        %3421 = vmatpush1.xpose.msra.mxu0 0.0
        %3422 = vmatprep.subr.mxu0 0.0
        %3423 = vmatpush1.xpose.msra.mxu0 0.0
        %3424 = vmatprep.subr.mxu0 0.0
        %3425 = vmatpush1.xpose.msra.mxu0 0.0
        %3426 = vmatprep.subr.mxu0 0.0
        %3427 = vmatpush1.xpose.msra.mxu0 0.0
        %3428 = vmatprep.subr.mxu0 0.0
        %3429 = vmatpush1.xpose.msra.mxu0 0.0
        %3430 = vmatprep.subr.mxu0 0.0
        %3431 = vmatpush1.xpose.msra.mxu0 0.0
        %3432 = vmatprep.subr.mxu0 0.0
        %3433 = vmatpush1.xpose.msra.mxu0 0.0
        %3434 = vmatprep.subr.mxu0 0.0
        %3435 = vmatpush1.xpose.msra.mxu0 0.0
        %3436 = vmatprep.subr.mxu0 0.0
        %3437 = vmatpush1.xpose.msra.mxu0 0.0
        %3438 = vmatprep.subr.mxu0 0.0
        %3439 = vmatpush1.xpose.msra.mxu0 0.0
        %3440 = vmatprep.subr.mxu0 0.0
        %3441 = vmatpush1.xpose.msra.mxu0 0.0
        %3442 = vmatprep.subr.mxu0 0.0
        %3443 = vmatpush1.xpose.msra.mxu0 0.0
        %3444 = vmatprep.subr.mxu0 0.0
        %3445 = vmatpush1.xpose.msra.mxu0 0.0
        %3446 = vmatprep.subr.mxu0 0.0
        %3447 = vmatpush1.xpose.msra.mxu0 0.0
        %3448 = vmatprep.subr.mxu0 0.0
        %3449 = vmatpush1.xpose.msra.mxu0 0.0
        %3450 = vmatprep.subr.mxu0 0.0
        %3451 = vmatpush1.xpose.msra.mxu0 0.0
        %3452 = vmatprep.subr.mxu0 0.0
        %3453 = vmatpush1.xpose.msra.mxu0 0.0
        %3454 = vmatprep.subr.mxu0 0.0
        %3455 = vmatpush1.xpose.msra.mxu0 0.0
        %3456 = vmatprep.subr.mxu0 0.0
        %3457 = vmatpush1.xpose.msra.mxu0 0.0
        %3458 = vmatprep.subr.mxu0 0.0
        %3459 = vmatpush1.xpose.msra.mxu0 0.0
        %3460 = vmatprep.subr.mxu0 0.0
        %3461 = vmatpush1.xpose.msra.mxu0 0.0
        %3462 = vmatprep.subr.mxu0 0.0
        %3463 = vmatpush1.xpose.msra.mxu0 0.0
        %3464 = vmatprep.subr.mxu0 0.0
        %3465 = vmatpush1.xpose.msra.mxu0 0.0
        %3466 = vmatprep.subr.mxu0 0.0
        %3467 = vmatpush1.xpose.msra.mxu0 0.0
        %3468 = vmatprep.subr.mxu0 0.0
        %3469 = vmatpush1.xpose.msra.mxu0 0.0
        %3470 = vmatprep.subr.mxu0 0.0
        %3471 = vmatpush1.xpose.msra.mxu0 0.0
        %3472 = vmatprep.subr.mxu0 0.0
        %3473 = vmatpush1.xpose.msra.mxu0 0.0
        %3474 = vmatprep.subr.mxu0 0.0
        %3475 = vmatpush1.xpose.msra.mxu0 0.0
        %3476 = vmatprep.subr.mxu0 0.0
        %3477 = vmatpush1.xpose.msra.mxu0 0.0
        %3478 = vmatprep.subr.mxu0 0.0
        %3479 = vmatpush1.xpose.msra.mxu0 0.0
        %3480 = vmatprep.mubr.f32.mxu0 0.0
        %3481 = vmatmul.mubr.f32.gmra.mrb[0].mxu0 %v3411
        %v3482 = vpop.f32.mrb[0].mxu0
        %v3483 = vadd.f32 0.0, %v3482
        %v3484 = vpop.f32.mrb[0].mxu0
        %3485 = vdwg.mxu0
        %v3486 = vmul.f32 %v3407, 0.25
        %v3487 = vmul.f32 %v3483, 0.25
        %v3488 = vsel %vm1261, %v3486, -inf
        %3489 = vmax.xlane.f32.xlu0 %v3488
        %v3490 = vpop.xlane.xlu0 %3489
        %v3491 = vsel %vm1261, %v3487, -inf
        %3492 = vmax.xlane.f32.xlu0 %v3491
        %v3493 = vpop.xlane.xlu0 %3492
        %v3494 = vsub.f32 %v3486, %v3490
        %v3495 = vsub.f32 %v3487, %v3493
        %v3496 = vmul.f32 %v3494, 1.442695
        %v3497 = vpow.pop %v3496
        %v3498 = vmul.f32 %v3495, 1.442695
        %v3499 = vpow.pop %v3498
        %v3500 = vsel %vm1261, %v3497, 0.0
        %3501 = vadd.xlane.f32.xlu0 %v3500
        %v3502 = vpop.xlane.xlu0 %3501
        %v3503 = vsel %vm1261, %v3499, 0.0
        %3504 = vadd.xlane.f32.xlu0 %v3503
        %v3505 = vpop.xlane.xlu0 %3504
        %v3506 = vrcp.pop %v3502
        %v3507 = vrcp.pop %v3505
        %v3508 = vmul.f32 %v3497, %v3506
        %v3509 = vmul.f32 %v3499, %v3507
        %v3511 = vsel %vm1261, %v3508, 0
        %3513 = vmatprep.subr.mxu0 0.0
        %3514 = vmatpush1.msra.mxu0 %v3326
        %3515 = vmatprep.subr.mxu0 0.0
        %3516 = vmatpush1.msra.mxu0 0.0
        %3517 = vmatprep.subr.mxu0 0.0
        %3518 = vmatpush1.msra.mxu0 0.0
        %3519 = vmatprep.subr.mxu0 0.0
        %3520 = vmatpush1.msra.mxu0 0.0
        %3521 = vmatprep.subr.mxu0 0.0
        %3522 = vmatpush1.msra.mxu0 0.0
        %3523 = vmatprep.subr.mxu0 0.0
        %3524 = vmatpush1.msra.mxu0 0.0
        %3525 = vmatprep.subr.mxu0 0.0
        %3526 = vmatpush1.msra.mxu0 0.0
        %3527 = vmatprep.subr.mxu0 0.0
        %3528 = vmatpush1.msra.mxu0 0.0
        %3529 = vmatprep.subr.mxu0 0.0
        %3530 = vmatpush1.msra.mxu0 0.0
        %3531 = vmatprep.subr.mxu0 0.0
        %3532 = vmatpush1.msra.mxu0 0.0
        %3533 = vmatprep.subr.mxu0 0.0
        %3534 = vmatpush1.msra.mxu0 0.0
        %3535 = vmatprep.subr.mxu0 0.0
        %3536 = vmatpush1.msra.mxu0 0.0
        %3537 = vmatprep.subr.mxu0 0.0
        %3538 = vmatpush1.msra.mxu0 0.0
        %3539 = vmatprep.subr.mxu0 0.0
        %3540 = vmatpush1.msra.mxu0 0.0
        %3541 = vmatprep.subr.mxu0 0.0
        %3542 = vmatpush1.msra.mxu0 0.0
        %3543 = vmatprep.subr.mxu0 0.0
        %3544 = vmatpush1.msra.mxu0 0.0
        %3545 = vmatprep.subr.mxu0 0.0
        %3546 = vmatpush1.msra.mxu0 0.0
        %3547 = vmatprep.subr.mxu0 0.0
        %3548 = vmatpush1.msra.mxu0 0.0
        %3549 = vmatprep.subr.mxu0 0.0
        %3550 = vmatpush1.msra.mxu0 0.0
        %3551 = vmatprep.subr.mxu0 0.0
        %3552 = vmatpush1.msra.mxu0 0.0
        %3553 = vmatprep.subr.mxu0 0.0
        %3554 = vmatpush1.msra.mxu0 0.0
        %3555 = vmatprep.subr.mxu0 0.0
        %3556 = vmatpush1.msra.mxu0 0.0
        %3557 = vmatprep.subr.mxu0 0.0
        %3558 = vmatpush1.msra.mxu0 0.0
        %3559 = vmatprep.subr.mxu0 0.0
        %3560 = vmatpush1.msra.mxu0 0.0
        %3561 = vmatprep.subr.mxu0 0.0
        %3562 = vmatpush1.msra.mxu0 0.0
        %3563 = vmatprep.subr.mxu0 0.0
        %3564 = vmatpush1.msra.mxu0 0.0
        %3565 = vmatprep.subr.mxu0 0.0
        %3566 = vmatpush1.msra.mxu0 0.0
        %3567 = vmatprep.subr.mxu0 0.0
        %3568 = vmatpush1.msra.mxu0 0.0
        %3569 = vmatprep.subr.mxu0 0.0
        %3570 = vmatpush1.msra.mxu0 0.0
        %3571 = vmatprep.subr.mxu0 0.0
        %3572 = vmatpush1.msra.mxu0 0.0
        %3573 = vmatprep.subr.mxu0 0.0
        %3574 = vmatpush1.msra.mxu0 0.0
        %3575 = vmatprep.subr.mxu0 0.0
        %3576 = vmatpush1.msra.mxu0 0.0
        %3577 = vmatprep.mubr.f32.mxu0 0.0
        %3578 = vmatmul.mubr.f32.gmra.mrb[0].mxu0 %v3511
        %v3579 = vpop.f32.mrb[0].mxu0
        %v3580 = vadd.f32 0.0, %v3579
        %v3581 = vpop.f32.mrb[0].mxu0
        %3582 = vdwg.mxu0
        %v3584 = vsel %vm1261, %v3509, 0
        %3586 = vmatprep.subr.mxu0 0.0
        %3587 = vmatpush1.msra.mxu0 %v3331
        %3588 = vmatprep.subr.mxu0 0.0
        %3589 = vmatpush1.msra.mxu0 0.0
        %3590 = vmatprep.subr.mxu0 0.0
        %3591 = vmatpush1.msra.mxu0 0.0
        %3592 = vmatprep.subr.mxu0 0.0
        %3593 = vmatpush1.msra.mxu0 0.0
        %3594 = vmatprep.subr.mxu0 0.0
        %3595 = vmatpush1.msra.mxu0 0.0
        %3596 = vmatprep.subr.mxu0 0.0
        %3597 = vmatpush1.msra.mxu0 0.0
        %3598 = vmatprep.subr.mxu0 0.0
        %3599 = vmatpush1.msra.mxu0 0.0
        %3600 = vmatprep.subr.mxu0 0.0
        %3601 = vmatpush1.msra.mxu0 0.0
        %3602 = vmatprep.subr.mxu0 0.0
        %3603 = vmatpush1.msra.mxu0 0.0
        %3604 = vmatprep.subr.mxu0 0.0
        %3605 = vmatpush1.msra.mxu0 0.0
        %3606 = vmatprep.subr.mxu0 0.0
        %3607 = vmatpush1.msra.mxu0 0.0
        %3608 = vmatprep.subr.mxu0 0.0
        %3609 = vmatpush1.msra.mxu0 0.0
        %3610 = vmatprep.subr.mxu0 0.0
        %3611 = vmatpush1.msra.mxu0 0.0
        %3612 = vmatprep.subr.mxu0 0.0
        %3613 = vmatpush1.msra.mxu0 0.0
        %3614 = vmatprep.subr.mxu0 0.0
        %3615 = vmatpush1.msra.mxu0 0.0
        %3616 = vmatprep.subr.mxu0 0.0
        %3617 = vmatpush1.msra.mxu0 0.0
        %3618 = vmatprep.subr.mxu0 0.0
        %3619 = vmatpush1.msra.mxu0 0.0
        %3620 = vmatprep.subr.mxu0 0.0
        %3621 = vmatpush1.msra.mxu0 0.0
        %3622 = vmatprep.subr.mxu0 0.0
        %3623 = vmatpush1.msra.mxu0 0.0
        %3624 = vmatprep.subr.mxu0 0.0
        %3625 = vmatpush1.msra.mxu0 0.0
        %3626 = vmatprep.subr.mxu0 0.0
        %3627 = vmatpush1.msra.mxu0 0.0
        %3628 = vmatprep.subr.mxu0 0.0
        %3629 = vmatpush1.msra.mxu0 0.0
        %3630 = vmatprep.subr.mxu0 0.0
        %3631 = vmatpush1.msra.mxu0 0.0
        %3632 = vmatprep.subr.mxu0 0.0
        %3633 = vmatpush1.msra.mxu0 0.0
        %3634 = vmatprep.subr.mxu0 0.0
        %3635 = vmatpush1.msra.mxu0 0.0
        %3636 = vmatprep.subr.mxu0 0.0
        %3637 = vmatpush1.msra.mxu0 0.0
        %3638 = vmatprep.subr.mxu0 0.0
        %3639 = vmatpush1.msra.mxu0 0.0
        %3640 = vmatprep.subr.mxu0 0.0
        %3641 = vmatpush1.msra.mxu0 0.0
        %3642 = vmatprep.subr.mxu0 0.0
        %3643 = vmatpush1.msra.mxu0 0.0
        %3644 = vmatprep.subr.mxu0 0.0
        %3645 = vmatpush1.msra.mxu0 0.0
        %3646 = vmatprep.subr.mxu0 0.0
        %3647 = vmatpush1.msra.mxu0 0.0
        %3648 = vmatprep.subr.mxu0 0.0
        %3649 = vmatpush1.msra.mxu0 0.0
        %3650 = vmatprep.mubr.f32.mxu0 0.0
        %3651 = vmatmul.mubr.f32.gmra.mrb[0].mxu0 %v3584
        %v3652 = vpop.f32.mrb[0].mxu0
        %v3653 = vadd.f32 0.0, %v3652
        %v3654 = vpop.f32.mrb[0].mxu0
        %3655 = vdwg.mxu0
        %s3656 = scalar_lea.vmem %s10, 48
        %v3657 = vld [vmem:[%s3656] sm:$0xff]
        %v3658 = vld [vmem:[%s3656 + $0x8] sm:$0xff]
        %v3660 = vsel %vm1106, %v3580, 0
        %v3663 = vsel %vm1106, %v3653, 0
        %3665 = vmatprep.subr.mxu0 0.0
        %3666 = vmatpush1.msra.mxu0 %v3657
        %3667 = vmatprep.subr.mxu0 0.0
        %3668 = vmatpush1.msra.mxu0 %v3658
        %3669 = vmatprep.subr.mxu0 0.0
        %3670 = vmatpush1.msra.mxu0 0.0
        %3671 = vmatprep.subr.mxu0 0.0
        %3672 = vmatpush1.msra.mxu0 0.0
        %3673 = vmatprep.subr.mxu0 0.0
        %3674 = vmatpush1.msra.mxu0 0.0
        %3675 = vmatprep.subr.mxu0 0.0
        %3676 = vmatpush1.msra.mxu0 0.0
        %3677 = vmatprep.subr.mxu0 0.0
        %3678 = vmatpush1.msra.mxu0 0.0
        %3679 = vmatprep.subr.mxu0 0.0
        %3680 = vmatpush1.msra.mxu0 0.0
        %3681 = vmatprep.subr.mxu0 0.0
        %3682 = vmatpush1.msra.mxu0 0.0
        %3683 = vmatprep.subr.mxu0 0.0
        %3684 = vmatpush1.msra.mxu0 0.0
        %3685 = vmatprep.subr.mxu0 0.0
        %3686 = vmatpush1.msra.mxu0 0.0
        %3687 = vmatprep.subr.mxu0 0.0
        %3688 = vmatpush1.msra.mxu0 0.0
        %3689 = vmatprep.subr.mxu0 0.0
        %3690 = vmatpush1.msra.mxu0 0.0
        %3691 = vmatprep.subr.mxu0 0.0
        %3692 = vmatpush1.msra.mxu0 0.0
        %3693 = vmatprep.subr.mxu0 0.0
        %3694 = vmatpush1.msra.mxu0 0.0
        %3695 = vmatprep.subr.mxu0 0.0
        %3696 = vmatpush1.msra.mxu0 0.0
        %3697 = vmatprep.subr.mxu0 0.0
        %3698 = vmatpush1.msra.mxu0 0.0
        %3699 = vmatprep.subr.mxu0 0.0
        %3700 = vmatpush1.msra.mxu0 0.0
        %3701 = vmatprep.subr.mxu0 0.0
        %3702 = vmatpush1.msra.mxu0 0.0
        %3703 = vmatprep.subr.mxu0 0.0
        %3704 = vmatpush1.msra.mxu0 0.0
        %3705 = vmatprep.subr.mxu0 0.0
        %3706 = vmatpush1.msra.mxu0 0.0
        %3707 = vmatprep.subr.mxu0 0.0
        %3708 = vmatpush1.msra.mxu0 0.0
        %3709 = vmatprep.subr.mxu0 0.0
        %3710 = vmatpush1.msra.mxu0 0.0
        %3711 = vmatprep.subr.mxu0 0.0
        %3712 = vmatpush1.msra.mxu0 0.0
        %3713 = vmatprep.subr.mxu0 0.0
        %3714 = vmatpush1.msra.mxu0 0.0
        %3715 = vmatprep.subr.mxu0 0.0
        %3716 = vmatpush1.msra.mxu0 0.0
        %3717 = vmatprep.subr.mxu0 0.0
        %3718 = vmatpush1.msra.mxu0 0.0
        %3719 = vmatprep.subr.mxu0 0.0
        %3720 = vmatpush1.msra.mxu0 0.0
        %3721 = vmatprep.subr.mxu0 0.0
        %3722 = vmatpush1.msra.mxu0 0.0
        %3723 = vmatprep.subr.mxu0 0.0
        %3724 = vmatpush1.msra.mxu0 0.0
        %3725 = vmatprep.subr.mxu0 0.0
        %3726 = vmatpush1.msra.mxu0 0.0
        %3727 = vmatprep.subr.mxu0 0.0
        %3728 = vmatpush1.msra.mxu0 0.0
        %3729 = vmatprep.mubr.f32.mxu0 0.0
        %3730 = vmatmul.mubr.f32.gmra.mrb[0].mxu0 %v3660
        %v3731 = vpop.f32.mrb[0].mxu0
        %v3732 = vadd.f32 0.0, %v3731
        %v3733 = vpop.f32.mrb[0].mxu0
        %3734 = vmatprep.mubr.f32.mxu0 0.0
        %3735 = vmatmul.mubr.f32.gmra.mrb[0].mxu0 %v3663
        %v3736 = vpop.f32.mrb[0].mxu0
        %v3737 = vadd.f32 0.0, %v3736
        %v3738 = vpop.f32.mrb[0].mxu0
        %3739 = vdwg.mxu0
        %v3741 = vsel %vm1106, %v2991, 0
        %v3744 = vsel %vm1106, %v3064, 0
        %3746 = vmatprep.subr.mxu0 0.0
        %3747 = vmatpush1.msra.mxu0 %v3068
        %3748 = vmatprep.subr.mxu0 0.0
        %3749 = vmatpush1.msra.mxu0 %v3069
        %3750 = vmatprep.subr.mxu0 0.0
        %3751 = vmatpush1.msra.mxu0 0.0
        %3752 = vmatprep.subr.mxu0 0.0
        %3753 = vmatpush1.msra.mxu0 0.0
        %3754 = vmatprep.subr.mxu0 0.0
        %3755 = vmatpush1.msra.mxu0 0.0
        %3756 = vmatprep.subr.mxu0 0.0
        %3757 = vmatpush1.msra.mxu0 0.0
        %3758 = vmatprep.subr.mxu0 0.0
        %3759 = vmatpush1.msra.mxu0 0.0
        %3760 = vmatprep.subr.mxu0 0.0
        %3761 = vmatpush1.msra.mxu0 0.0
        %3762 = vmatprep.subr.mxu0 0.0
        %3763 = vmatpush1.msra.mxu0 0.0
        %3764 = vmatprep.subr.mxu0 0.0
        %3765 = vmatpush1.msra.mxu0 0.0
        %3766 = vmatprep.subr.mxu0 0.0
        %3767 = vmatpush1.msra.mxu0 0.0
        %3768 = vmatprep.subr.mxu0 0.0
        %3769 = vmatpush1.msra.mxu0 0.0
        %3770 = vmatprep.subr.mxu0 0.0
        %3771 = vmatpush1.msra.mxu0 0.0
        %3772 = vmatprep.subr.mxu0 0.0
        %3773 = vmatpush1.msra.mxu0 0.0
        %3774 = vmatprep.subr.mxu0 0.0
        %3775 = vmatpush1.msra.mxu0 0.0
        %3776 = vmatprep.subr.mxu0 0.0
        %3777 = vmatpush1.msra.mxu0 0.0
        %3778 = vmatprep.subr.mxu0 0.0
        %3779 = vmatpush1.msra.mxu0 0.0
        %3780 = vmatprep.subr.mxu0 0.0
        %3781 = vmatpush1.msra.mxu0 0.0
        %3782 = vmatprep.subr.mxu0 0.0
        %3783 = vmatpush1.msra.mxu0 0.0
        %3784 = vmatprep.subr.mxu0 0.0
        %3785 = vmatpush1.msra.mxu0 0.0
        %3786 = vmatprep.subr.mxu0 0.0
        %3787 = vmatpush1.msra.mxu0 0.0
        %3788 = vmatprep.subr.mxu0 0.0
        %3789 = vmatpush1.msra.mxu0 0.0
        %3790 = vmatprep.subr.mxu0 0.0
        %3791 = vmatpush1.msra.mxu0 0.0
        %3792 = vmatprep.subr.mxu0 0.0
        %3793 = vmatpush1.msra.mxu0 0.0
        %3794 = vmatprep.subr.mxu0 0.0
        %3795 = vmatpush1.msra.mxu0 0.0
        %3796 = vmatprep.subr.mxu0 0.0
        %3797 = vmatpush1.msra.mxu0 0.0
        %3798 = vmatprep.subr.mxu0 0.0
        %3799 = vmatpush1.msra.mxu0 0.0
        %3800 = vmatprep.subr.mxu0 0.0
        %3801 = vmatpush1.msra.mxu0 0.0
        %3802 = vmatprep.subr.mxu0 0.0
        %3803 = vmatpush1.msra.mxu0 0.0
        %3804 = vmatprep.subr.mxu0 0.0
        %3805 = vmatpush1.msra.mxu0 0.0
        %3806 = vmatprep.subr.mxu0 0.0
        %3807 = vmatpush1.msra.mxu0 0.0
        %3808 = vmatprep.subr.mxu0 0.0
        %3809 = vmatpush1.msra.mxu0 0.0
        %3810 = vmatprep.mubr.f32.mxu0 0.0
        %3811 = vmatmul.mubr.f32.gmra.mrb[0].mxu0 %v3741
        %v3812 = vpop.f32.mrb[0].mxu0
        %v3813 = vadd.f32 %v3732, %v3812
        %v3814 = vpop.f32.mrb[0].mxu0
        %3815 = vmatprep.mubr.f32.mxu0 0.0
        %3816 = vmatmul.mubr.f32.gmra.mrb[0].mxu0 %v3744
        %v3817 = vpop.f32.mrb[0].mxu0
        %v3818 = vadd.f32 %v3737, %v3817
        %v3819 = vpop.f32.mrb[0].mxu0
        %3820 = vdwg.mxu0
        %s3821 = scalar_lea.vmem %s11, 1
        %v3822 = vld [vmem:[%s3821] sm:$0x1]
        %v3824 = vlaneseq
        %v3825 = vshrl.u32 %v3824, 7
        %v3826 = vsub.s32 0, %v3825
        %v3827 = vrot.slane %v3822, %v3826
        %v3829 = vadd.f32 %v3813, %v3827
        %v3830 = vadd.f32 %v3818, %v3827
        %v3831 = vadd.f32 %v3829, %v2473
        %v3832 = vadd.f32 %v3830, %v2474
        %s3833 = scalar_lea.vmem %s12, 1
        %v3834 = vld [vmem:[%s3833] sm:$0x1]
        %s3835 = scalar_lea.vmem %s13, 1
        %v3836 = vld [vmem:[%s3835] sm:$0x1]
        %v3837 = vsel %vm798, %v3831, 0.0
        %3838 = vadd.xlane.f32.xlu0 %v3837
        %v3839 = vpop.xlane.xlu0 %3838
        %v3840 = vsel %vm798, %v3832, 0.0
        %3841 = vadd.xlane.f32.xlu0 %v3840
        %v3842 = vpop.xlane.xlu0 %3841
        %v3843 = vmul.f32 %v3839, %v805
        %v3844 = vmul.f32 %v3842, %v805
        %v3845 = vsub.f32 %v3831, %v3843
        %v3846 = vsub.f32 %v3832, %v3844
        %v3847 = vmul.f32 %v3845, %v3845
        %v3848 = vmul.f32 %v3846, %v3846
        %v3849 = vsel %vm798, %v3847, 0.0
        %3850 = vadd.xlane.f32.xlu0 %v3849
        %v3851 = vpop.xlane.xlu0 %3850
        %v3852 = vsel %vm798, %v3848, 0.0
        %3853 = vadd.xlane.f32.xlu0 %v3852
        %v3854 = vpop.xlane.xlu0 %3853
        %v3855 = vmul.f32 %v3851, %v805
        %v3856 = vmul.f32 %v3854, %v805
        %v3857 = vadd.f32 %v3855, 1e-06
        %v3858 = vadd.f32 %v3856, 1e-06
        %v3859 = vrsqrt.pop %v3857
        %v3860 = vrsqrt.pop %v3858
        %v3861 = vmul.f32 %v3845, %v3859
        %v3862 = vmul.f32 %v3846, %v3860
        %v3864 = vlaneseq
        %v3865 = vshrl.u32 %v3864, 7
        %v3866 = vsub.s32 0, %v3865
        %v3867 = vrot.slane %v3834, %v3866
        %v3869 = vmul.f32 %v3861, %v3867
        %v3870 = vmul.f32 %v3862, %v3867
        %v3872 = vlaneseq
        %v3873 = vshrl.u32 %v3872, 7
        %v3874 = vsub.s32 0, %v3873
        %v3875 = vrot.slane %v3836, %v3874
        %v3877 = vadd.f32 %v3869, %v3875
        %v3878 = vadd.f32 %v3870, %v3875
        %s3879 = scalar_lea.vmem %s14, 32
        %v3880 = vld [vmem:[%s3879] sm:$0xff]
        %v3881 = vld [vmem:[%s3879 + $0x8] sm:$0xff]
        %v3882 = vld [vmem:[%s3879 + $0x10] sm:$0xff]
        %v3883 = vld [vmem:[%s3879 + $0x18] sm:$0xff]
        %s3884 = scalar_lea.vmem %s15, 1
        %v3885 = vld [vmem:[%s3884] sm:$0x1]
        %v3887 = vlaneseq
        %v3888 = vshrl.u32 %v3887, 7
        %v3889 = vsub.s32 0, %v3888
        %v3890 = vrot.slane %v3885, %v3889
        %v3893 = vsel %vm798, %v3877, 0
        %v3896 = vsel %vm798, %v3878, 0
        %3898 = vmatprep.subr.mxu0 0.0
        %3899 = vmatpush1.msra.mxu0 %v3880
        %3900 = vmatprep.subr.mxu0 0.0
        %3901 = vmatpush1.msra.mxu0 %v3881
        %3902 = vmatprep.subr.mxu0 0.0
        %3903 = vmatpush1.msra.mxu0 %v3882
        %3904 = vmatprep.subr.mxu0 0.0
        %3905 = vmatpush1.msra.mxu0 %v3883
        %3906 = vmatprep.subr.mxu0 0.0
        %3907 = vmatpush1.msra.mxu0 0.0
        %3908 = vmatprep.subr.mxu0 0.0
        %3909 = vmatpush1.msra.mxu0 0.0
        %3910 = vmatprep.subr.mxu0 0.0
        %3911 = vmatpush1.msra.mxu0 0.0
        %3912 = vmatprep.subr.mxu0 0.0
        %3913 = vmatpush1.msra.mxu0 0.0
        %3914 = vmatprep.subr.mxu0 0.0
        %3915 = vmatpush1.msra.mxu0 0.0
        %3916 = vmatprep.subr.mxu0 0.0
        %3917 = vmatpush1.msra.mxu0 0.0
        %3918 = vmatprep.subr.mxu0 0.0
        %3919 = vmatpush1.msra.mxu0 0.0
        %3920 = vmatprep.subr.mxu0 0.0
        %3921 = vmatpush1.msra.mxu0 0.0
        %3922 = vmatprep.subr.mxu0 0.0
        %3923 = vmatpush1.msra.mxu0 0.0
        %3924 = vmatprep.subr.mxu0 0.0
        %3925 = vmatpush1.msra.mxu0 0.0
        %3926 = vmatprep.subr.mxu0 0.0
        %3927 = vmatpush1.msra.mxu0 0.0
        %3928 = vmatprep.subr.mxu0 0.0
        %3929 = vmatpush1.msra.mxu0 0.0
        %3930 = vmatprep.subr.mxu0 0.0
        %3931 = vmatpush1.msra.mxu0 0.0
        %3932 = vmatprep.subr.mxu0 0.0
        %3933 = vmatpush1.msra.mxu0 0.0
        %3934 = vmatprep.subr.mxu0 0.0
        %3935 = vmatpush1.msra.mxu0 0.0
        %3936 = vmatprep.subr.mxu0 0.0
        %3937 = vmatpush1.msra.mxu0 0.0
        %3938 = vmatprep.subr.mxu0 0.0
        %3939 = vmatpush1.msra.mxu0 0.0
        %3940 = vmatprep.subr.mxu0 0.0
        %3941 = vmatpush1.msra.mxu0 0.0
        %3942 = vmatprep.subr.mxu0 0.0
        %3943 = vmatpush1.msra.mxu0 0.0
        %3944 = vmatprep.subr.mxu0 0.0
        %3945 = vmatpush1.msra.mxu0 0.0
        %3946 = vmatprep.subr.mxu0 0.0
        %3947 = vmatpush1.msra.mxu0 0.0
        %3948 = vmatprep.subr.mxu0 0.0
        %3949 = vmatpush1.msra.mxu0 0.0
        %3950 = vmatprep.subr.mxu0 0.0
        %3951 = vmatpush1.msra.mxu0 0.0
        %3952 = vmatprep.subr.mxu0 0.0
        %3953 = vmatpush1.msra.mxu0 0.0
        %3954 = vmatprep.subr.mxu0 0.0
        %3955 = vmatpush1.msra.mxu0 0.0
        %3956 = vmatprep.subr.mxu0 0.0
        %3957 = vmatpush1.msra.mxu0 0.0
        %3958 = vmatprep.subr.mxu0 0.0
        %3959 = vmatpush1.msra.mxu0 0.0
        %3960 = vmatprep.subr.mxu0 0.0
        %3961 = vmatpush1.msra.mxu0 0.0
        %3962 = vmatprep.mubr.f32.mxu0 0.0
        %3963 = vmatmul.mubr.f32.gmra.mrb[0].mxu0 %v3893
        %v3964 = vpop.f32.mrb[0].mxu0
        %v3965 = vadd.f32 %v3890, %v3964
        %v3966 = vpop.f32.mrb[0].mxu0
        %3967 = vmatprep.mubr.f32.mxu0 0.0
        %3968 = vmatmul.mubr.f32.gmra.mrb[0].mxu0 %v3896
        %v3969 = vpop.f32.mrb[0].mxu0
        %v3970 = vadd.f32 %v3890, %v3969
        %v3971 = vpop.f32.mrb[0].mxu0
        %3972 = vdwg.mxu0
        %v3973 = vmax.f32 %v3965, 0.0
        %v3974 = vmax.f32 %v3970, 0.0
        %s3975 = scalar_lea.vmem %s16, 64
        %v3976 = vld [vmem:[%s3975] sm:$0xff]
        %v3977 = vld [vmem:[%s3975 + $0x8] sm:$0xff]
        %v3978 = vld [vmem:[%s3975 + $0x10] sm:$0xff]
        %v3979 = vld [vmem:[%s3975 + $0x18] sm:$0xff]
        %v3980 = vld [vmem:[%s3975 + $0x20] sm:$0xff]
        %v3981 = vld [vmem:[%s3975 + $0x28] sm:$0xff]
        %v3982 = vld [vmem:[%s3975 + $0x30] sm:$0xff]
        %v3983 = vld [vmem:[%s3975 + $0x38] sm:$0xff]
        %s3984 = scalar_lea.vmem %s17, 1
        %v3985 = vld [vmem:[%s3984] sm:$0x1]
        %v3987 = vlaneseq
        %v3988 = vshrl.u32 %v3987, 7
        %v3989 = vsub.s32 0, %v3988
        %v3990 = vrot.slane %v3985, %v3989
        %v3993 = vsel %vm2347, %v3973, 0
        %v3996 = vsel %vm2347, %v3974, 0
        %3998 = vmatprep.subr.mxu0 0.0
        %3999 = vmatpush1.msra.mxu0 %v3976
        %4000 = vmatprep.subr.mxu0 0.0
        %4001 = vmatpush1.msra.mxu0 %v3977
        %4002 = vmatprep.subr.mxu0 0.0
        %4003 = vmatpush1.msra.mxu0 %v3978
        %4004 = vmatprep.subr.mxu0 0.0
        %4005 = vmatpush1.msra.mxu0 %v3979
        %4006 = vmatprep.subr.mxu0 0.0
        %4007 = vmatpush1.msra.mxu0 %v3980
        %4008 = vmatprep.subr.mxu0 0.0
        %4009 = vmatpush1.msra.mxu0 %v3981
        %4010 = vmatprep.subr.mxu0 0.0
        %4011 = vmatpush1.msra.mxu0 %v3982
        %4012 = vmatprep.subr.mxu0 0.0
        %4013 = vmatpush1.msra.mxu0 %v3983
        %4014 = vmatprep.subr.mxu0 0.0
        %4015 = vmatpush1.msra.mxu0 0.0
        %4016 = vmatprep.subr.mxu0 0.0
        %4017 = vmatpush1.msra.mxu0 0.0
        %4018 = vmatprep.subr.mxu0 0.0
        %4019 = vmatpush1.msra.mxu0 0.0
        %4020 = vmatprep.subr.mxu0 0.0
        %4021 = vmatpush1.msra.mxu0 0.0
        %4022 = vmatprep.subr.mxu0 0.0
        %4023 = vmatpush1.msra.mxu0 0.0
        %4024 = vmatprep.subr.mxu0 0.0
        %4025 = vmatpush1.msra.mxu0 0.0
        %4026 = vmatprep.subr.mxu0 0.0
        %4027 = vmatpush1.msra.mxu0 0.0
        %4028 = vmatprep.subr.mxu0 0.0
        %4029 = vmatpush1.msra.mxu0 0.0
        %4030 = vmatprep.subr.mxu0 0.0
        %4031 = vmatpush1.msra.mxu0 0.0
        %4032 = vmatprep.subr.mxu0 0.0
        %4033 = vmatpush1.msra.mxu0 0.0
        %4034 = vmatprep.subr.mxu0 0.0
        %4035 = vmatpush1.msra.mxu0 0.0
        %4036 = vmatprep.subr.mxu0 0.0
        %4037 = vmatpush1.msra.mxu0 0.0
        %4038 = vmatprep.subr.mxu0 0.0
        %4039 = vmatpush1.msra.mxu0 0.0
        %4040 = vmatprep.subr.mxu0 0.0
        %4041 = vmatpush1.msra.mxu0 0.0
        %4042 = vmatprep.subr.mxu0 0.0
        %4043 = vmatpush1.msra.mxu0 0.0
        %4044 = vmatprep.subr.mxu0 0.0
        %4045 = vmatpush1.msra.mxu0 0.0
        %4046 = vmatprep.subr.mxu0 0.0
        %4047 = vmatpush1.msra.mxu0 0.0
        %4048 = vmatprep.subr.mxu0 0.0
        %4049 = vmatpush1.msra.mxu0 0.0
        %4050 = vmatprep.subr.mxu0 0.0
        %4051 = vmatpush1.msra.mxu0 0.0
        %4052 = vmatprep.subr.mxu0 0.0
        %4053 = vmatpush1.msra.mxu0 0.0
        %4054 = vmatprep.subr.mxu0 0.0
        %4055 = vmatpush1.msra.mxu0 0.0
        %4056 = vmatprep.subr.mxu0 0.0
        %4057 = vmatpush1.msra.mxu0 0.0
        %4058 = vmatprep.subr.mxu0 0.0
        %4059 = vmatpush1.msra.mxu0 0.0
        %4060 = vmatprep.subr.mxu0 0.0
        %4061 = vmatpush1.msra.mxu0 0.0
        %4062 = vmatprep.mubr.f32.mxu0 0.0
        %4063 = vmatmul.mubr.f32.gmra.mrb[0].mxu0 %v3993
        %v4064 = vpop.f32.mrb[0].mxu0
        %v4065 = vadd.f32 %v3990, %v4064
        %v4066 = vpop.f32.mrb[0].mxu0
        %4067 = vmatprep.mubr.f32.mxu0 0.0
        %4068 = vmatmul.mubr.f32.gmra.mrb[0].mxu0 %v3996
        %v4069 = vpop.f32.mrb[0].mxu0
        %v4070 = vadd.f32 %v3990, %v4069
        %v4071 = vpop.f32.mrb[0].mxu0
        %4072 = vdwg.mxu0
        %v4073 = vadd.f32 %v4065, %v3877
        %v4074 = vadd.f32 %v4070, %v3878
        %s4075 = scalar_lea.vmem %s18, 1
        %v4076 = vld [vmem:[%s4075] sm:$0x1]
        %s4077 = scalar_lea.vmem %s19, 1
        %v4078 = vld [vmem:[%s4077] sm:$0x1]
        %v4079 = vsel %vm798, %v4073, 0.0
        %4080 = vadd.xlane.f32.xlu0 %v4079
        %v4081 = vpop.xlane.xlu0 %4080
        %v4082 = vsel %vm798, %v4074, 0.0
        %4083 = vadd.xlane.f32.xlu0 %v4082
        %v4084 = vpop.xlane.xlu0 %4083
        %v4085 = vmul.f32 %v4081, %v805
        %v4086 = vmul.f32 %v4084, %v805
        %v4087 = vsub.f32 %v4073, %v4085
        %v4088 = vsub.f32 %v4074, %v4086
        %v4089 = vmul.f32 %v4087, %v4087
        %v4090 = vmul.f32 %v4088, %v4088
        %v4091 = vsel %vm798, %v4089, 0.0
        %4092 = vadd.xlane.f32.xlu0 %v4091
        %v4093 = vpop.xlane.xlu0 %4092
        %v4094 = vsel %vm798, %v4090, 0.0
        %4095 = vadd.xlane.f32.xlu0 %v4094
        %v4096 = vpop.xlane.xlu0 %4095
        %v4097 = vmul.f32 %v4093, %v805
        %v4098 = vmul.f32 %v4096, %v805
        %v4099 = vadd.f32 %v4097, 1e-06
        %v4100 = vadd.f32 %v4098, 1e-06
        %v4101 = vrsqrt.pop %v4099
        %v4102 = vrsqrt.pop %v4100
        %v4103 = vmul.f32 %v4087, %v4101
        %v4104 = vmul.f32 %v4088, %v4102
        %v4106 = vlaneseq
        %v4107 = vshrl.u32 %v4106, 7
        %v4108 = vsub.s32 0, %v4107
        %v4109 = vrot.slane %v4076, %v4108
        %v4111 = vmul.f32 %v4103, %v4109
        %v4112 = vmul.f32 %v4104, %v4109
        %v4114 = vlaneseq
        %v4115 = vshrl.u32 %v4114, 7
        %v4116 = vsub.s32 0, %v4115
        %v4117 = vrot.slane %v4078, %v4116
        %v4119 = vadd.f32 %v4111, %v4117
        %v4120 = vadd.f32 %v4112, %v4117
        %v4121 = vld [vmem:[%s20] sm:$0xff]
        %v4122 = vld [vmem:[%s20 + $0x8] sm:$0xff]
        %v4123 = vld [vmem:[%s20 + $0x10] sm:$0xff]
        %v4124 = vld [vmem:[%s20 + $0x18] sm:$0xff]
        %v4125 = vld [vmem:[%s21] sm:$0xff]
        %v4126 = vld [vmem:[%s21 + $0x8] sm:$0xff]
        %v4127 = vld [vmem:[%s21 + $0x10] sm:$0xff]
        %v4128 = vld [vmem:[%s21 + $0x18] sm:$0xff]
        %v4130 = vsel %vm798, %v4120, 0
        %4132 = vmatprep.subr.mxu0 0.0
        %4133 = vmatpush1.msra.mxu0 %v4125
        %4134 = vmatprep.subr.mxu0 0.0
        %4135 = vmatpush1.msra.mxu0 %v4126
        %4136 = vmatprep.subr.mxu0 0.0
        %4137 = vmatpush1.msra.mxu0 %v4127
        %4138 = vmatprep.subr.mxu0 0.0
        %4139 = vmatpush1.msra.mxu0 %v4128
        %4140 = vmatprep.subr.mxu0 0.0
        %4141 = vmatpush1.msra.mxu0 0.0
        %4142 = vmatprep.subr.mxu0 0.0
        %4143 = vmatpush1.msra.mxu0 0.0
        %4144 = vmatprep.subr.mxu0 0.0
        %4145 = vmatpush1.msra.mxu0 0.0
        %4146 = vmatprep.subr.mxu0 0.0
        %4147 = vmatpush1.msra.mxu0 0.0
        %4148 = vmatprep.subr.mxu0 0.0
        %4149 = vmatpush1.msra.mxu0 0.0
        %4150 = vmatprep.subr.mxu0 0.0
        %4151 = vmatpush1.msra.mxu0 0.0
        %4152 = vmatprep.subr.mxu0 0.0
        %4153 = vmatpush1.msra.mxu0 0.0
        %4154 = vmatprep.subr.mxu0 0.0
        %4155 = vmatpush1.msra.mxu0 0.0
        %4156 = vmatprep.subr.mxu0 0.0
        %4157 = vmatpush1.msra.mxu0 0.0
        %4158 = vmatprep.subr.mxu0 0.0
        %4159 = vmatpush1.msra.mxu0 0.0
        %4160 = vmatprep.subr.mxu0 0.0
        %4161 = vmatpush1.msra.mxu0 0.0
        %4162 = vmatprep.subr.mxu0 0.0
        %4163 = vmatpush1.msra.mxu0 0.0
        %4164 = vmatprep.subr.mxu0 0.0
        %4165 = vmatpush1.msra.mxu0 0.0
        %4166 = vmatprep.subr.mxu0 0.0
        %4167 = vmatpush1.msra.mxu0 0.0
        %4168 = vmatprep.subr.mxu0 0.0
        %4169 = vmatpush1.msra.mxu0 0.0
        %4170 = vmatprep.subr.mxu0 0.0
        %4171 = vmatpush1.msra.mxu0 0.0
        %4172 = vmatprep.subr.mxu0 0.0
        %4173 = vmatpush1.msra.mxu0 0.0
        %4174 = vmatprep.subr.mxu0 0.0
        %4175 = vmatpush1.msra.mxu0 0.0
        %4176 = vmatprep.subr.mxu0 0.0
        %4177 = vmatpush1.msra.mxu0 0.0
        %4178 = vmatprep.subr.mxu0 0.0
        %4179 = vmatpush1.msra.mxu0 0.0
        %4180 = vmatprep.subr.mxu0 0.0
        %4181 = vmatpush1.msra.mxu0 0.0
        %4182 = vmatprep.subr.mxu0 0.0
        %4183 = vmatpush1.msra.mxu0 0.0
        %4184 = vmatprep.subr.mxu0 0.0
        %4185 = vmatpush1.msra.mxu0 0.0
        %4186 = vmatprep.subr.mxu0 0.0
        %4187 = vmatpush1.msra.mxu0 0.0
        %4188 = vmatprep.subr.mxu0 0.0
        %4189 = vmatpush1.msra.mxu0 0.0
        %4190 = vmatprep.subr.mxu0 0.0
        %4191 = vmatpush1.msra.mxu0 0.0
        %4192 = vmatprep.subr.mxu0 0.0
        %4193 = vmatpush1.msra.mxu0 0.0
        %4194 = vmatprep.subr.mxu0 0.0
        %4195 = vmatpush1.msra.mxu0 0.0
        %4196 = vmatprep.mubr.f32.mxu0 0.0
        %4197 = vmatmul.mubr.f32.gmra.mrb[0].mxu0 %v4130
        %v4198 = vpop.f32.mrb[0].mxu0
        %v4199 = vadd.f32 0.0, %v4198
        %v4200 = vpop.f32.mrb[0].mxu0
        %4201 = vdwg.mxu0
        %v4203 = vsel %vm798, %v4119, 0
        %4205 = vmatprep.subr.mxu0 0.0
        %4206 = vmatpush1.msra.mxu0 %v4121
        %4207 = vmatprep.subr.mxu0 0.0
        %4208 = vmatpush1.msra.mxu0 %v4122
        %4209 = vmatprep.subr.mxu0 0.0
        %4210 = vmatpush1.msra.mxu0 %v4123
        %4211 = vmatprep.subr.mxu0 0.0
        %4212 = vmatpush1.msra.mxu0 %v4124
        %4213 = vmatprep.subr.mxu0 0.0
        %4214 = vmatpush1.msra.mxu0 0.0
        %4215 = vmatprep.subr.mxu0 0.0
        %4216 = vmatpush1.msra.mxu0 0.0
        %4217 = vmatprep.subr.mxu0 0.0
        %4218 = vmatpush1.msra.mxu0 0.0
        %4219 = vmatprep.subr.mxu0 0.0
        %4220 = vmatpush1.msra.mxu0 0.0
        %4221 = vmatprep.subr.mxu0 0.0
        %4222 = vmatpush1.msra.mxu0 0.0
        %4223 = vmatprep.subr.mxu0 0.0
        %4224 = vmatpush1.msra.mxu0 0.0
        %4225 = vmatprep.subr.mxu0 0.0
        %4226 = vmatpush1.msra.mxu0 0.0
        %4227 = vmatprep.subr.mxu0 0.0
        %4228 = vmatpush1.msra.mxu0 0.0
        %4229 = vmatprep.subr.mxu0 0.0
        %4230 = vmatpush1.msra.mxu0 0.0
        %4231 = vmatprep.subr.mxu0 0.0
        %4232 = vmatpush1.msra.mxu0 0.0
        %4233 = vmatprep.subr.mxu0 0.0
        %4234 = vmatpush1.msra.mxu0 0.0
        %4235 = vmatprep.subr.mxu0 0.0
        %4236 = vmatpush1.msra.mxu0 0.0
        %4237 = vmatprep.subr.mxu0 0.0
        %4238 = vmatpush1.msra.mxu0 0.0
        %4239 = vmatprep.subr.mxu0 0.0
        %4240 = vmatpush1.msra.mxu0 0.0
        %4241 = vmatprep.subr.mxu0 0.0
        %4242 = vmatpush1.msra.mxu0 0.0
        %4243 = vmatprep.subr.mxu0 0.0
        %4244 = vmatpush1.msra.mxu0 0.0
        %4245 = vmatprep.subr.mxu0 0.0
        %4246 = vmatpush1.msra.mxu0 0.0
        %4247 = vmatprep.subr.mxu0 0.0
        %4248 = vmatpush1.msra.mxu0 0.0
        %4249 = vmatprep.subr.mxu0 0.0
        %4250 = vmatpush1.msra.mxu0 0.0
        %4251 = vmatprep.subr.mxu0 0.0
        %4252 = vmatpush1.msra.mxu0 0.0
        %4253 = vmatprep.subr.mxu0 0.0
        %4254 = vmatpush1.msra.mxu0 0.0
        %4255 = vmatprep.subr.mxu0 0.0
        %4256 = vmatpush1.msra.mxu0 0.0
        %4257 = vmatprep.subr.mxu0 0.0
        %4258 = vmatpush1.msra.mxu0 0.0
        %4259 = vmatprep.subr.mxu0 0.0
        %4260 = vmatpush1.msra.mxu0 0.0
        %4261 = vmatprep.subr.mxu0 0.0
        %4262 = vmatpush1.msra.mxu0 0.0
        %4263 = vmatprep.subr.mxu0 0.0
        %4264 = vmatpush1.msra.mxu0 0.0
        %4265 = vmatprep.subr.mxu0 0.0
        %4266 = vmatpush1.msra.mxu0 0.0
        %4267 = vmatprep.subr.mxu0 0.0
        %4268 = vmatpush1.msra.mxu0 0.0
        %4269 = vmatprep.mubr.f32.mxu0 0.0
        %4270 = vmatmul.mubr.f32.gmra.mrb[0].mxu0 %v4203
        %v4271 = vpop.f32.mrb[0].mxu0
        %v4272 = vadd.f32 %v4199, %v4271
        %v4273 = vpop.f32.mrb[0].mxu0
        %4274 = vdwg.mxu0
        %v4275 = vsub.f32 %v4119, %v4120
        %v4276 = vand.u32 2147483647, %v4275
        %v4277 = vld [vmem:[%s22] sm:$0xff]
        %v4278 = vld [vmem:[%s22 + $0x8] sm:$0xff]
        %v4279 = vld [vmem:[%s22 + $0x10] sm:$0xff]
        %v4280 = vld [vmem:[%s22 + $0x18] sm:$0xff]
        %v4282 = vsel %vm798, %v4276, 0
        %4284 = vmatprep.subr.mxu0 0.0
        %4285 = vmatpush1.msra.mxu0 %v4277
        %4286 = vmatprep.subr.mxu0 0.0
        %4287 = vmatpush1.msra.mxu0 %v4278
        %4288 = vmatprep.subr.mxu0 0.0
        %4289 = vmatpush1.msra.mxu0 %v4279
        %4290 = vmatprep.subr.mxu0 0.0
        %4291 = vmatpush1.msra.mxu0 %v4280
        %4292 = vmatprep.subr.mxu0 0.0
        %4293 = vmatpush1.msra.mxu0 0.0
        %4294 = vmatprep.subr.mxu0 0.0
        %4295 = vmatpush1.msra.mxu0 0.0
        %4296 = vmatprep.subr.mxu0 0.0
        %4297 = vmatpush1.msra.mxu0 0.0
        %4298 = vmatprep.subr.mxu0 0.0
        %4299 = vmatpush1.msra.mxu0 0.0
        %4300 = vmatprep.subr.mxu0 0.0
        %4301 = vmatpush1.msra.mxu0 0.0
        %4302 = vmatprep.subr.mxu0 0.0
        %4303 = vmatpush1.msra.mxu0 0.0
        %4304 = vmatprep.subr.mxu0 0.0
        %4305 = vmatpush1.msra.mxu0 0.0
        %4306 = vmatprep.subr.mxu0 0.0
        %4307 = vmatpush1.msra.mxu0 0.0
        %4308 = vmatprep.subr.mxu0 0.0
        %4309 = vmatpush1.msra.mxu0 0.0
        %4310 = vmatprep.subr.mxu0 0.0
        %4311 = vmatpush1.msra.mxu0 0.0
        %4312 = vmatprep.subr.mxu0 0.0
        %4313 = vmatpush1.msra.mxu0 0.0
        %4314 = vmatprep.subr.mxu0 0.0
        %4315 = vmatpush1.msra.mxu0 0.0
        %4316 = vmatprep.subr.mxu0 0.0
        %4317 = vmatpush1.msra.mxu0 0.0
        %4318 = vmatprep.subr.mxu0 0.0
        %4319 = vmatpush1.msra.mxu0 0.0
        %4320 = vmatprep.subr.mxu0 0.0
        %4321 = vmatpush1.msra.mxu0 0.0
        %4322 = vmatprep.subr.mxu0 0.0
        %4323 = vmatpush1.msra.mxu0 0.0
        %4324 = vmatprep.subr.mxu0 0.0
        %4325 = vmatpush1.msra.mxu0 0.0
        %4326 = vmatprep.subr.mxu0 0.0
        %4327 = vmatpush1.msra.mxu0 0.0
        %4328 = vmatprep.subr.mxu0 0.0
        %4329 = vmatpush1.msra.mxu0 0.0
        %4330 = vmatprep.subr.mxu0 0.0
        %4331 = vmatpush1.msra.mxu0 0.0
        %4332 = vmatprep.subr.mxu0 0.0
        %4333 = vmatpush1.msra.mxu0 0.0
        %4334 = vmatprep.subr.mxu0 0.0
        %4335 = vmatpush1.msra.mxu0 0.0
        %4336 = vmatprep.subr.mxu0 0.0
        %4337 = vmatpush1.msra.mxu0 0.0
        %4338 = vmatprep.subr.mxu0 0.0
        %4339 = vmatpush1.msra.mxu0 0.0
        %4340 = vmatprep.subr.mxu0 0.0
        %4341 = vmatpush1.msra.mxu0 0.0
        %4342 = vmatprep.subr.mxu0 0.0
        %4343 = vmatpush1.msra.mxu0 0.0
        %4344 = vmatprep.subr.mxu0 0.0
        %4345 = vmatpush1.msra.mxu0 0.0
        %4346 = vmatprep.subr.mxu0 0.0
        %4347 = vmatpush1.msra.mxu0 0.0
        %4348 = vmatprep.mubr.f32.mxu0 0.0
        %4349 = vmatmul.mubr.f32.gmra.mrb[0].mxu0 %v4282
        %v4350 = vpop.f32.mrb[0].mxu0
        %v4351 = vadd.f32 0.0, %v4350
        %v4352 = vpop.f32.mrb[0].mxu0
        %4353 = vdwg.mxu0
        %v4354 = vadd.f32 %v4272, %v4351
        %v4355 = vld [vmem:[%s23] sm:$0x1]
        %v4356 = vadd.f32 %v4354, %v4355
        %v4357 = vtanh.pop %v4356
        %v4358 = vld [vmem:[%s24] sm:$0xff]
        %v4359 = vld [vmem:[%s24 + $0x8] sm:$0xff]
        %v4360 = vld [vmem:[%s24 + $0x10] sm:$0xff]
        %v4361 = vld [vmem:[%s24 + $0x18] sm:$0xff]
        %v4362 = vld [vmem:[%s24 + $0x20] sm:$0xff]
        %v4363 = vld [vmem:[%s24 + $0x28] sm:$0xff]
        %v4364 = vld [vmem:[%s24 + $0x30] sm:$0xff]
        %v4365 = vld [vmem:[%s24 + $0x38] sm:$0xff]
        %v4366 = vld [vmem:[%s25] sm:$0x1]
        %v4368 = vsel %vm2347, %v4357, 0
        %4370 = vmatprep.subr.mxu0 0.0
        %4371 = vmatpush1.msra.mxu0 %v4358
        %4372 = vmatprep.subr.mxu0 0.0
        %4373 = vmatpush1.msra.mxu0 %v4359
        %4374 = vmatprep.subr.mxu0 0.0
        %4375 = vmatpush1.msra.mxu0 %v4360
        %4376 = vmatprep.subr.mxu0 0.0
        %4377 = vmatpush1.msra.mxu0 %v4361
        %4378 = vmatprep.subr.mxu0 0.0
        %4379 = vmatpush1.msra.mxu0 %v4362
        %4380 = vmatprep.subr.mxu0 0.0
        %4381 = vmatpush1.msra.mxu0 %v4363
        %4382 = vmatprep.subr.mxu0 0.0
        %4383 = vmatpush1.msra.mxu0 %v4364
        %4384 = vmatprep.subr.mxu0 0.0
        %4385 = vmatpush1.msra.mxu0 %v4365
        %4386 = vmatprep.subr.mxu0 0.0
        %4387 = vmatpush1.msra.mxu0 0.0
        %4388 = vmatprep.subr.mxu0 0.0
        %4389 = vmatpush1.msra.mxu0 0.0
        %4390 = vmatprep.subr.mxu0 0.0
        %4391 = vmatpush1.msra.mxu0 0.0
        %4392 = vmatprep.subr.mxu0 0.0
        %4393 = vmatpush1.msra.mxu0 0.0
        %4394 = vmatprep.subr.mxu0 0.0
        %4395 = vmatpush1.msra.mxu0 0.0
        %4396 = vmatprep.subr.mxu0 0.0
        %4397 = vmatpush1.msra.mxu0 0.0
        %4398 = vmatprep.subr.mxu0 0.0
        %4399 = vmatpush1.msra.mxu0 0.0
        %4400 = vmatprep.subr.mxu0 0.0
        %4401 = vmatpush1.msra.mxu0 0.0
        %4402 = vmatprep.subr.mxu0 0.0
        %4403 = vmatpush1.msra.mxu0 0.0
        %4404 = vmatprep.subr.mxu0 0.0
        %4405 = vmatpush1.msra.mxu0 0.0
        %4406 = vmatprep.subr.mxu0 0.0
        %4407 = vmatpush1.msra.mxu0 0.0
        %4408 = vmatprep.subr.mxu0 0.0
        %4409 = vmatpush1.msra.mxu0 0.0
        %4410 = vmatprep.subr.mxu0 0.0
        %4411 = vmatpush1.msra.mxu0 0.0
        %4412 = vmatprep.subr.mxu0 0.0
        %4413 = vmatpush1.msra.mxu0 0.0
        %4414 = vmatprep.subr.mxu0 0.0
        %4415 = vmatpush1.msra.mxu0 0.0
        %4416 = vmatprep.subr.mxu0 0.0
        %4417 = vmatpush1.msra.mxu0 0.0
        %4418 = vmatprep.subr.mxu0 0.0
        %4419 = vmatpush1.msra.mxu0 0.0
        %4420 = vmatprep.subr.mxu0 0.0
        %4421 = vmatpush1.msra.mxu0 0.0
        %4422 = vmatprep.subr.mxu0 0.0
        %4423 = vmatpush1.msra.mxu0 0.0
        %4424 = vmatprep.subr.mxu0 0.0
        %4425 = vmatpush1.msra.mxu0 0.0
        %4426 = vmatprep.subr.mxu0 0.0
        %4427 = vmatpush1.msra.mxu0 0.0
        %4428 = vmatprep.subr.mxu0 0.0
        %4429 = vmatpush1.msra.mxu0 0.0
        %4430 = vmatprep.subr.mxu0 0.0
        %4431 = vmatpush1.msra.mxu0 0.0
        %4432 = vmatprep.subr.mxu0 0.0
        %4433 = vmatpush1.msra.mxu0 0.0
        %4434 = vmatprep.mubr.f32.mxu0 0.0
        %4435 = vmatmul.mubr.f32.gmra.mrb[0].mxu0 %v4368
        %v4436 = vpop.f32.mrb[0].mxu0
        %v4437 = vadd.f32 %v4366, %v4436
        %v4438 = vpop.f32.mrb[0].mxu0
        %4439 = vdwg.mxu0
        %4440 = vst [vmem:[%s783] sm:$0x1] %v4437
        %s4441 = sand.u32 %s599, 1
        %s4442 = scalar_lea.sflag [#allocation3], %s4441
        %s4443 = sand.u32 %s599, 1
        %s4444 = scalar_lea.vmem [#allocation2], %s4443
        // Predicated region
        $region125: #{transformer_sentence_forward.1} parent=123 // pred_check
          %p4445 = pneg %p609
        $region126: #{transformer_sentence_forward.1} parent=123 // pred_check_branch
          %4447 = sbr.rel (%p4445) target = $region128
        $region127: #{transformer_sentence_forward.1} parent=123 // pred_region
          %s4449 = ssub.s32 16, 16
          %4450 = vsyncadd %s4442, %s4449
          %s4451 = smul.addr %s40, 16
          %s4452 = scalar_lea.hbm %s26, %s4451
          %s4454 = sshll.u32 %s4444, 4
          %s4455 = int_to_ptr.vmem [resolvable:$true] %s4454
          %4457 = dma.vmem_to_hbm [thread:$0]  %s4455, 16, %s4452, %s4442
        $region128: #{transformer_sentence_forward.1} parent=123 // pred_fallthru
          _
      $region124: #{transformer_sentence_forward.1} parent=5 // pred_fallthru
        _
      %p4458 = scmp.le.s32.totalorder 2, %s35
      // Predicated region
      $region129: #{transformer_sentence_forward.1} parent=5 // pred_check
        %p4459 = pneg %p4458
      $region130: #{transformer_sentence_forward.1} parent=5 // pred_check_branch
        %4461 = sbr.rel (%p4459) target = $region132
      $region131: #{transformer_sentence_forward.1} parent=5 // pred_region
        %s4462 = ssub.s32 %s35, 2
        // Predicated region
        $region133: #{transformer_sentence_forward.1} parent=131 // pred_check
          %p4463 = pneg %p615
        $region134: #{transformer_sentence_forward.1} parent=131 // pred_check_branch
          %4465 = sbr.rel (%p4463) target = $region136
        $region135: #{transformer_sentence_forward.1} parent=131 // pred_region
          %s4466 = sand.u32 %s600, 1
          %s4467 = scalar_lea.sflag [#allocation3], %s4466
          %s4468 = sand.u32 %s600, 1
          %s4469 = scalar_lea.vmem [#allocation2], %s4468
          %4470 = dma.done %s4467, 16
        $region136: #{transformer_sentence_forward.1} parent=131 // pred_fallthru
          _
      $region132: #{transformer_sentence_forward.1} parent=5 // pred_fallthru
        _
    $region6: #{transformer_sentence_forward.1} parent=1 // loop_footer
      %s39 = sadd.s32 1, %s35
    $region7: #{transformer_sentence_forward.1} parent=1 // loop_footer_branch
      %34 = sbr.rel target = $region3
    $region8: #{transformer_sentence_forward.1} parent=1 // loop_exit
      _
    %4471 = vsyncpa [#allocation3], 1
    %s4472 = scalar_lea.sflag [#allocation3], 1
    %4473 = vsyncpa %s4472, 1

</llo_original>
